<compile_context>
chip_gen: v7x
topology: tpu7x:2x2x1
jax: 0.10.0
libtpu: 0.0.40
codegen_flags: <defaults>
</compile_context>

<pallas_src>
import functools

import jax
import jax.numpy as jnp
from jax.experimental import pallas as pl
from jax.experimental.pallas import tpu as pltpu


# ----------------------------------------------------------------------------
# Fused kernel: one (batch_block, layer) grid step.
# ----------------------------------------------------------------------------
def _simcse_fused_kernel(*refs, num_heads, head_dim, pooling, ln_eps):
  if pooling == "pooler":
    (emb_ref, bias_ref,
     emb_ln_g_ref, emb_ln_b_ref,
     qkv_w_ref, qkv_b_ref,
     o_w_ref, o_b_ref,
     ln1_g_ref, ln1_b_ref,
     i_w_ref, i_b_ref,
     f_w_ref, f_b_ref,
     ln2_g_ref, ln2_b_ref,
     pooler_w_ref, pooler_b_ref,
     out_ref, x_scr, first_scr) = refs
  else:
    (emb_ref, bias_ref,
     emb_ln_g_ref, emb_ln_b_ref,
     qkv_w_ref, qkv_b_ref,
     o_w_ref, o_b_ref,
     ln1_g_ref, ln1_b_ref,
     i_w_ref, i_b_ref,
     f_w_ref, f_b_ref,
     ln2_g_ref, ln2_b_ref,
     out_ref, x_scr, first_scr) = refs
    pooler_w_ref = pooler_b_ref = None

  TB, S, H = emb_ref.shape
  M = TB * S
  scale = 1.0 / (float(head_dim) ** 0.5)
  l = pl.program_id(1)
  n_layers = pl.num_programs(1)

  def layer_norm(x, g, b):          # x: (M, H) f32, g/b: (1, H) f32
    mu = jnp.mean(x, axis=-1, keepdims=True)
    var = jnp.mean((x - mu) ** 2, axis=-1, keepdims=True)
    return (x - mu) * jax.lax.rsqrt(var + ln_eps) * g + b

  # ---- layer step 0: init carried activation = LayerNorm(embeddings) ----
  @pl.when(l == 0)
  def _init():
    e = emb_ref[...].astype(jnp.float32).reshape(M, H)
    x_scr[...] = layer_norm(e, emb_ln_g_ref[...],
                            emb_ln_b_ref[...]).reshape(TB, S, H)

  x = x_scr[...].reshape(M, H)                 # carried activation, f32
  x_bf = x.astype(jnp.bfloat16)

  # ---- fused QKV projection for this layer (one (M,H) x (H,3H) matmul) ----
  qkv = jnp.dot(x_bf, qkv_w_ref[0],
                preferred_element_type=jnp.float32) + qkv_b_ref[0]   # (M, 3H)
  q_all = (qkv[:, 0:H] * scale).astype(jnp.bfloat16)   # scale folded into Q
  k_all = qkv[:, H:2 * H].astype(jnp.bfloat16)
  v_all = qkv[:, 2 * H:3 * H].astype(jnp.bfloat16)

  bias_all = bias_ref[...]                              # (TB, 1, S) f32
  o_w = o_w_ref[0]                                      # (H, H) bf16

  # ---- self-attention per sequence; heads unrolled; output projection
  #      accumulated per head (no concatenate of 64-wide contexts) ----
  attn_rows = []
  for b in range(TB):
    r0, r1 = b * S, (b + 1) * S
    bias_sb = jnp.broadcast_to(bias_all[b], (S, S))     # once per sequence
    acc = None
    for h in range(num_heads):
      c0 = h * head_dim
      c1 = c0 + head_dim
      qh = q_all[r0:r1, c0:c1]                          # (S, Dh) bf16
      kh = k_all[r0:r1, c0:c1]
      vh = v_all[r0:r1, c0:c1]
      s = jax.lax.dot_general(qh, kh, (((1,), (1,)), ((), ())),
                              preferred_element_type=jnp.float32)    # (S, S)
      s = s + bias_sb
      s = s - jnp.max(s, axis=-1, keepdims=True)
      p = jnp.exp(s)
      p = p * pl.reciprocal(jnp.sum(p, axis=-1, keepdims=True), approx=True)
      ctx = jnp.dot(p.astype(jnp.bfloat16), vh,
                    preferred_element_type=jnp.float32)              # (S, Dh)
      contrib = jnp.dot(ctx.astype(jnp.bfloat16), o_w[c0:c1, :],
                        preferred_element_type=jnp.float32)          # (S, H)
      acc = contrib if acc is None else acc + contrib
    attn_rows.append(acc)
  attn_proj = attn_rows[0] if TB == 1 else jnp.concatenate(attn_rows, axis=0)

  # ---- attention output bias + fused residual + LayerNorm ----
  x1 = layer_norm(attn_proj + o_b_ref[0] + x, ln1_g_ref[0], ln1_b_ref[0])

  # ---- FFN (bf16 intermediates) + fused residual + LayerNorm ----
  inter = jnp.dot(x1.astype(jnp.bfloat16), i_w_ref[0],
                  preferred_element_type=jnp.float32) + i_b_ref[0]
  # TODO(synk): HF BERT uses exact erf GELU; tanh approximation used here (EUP path).
  inter = jax.nn.gelu(inter, approximate=True).astype(jnp.bfloat16)
  ffn = jnp.dot(inter, f_w_ref[0],
                preferred_element_type=jnp.float32) + f_b_ref[0]
  x2 = layer_norm(ffn + x1, ln2_g_ref[0], ln2_b_ref[0])

  x_scr[...] = x2.reshape(TB, S, H)

  if pooling == "first-last-avg":
    @pl.when(l == 0)
    def _store_first():
      # keep only the (TB, H) mean of the first encoder layer's output
      first_scr[...] = jnp.mean(x2.reshape(TB, S, H), axis=1)

  # ---- last layer: SimCSE pooling + output write ----
  @pl.when(l == n_layers - 1)
  def _finalize():
    x3d = x2.reshape(TB, S, H)
    if pooling == "cls":
      pooled = x3d[:, 0, :]
    elif pooling == "pooler":
      cls = x3d[:, 0, :].astype(jnp.bfloat16)
      pooled = jnp.tanh(jnp.dot(cls, pooler_w_ref[...],
                                preferred_element_type=jnp.float32)
                        + pooler_b_ref[...])
    elif pooling == "last-avg":
      # Averages over the FULL sequence (incl. padding) like torch.avg_pool1d.
      pooled = jnp.mean(x3d, axis=1)
    elif pooling == "first-last-avg":
      pooled = 0.5 * (first_scr[...] + jnp.mean(x3d, axis=1))
    else:
      raise ValueError(pooling)
    out_ref[...] = pooled.reshape(TB, 1, H).astype(out_ref.dtype)


# ----------------------------------------------------------------------------
# pallas_call wrapper
# ----------------------------------------------------------------------------
def _vmem_limit_bytes():
  try:
    cap = int(pltpu.get_tpu_info().vmem_capacity_bytes)
  except Exception:
    cap = 64 * 1024 * 1024
  return max(32 * 1024 * 1024, min(100 * 1024 * 1024, (cap * 3) // 4))


def _pick_tb(batch, seq, hidden):
  """Smallest divisor of batch s.t. tb*seq >= 256 (bigger MXU M), capped so
  the carried f32 activation stays <= ~4 MiB."""
  cap = max(1, (4 * 1024 * 1024) // max(1, seq * hidden * 4))
  best = 1
  for tb in range(1, batch + 1):
    if batch % tb != 0 or tb > cap:
      continue
    best = tb
    if tb * seq >= 256:
      break
  return best


def _simcse_pallas(params, emb, attn_bias, pooling, num_heads, tb):
  B, S, H = emb.shape
  L = params["qkv_w"].shape[0]
  F = params["i_w"].shape[2]
  dH = H // num_heads
  BB = B // tb

  kern = functools.partial(
      _simcse_fused_kernel, num_heads=num_heads, head_dim=dH,
      pooling=pooling, ln_eps=1e-12)

  def per_layer(shape):   # one layer's slab, indexed by the layer grid axis
    rest = (0,) * (len(shape) - 1)
    return pl.BlockSpec((1,) + shape[1:], lambda bb, l, _r=rest: (l,) + _r)

  def const(shape):       # replicated (same block every grid step)
    zeros = (0,) * len(shape)
    return pl.BlockSpec(shape, lambda bb, l, _z=zeros: _z)

  in_specs = [
      pl.BlockSpec((tb, S, H), lambda bb, l: (bb, 0, 0)),   # emb (bf16)
      pl.BlockSpec((tb, 1, S), lambda bb, l: (bb, 0, 0)),   # additive attn mask
      const((1, H)), const((1, H)),                         # embedding LN
      per_layer((L, H, 3 * H)), per_layer((L, 1, 3 * H)),   # fused QKV
      per_layer((L, H, H)), per_layer((L, 1, H)),           # attn output proj
      per_layer((L, 1, H)), per_layer((L, 1, H)),           # LN1
      per_layer((L, H, F)), per_layer((L, 1, F)),           # FFN in
      per_layer((L, F, H)), per_layer((L, 1, H)),           # FFN out
      per_layer((L, 1, H)), per_layer((L, 1, H)),           # LN2
  ]
  operands = [
      emb, attn_bias,
      params["emb_ln_g"], params["emb_ln_b"],
      params["qkv_w"], params["qkv_b"],
      params["o_w"], params["o_b"],
      params["ln1_g"], params["ln1_b"],
      params["i_w"], params["i_b"],
      params["f_w"], params["f_b"],
      params["ln2_g"], params["ln2_b"],
  ]
  if pooling == "pooler":               # only DMA pooler weights when used
    in_specs += [const((H, H)), const((1, H))]
    operands += [params["pooler_w"], params["pooler_b"]]

  out = pl.pallas_call(
      kern,
      out_shape=jax.ShapeDtypeStruct((B, 1, H), jnp.float32),
      grid=(BB, L),
      in_specs=in_specs,
      out_specs=pl.BlockSpec((tb, 1, H), lambda bb, l: (bb, 0, 0)),
      scratch_shapes=[
          pltpu.VMEM((tb, S, H), jnp.float32),   # carried activation
          pltpu.VMEM((tb, H), jnp.float32),      # layer-0 mean (first-last-avg)
      ],
      compiler_params=pltpu.CompilerParams(
          dimension_semantics=("parallel", "arbitrary"),
          vmem_limit_bytes=_vmem_limit_bytes()),
  )(*operands)
  return out.reshape(B, H)


# ----------------------------------------------------------------------------
# Parameters (stacked per layer; matmul weights stored bf16 for the MXU)
# ----------------------------------------------------------------------------
def init_params(key, vocab, type_vocab, max_pos, hidden, ffn, layers):
  std = 0.02
  keys = jax.random.split(key, 4 + layers * 4)
  ki = iter(keys)

  def w(shape, dtype=jnp.bfloat16):
    return (std * jax.random.normal(next(ki), shape, jnp.float32)).astype(dtype)

  return {
      "word_emb": w((vocab, hidden), jnp.float32),
      "pos_emb": w((max_pos, hidden), jnp.float32),
      "type_emb": w((type_vocab, hidden), jnp.float32),
      "emb_ln_g": jnp.ones((1, hidden), jnp.float32),
      "emb_ln_b": jnp.zeros((1, hidden), jnp.float32),
      "pooler_w": w((hidden, hidden)),
      "pooler_b": jnp.zeros((1, hidden), jnp.float32),
      "qkv_w": jnp.stack([w((hidden, 3 * hidden)) for _ in range(layers)]),
      "qkv_b": jnp.zeros((layers, 1, 3 * hidden), jnp.float32),
      "o_w": jnp.stack([w((hidden, hidden)) for _ in range(layers)]),
      "o_b": jnp.zeros((layers, 1, hidden), jnp.float32),
      "ln1_g": jnp.ones((layers, 1, hidden), jnp.float32),
      "ln1_b": jnp.zeros((layers, 1, hidden), jnp.float32),
      "i_w": jnp.stack([w((hidden, ffn)) for _ in range(layers)]),
      "i_b": jnp.zeros((layers, 1, ffn), jnp.float32),
      "f_w": jnp.stack([w((ffn, hidden)) for _ in range(layers)]),
      "f_b": jnp.zeros((layers, 1, hidden), jnp.float32),
      "ln2_g": jnp.ones((layers, 1, hidden), jnp.float32),
      "ln2_b": jnp.zeros((layers, 1, hidden), jnp.float32),
  }


# ----------------------------------------------------------------------------
# Forward (embedding gather + mask prep in JAX glue; rest in the fused kernel)
# ----------------------------------------------------------------------------
@functools.partial(jax.jit, static_argnames=("pooling", "num_heads"))
def simcse_forward(params, input_ids, attention_mask, token_type_ids, *,
                   pooling, num_heads):
  B, S = input_ids.shape
  # TODO(synk): vocab embedding lookup (dynamic gather over the table) is left
  # to XLA; a Pallas DMA-gather is not worthwhile at these sizes.
  emb = (params["word_emb"][input_ids]
         + params["pos_emb"][jnp.arange(S)][None, :, :]
         + params["type_emb"][token_type_ids]).astype(jnp.bfloat16)  # (B,S,H)
  attn_bias = ((1.0 - attention_mask.astype(jnp.float32))
               * -10000.0).reshape(B, 1, S)
  tb = _pick_tb(B, S, emb.shape[-1])
  return _simcse_pallas(params, emb, attn_bias, pooling, num_heads, tb)


# ----------------------------------------------------------------------------
if __name__ == "__main__":
  B, S, H, nH, FFN, LAYERS = 2, 8, 32, 4, 64, 2
  VOCAB, TYPE_VOCAB, MAX_POS = 50, 2, 16

  key = jax.random.PRNGKey(0)
  kp, kid, ktt = jax.random.split(key, 3)
  params = init_params(kp, VOCAB, TYPE_VOCAB, MAX_POS, H, FFN, LAYERS)

  input_ids = jax.random.randint(kid, (B, S), 0, VOCAB, dtype=jnp.int32)
  attention_mask = jnp.array([[1, 1, 1, 1, 1, 1, 0, 0],
                              [1, 1, 1, 1, 1, 1, 1, 1]], dtype=jnp.int32)
  token_type_ids = jax.random.randint(ktt, (B, S), 0, TYPE_VOCAB, dtype=jnp.int32)

  for pooling in ("cls", "pooler", "last-avg", "first-last-avg"):
    o = simcse_forward(params, input_ids, attention_mask, token_type_ids,
                       pooling=pooling, num_heads=nH)
    jax.block_until_ready(o)
    assert o.shape == (B, H), (pooling, o.shape)
    assert bool(jnp.all(jnp.isfinite(o))), pooling

  print("KERNEL_OK")
</pallas_src>

<mosaic_0001>
module attributes {stable_mosaic.version = 11 : i64} {
  func.func @_simcse_fused_kernel(%arg0: i32, %arg1: i32, %arg2: memref<2x8x32xbf16, #tpu.memory_space<vmem>>, %arg3: memref<2x1x8xf32, #tpu.memory_space<vmem>>, %arg4: memref<1x32xf32, #tpu.memory_space<vmem>>, %arg5: memref<1x32xf32, #tpu.memory_space<vmem>>, %arg6: memref<1x32x96xbf16, #tpu.memory_space<vmem>>, %arg7: memref<1x1x96xf32, #tpu.memory_space<vmem>>, %arg8: memref<1x32x32xbf16, #tpu.memory_space<vmem>>, %arg9: memref<1x1x32xf32, #tpu.memory_space<vmem>>, %arg10: memref<1x1x32xf32, #tpu.memory_space<vmem>>, %arg11: memref<1x1x32xf32, #tpu.memory_space<vmem>>, %arg12: memref<1x32x64xbf16, #tpu.memory_space<vmem>>, %arg13: memref<1x1x64xf32, #tpu.memory_space<vmem>>, %arg14: memref<1x64x32xbf16, #tpu.memory_space<vmem>>, %arg15: memref<1x1x32xf32, #tpu.memory_space<vmem>>, %arg16: memref<1x1x32xf32, #tpu.memory_space<vmem>>, %arg17: memref<1x1x32xf32, #tpu.memory_space<vmem>>, %arg18: memref<2x1x32xf32, #tpu.memory_space<vmem>>, %arg19: memref<2x8x32xf32, #tpu.memory_space<vmem>>, %arg20: memref<2x32xf32, #tpu.memory_space<vmem>>) attributes {dimension_semantics = [#tpu.dimension_semantics<parallel>, #tpu.dimension_semantics<arbitrary>], iteration_bounds = array<i64: 1, 2>, scalar_prefetch = 0 : i64, scratch_operands = 2 : i64, tpu.core_type = #tpu.core_type<tc>, window_params = [{transform_indices = @transform_0, window_bounds = array<i64: 2, 8, 32>}, {transform_indices = @transform_1, window_bounds = array<i64: 2, 1, 8>}, {pipeline_mode = #tpu.pipeline_mode<synchronous>, transform_indices = @transform_2, window_bounds = array<i64: 1, 32>}, {pipeline_mode = #tpu.pipeline_mode<synchronous>, transform_indices = @transform_3, window_bounds = array<i64: 1, 32>}, {transform_indices = @transform_4, window_bounds = array<i64: 1, 32, 96>}, {transform_indices = @transform_5, window_bounds = array<i64: 1, 1, 96>}, {transform_indices = @transform_6, window_bounds = array<i64: 1, 32, 32>}, {transform_indices = @transform_7, window_bounds = array<i64: 1, 1, 32>}, {transform_indices = @transform_8, window_bounds = array<i64: 1, 1, 32>}, {transform_indices = @transform_9, window_bounds = array<i64: 1, 1, 32>}, {transform_indices = @transform_10, window_bounds = array<i64: 1, 32, 64>}, {transform_indices = @transform_11, window_bounds = array<i64: 1, 1, 64>}, {transform_indices = @transform_12, window_bounds = array<i64: 1, 64, 32>}, {transform_indices = @transform_13, window_bounds = array<i64: 1, 1, 32>}, {transform_indices = @transform_14, window_bounds = array<i64: 1, 1, 32>}, {transform_indices = @transform_15, window_bounds = array<i64: 1, 1, 32>}, {transform_indices = @transform_16, window_bounds = array<i64: 2, 1, 32>}]} {
    %c0_i32 = arith.constant 0 : i32
    %0 = arith.cmpi eq, %arg1, %c0_i32 : i32
    %1 = arith.extui %0 : i1 to i32
    %c0_i32_0 = arith.constant 0 : i32
    %2 = arith.cmpi ne, %1, %c0_i32_0 : i32
    scf.if %2 {
      %c0_103 = arith.constant 0 : index
      %c0_104 = arith.constant 0 : index
      %c0_105 = arith.constant 0 : index
      %291 = vector.load %arg2[%c0_103, %c0_104, %c0_105] : memref<2x8x32xbf16, #tpu.memory_space<vmem>>, vector<2x8x32xbf16>
      %292 = arith.extf %291 : vector<2x8x32xbf16> to vector<2x8x32xf32>
      %293 = vector.shape_cast %292 : vector<2x8x32xf32> to vector<16x32xf32>
      %c0_106 = arith.constant 0 : index
      %c0_107 = arith.constant 0 : index
      %294 = vector.load %arg4[%c0_106, %c0_107] : memref<1x32xf32, #tpu.memory_space<vmem>>, vector<1x32xf32>
      %c0_108 = arith.constant 0 : index
      %c0_109 = arith.constant 0 : index
      %295 = vector.load %arg5[%c0_108, %c0_109] : memref<1x32xf32, #tpu.memory_space<vmem>>, vector<1x32xf32>
      %cst_110 = arith.constant dense<0.000000e+00> : vector<16xf32>
      %296 = vector.multi_reduction <add>, %293, %cst_110 [1] : vector<16x32xf32> to vector<16xf32>
      %297 = vector.shape_cast %296 : vector<16xf32> to vector<16x1xf32>
      %cst_111 = arith.constant 3.200000e+01 : f32
      %298 = vector.broadcast %cst_111 : f32 to vector<16x1xf32>
      %299 = arith.divf %297, %298 : vector<16x1xf32>
      %300 = vector.broadcast %299 : vector<16x1xf32> to vector<16x32xf32>
      %301 = arith.subf %293, %300 : vector<16x32xf32>
      %302 = arith.mulf %301, %301 : vector<16x32xf32>
      %cst_112 = arith.constant dense<0.000000e+00> : vector<16xf32>
      %303 = vector.multi_reduction <add>, %302, %cst_112 [1] : vector<16x32xf32> to vector<16xf32>
      %304 = vector.shape_cast %303 : vector<16xf32> to vector<16x1xf32>
      %cst_113 = arith.constant 3.200000e+01 : f32
      %305 = vector.broadcast %cst_113 : f32 to vector<16x1xf32>
      %306 = arith.divf %304, %305 : vector<16x1xf32>
      %307 = vector.broadcast %299 : vector<16x1xf32> to vector<16x32xf32>
      %308 = arith.subf %293, %307 : vector<16x32xf32>
      %cst_114 = arith.constant 9.99999996E-13 : f32
      %309 = vector.broadcast %cst_114 : f32 to vector<16x1xf32>
      %310 = arith.addf %306, %309 : vector<16x1xf32>
      %311 = math.rsqrt %310 : vector<16x1xf32>
      %312 = vector.broadcast %311 : vector<16x1xf32> to vector<16x32xf32>
      %313 = arith.mulf %308, %312 : vector<16x32xf32>
      %314 = vector.broadcast %294 : vector<1x32xf32> to vector<16x32xf32>
      %315 = arith.mulf %313, %314 : vector<16x32xf32>
      %316 = vector.broadcast %295 : vector<1x32xf32> to vector<16x32xf32>
      %317 = arith.addf %315, %316 : vector<16x32xf32>
      %318 = vector.shape_cast %317 : vector<16x32xf32> to vector<2x8x32xf32>
      %c0_115 = arith.constant 0 : index
      %c0_116 = arith.constant 0 : index
      %c0_117 = arith.constant 0 : index
      %319 = vector.load %arg19[%c0_115, %c0_116, %c0_117] : memref<2x8x32xf32, #tpu.memory_space<vmem>>, vector<2x8x32xf32>
      tpu.vector_store %arg19[%c0_115, %c0_116, %c0_117], %318 {strides = array<i32>} : memref<2x8x32xf32, #tpu.memory_space<vmem>>, vector<2x8x32xf32>,
    } else {
    }
    %c0 = arith.constant 0 : index
    %c0_1 = arith.constant 0 : index
    %c0_2 = arith.constant 0 : index
    %3 = vector.load %arg19[%c0, %c0_1, %c0_2] : memref<2x8x32xf32, #tpu.memory_space<vmem>>, vector<2x8x32xf32>
    %4 = vector.shape_cast %3 : vector<2x8x32xf32> to vector<16x32xf32>
    %5 = arith.truncf %4 : vector<16x32xf32> to vector<16x32xbf16>
    %c0_3 = arith.constant 0 : index
    %c0_4 = arith.constant 0 : index
    %c0_5 = arith.constant 0 : index
    %6 = vector.load %arg6[%c0_3, %c0_4, %c0_5] : memref<1x32x96xbf16, #tpu.memory_space<vmem>>, vector<1x32x96xbf16>
    %7 = vector.shape_cast %6 : vector<1x32x96xbf16> to vector<32x96xbf16>
    %cst = arith.constant dense<0.000000e+00> : vector<16x96xf32>
    %8 = tpu.matmul %5, %7, %cst {dimension_numbers = #tpu.dot_dimension_numbers<[1], [0], [0], [1], [0, 0, 1, 1], [], []>} : vector<16x32xbf16>, vector<32x96xbf16>, vector<16x96xf32> -> vector<16x96xf32>
    %c0_6 = arith.constant 0 : index
    %c0_7 = arith.constant 0 : index
    %c0_8 = arith.constant 0 : index
    %9 = vector.load %arg7[%c0_6, %c0_7, %c0_8] : memref<1x1x96xf32, #tpu.memory_space<vmem>>, vector<1x1x96xf32>
    %10 = vector.shape_cast %9 : vector<1x1x96xf32> to vector<1x96xf32>
    %11 = vector.broadcast %10 : vector<1x96xf32> to vector<16x96xf32>
    %12 = arith.addf %8, %11 : vector<16x96xf32>
    %13 = vector.extract_strided_slice %12 {offsets = [0, 0], sizes = [16, 32], strides = [1, 1]} : vector<16x96xf32> to vector<16x32xf32>
    %cst_9 = arith.constant 0.353553385 : f32
    %14 = vector.broadcast %cst_9 : f32 to vector<16x32xf32>
    %15 = arith.mulf %13, %14 : vector<16x32xf32>
    %16 = arith.truncf %15 : vector<16x32xf32> to vector<16x32xbf16>
    %17 = vector.extract_strided_slice %12 {offsets = [0, 32], sizes = [16, 32], strides = [1, 1]} : vector<16x96xf32> to vector<16x32xf32>
    %18 = arith.truncf %17 : vector<16x32xf32> to vector<16x32xbf16>
    %19 = vector.extract_strided_slice %12 {offsets = [0, 64], sizes = [16, 32], strides = [1, 1]} : vector<16x96xf32> to vector<16x32xf32>
    %20 = arith.truncf %19 : vector<16x32xf32> to vector<16x32xbf16>
    %c0_10 = arith.constant 0 : index
    %c0_11 = arith.constant 0 : index
    %c0_12 = arith.constant 0 : index
    %21 = vector.load %arg3[%c0_10, %c0_11, %c0_12] : memref<2x1x8xf32, #tpu.memory_space<vmem>>, vector<2x1x8xf32>
    %c0_13 = arith.constant 0 : index
    %c0_14 = arith.constant 0 : index
    %c0_15 = arith.constant 0 : index
    %22 = vector.load %arg8[%c0_13, %c0_14, %c0_15] : memref<1x32x32xbf16, #tpu.memory_space<vmem>>, vector<1x32x32xbf16>
    %23 = vector.shape_cast %22 : vector<1x32x32xbf16> to vector<32x32xbf16>
    %24 = vector.extract_strided_slice %21 {offsets = [0, 0, 0], sizes = [1, 1, 8], strides = [1, 1, 1]} : vector<2x1x8xf32> to vector<1x1x8xf32>
    %25 = vector.shape_cast %24 : vector<1x1x8xf32> to vector<1x8xf32>
    %26 = vector.shape_cast %25 : vector<1x8xf32> to vector<1x8xf32>
    %27 = vector.broadcast %26 : vector<1x8xf32> to vector<8x8xf32>
    %28 = vector.extract_strided_slice %16 {offsets = [0, 0], sizes = [8, 8], strides = [1, 1]} : vector<16x32xbf16> to vector<8x8xbf16>
    %29 = vector.extract_strided_slice %18 {offsets = [0, 0], sizes = [8, 8], strides = [1, 1]} : vector<16x32xbf16> to vector<8x8xbf16>
    %30 = vector.extract_strided_slice %20 {offsets = [0, 0], sizes = [8, 8], strides = [1, 1]} : vector<16x32xbf16> to vector<8x8xbf16>
    %cst_16 = arith.constant dense<0.000000e+00> : vector<8x8xf32>
    %31 = tpu.matmul %28, %29, %cst_16 {dimension_numbers = #tpu.dot_dimension_numbers<[1], [1], [0], [0], [0, 0, 1, 0], [], []>} : vector<8x8xbf16>, vector<8x8xbf16>, vector<8x8xf32> -> vector<8x8xf32>
    %32 = arith.addf %31, %27 : vector<8x8xf32>
    %cst_17 = arith.constant dense<0xFF800000> : vector<8xf32>
    %33 = vector.multi_reduction <maximumf>, %32, %cst_17 [1] : vector<8x8xf32> to vector<8xf32>
    %34 = vector.shape_cast %33 : vector<8xf32> to vector<8x1xf32>
    %35 = vector.broadcast %34 : vector<8x1xf32> to vector<8x8xf32>
    %36 = arith.subf %32, %35 : vector<8x8xf32>
    %37 = math.exp %36 : vector<8x8xf32>
    %cst_18 = arith.constant dense<0.000000e+00> : vector<8xf32>
    %38 = vector.multi_reduction <add>, %37, %cst_18 [1] : vector<8x8xf32> to vector<8xf32>
    %39 = vector.shape_cast %38 : vector<8xf32> to vector<8x1xf32>
    %40 = tpu.reciprocal %39 {approx = true} : vector<8x1xf32> -> vector<8x1xf32>
    %41 = vector.broadcast %40 : vector<8x1xf32> to vector<8x8xf32>
    %42 = arith.mulf %37, %41 : vector<8x8xf32>
    %43 = arith.truncf %42 : vector<8x8xf32> to vector<8x8xbf16>
    %cst_19 = arith.constant dense<0.000000e+00> : vector<8x8xf32>
    %44 = tpu.matmul %43, %30, %cst_19 {dimension_numbers = #tpu.dot_dimension_numbers<[1], [0], [0], [1], [0, 0, 1, 1], [], []>} : vector<8x8xbf16>, vector<8x8xbf16>, vector<8x8xf32> -> vector<8x8xf32>
    %45 = arith.truncf %44 : vector<8x8xf32> to vector<8x8xbf16>
    %46 = vector.extract_strided_slice %23 {offsets = [0, 0], sizes = [8, 32], strides = [1, 1]} : vector<32x32xbf16> to vector<8x32xbf16>
    %cst_20 = arith.constant dense<0.000000e+00> : vector<8x32xf32>
    %47 = tpu.matmul %45, %46, %cst_20 {dimension_numbers = #tpu.dot_dimension_numbers<[1], [0], [0], [1], [0, 0, 1, 1], [], []>} : vector<8x8xbf16>, vector<8x32xbf16>, vector<8x32xf32> -> vector<8x32xf32>
    %48 = vector.extract_strided_slice %16 {offsets = [0, 8], sizes = [8, 8], strides = [1, 1]} : vector<16x32xbf16> to vector<8x8xbf16>
    %49 = vector.extract_strided_slice %18 {offsets = [0, 8], sizes = [8, 8], strides = [1, 1]} : vector<16x32xbf16> to vector<8x8xbf16>
    %50 = vector.extract_strided_slice %20 {offsets = [0, 8], sizes = [8, 8], strides = [1, 1]} : vector<16x32xbf16> to vector<8x8xbf16>
    %cst_21 = arith.constant dense<0.000000e+00> : vector<8x8xf32>
    %51 = tpu.matmul %48, %49, %cst_21 {dimension_numbers = #tpu.dot_dimension_numbers<[1], [1], [0], [0], [0, 0, 1, 0], [], []>} : vector<8x8xbf16>, vector<8x8xbf16>, vector<8x8xf32> -> vector<8x8xf32>
    %52 = arith.addf %51, %27 : vector<8x8xf32>
    %cst_22 = arith.constant dense<0xFF800000> : vector<8xf32>
    %53 = vector.multi_reduction <maximumf>, %52, %cst_22 [1] : vector<8x8xf32> to vector<8xf32>
    %54 = vector.shape_cast %53 : vector<8xf32> to vector<8x1xf32>
    %55 = vector.broadcast %54 : vector<8x1xf32> to vector<8x8xf32>
    %56 = arith.subf %52, %55 : vector<8x8xf32>
    %57 = math.exp %56 : vector<8x8xf32>
    %cst_23 = arith.constant dense<0.000000e+00> : vector<8xf32>
    %58 = vector.multi_reduction <add>, %57, %cst_23 [1] : vector<8x8xf32> to vector<8xf32>
    %59 = vector.shape_cast %58 : vector<8xf32> to vector<8x1xf32>
    %60 = tpu.reciprocal %59 {approx = true} : vector<8x1xf32> -> vector<8x1xf32>
    %61 = vector.broadcast %60 : vector<8x1xf32> to vector<8x8xf32>
    %62 = arith.mulf %57, %61 : vector<8x8xf32>
    %63 = arith.truncf %62 : vector<8x8xf32> to vector<8x8xbf16>
    %cst_24 = arith.constant dense<0.000000e+00> : vector<8x8xf32>
    %64 = tpu.matmul %63, %50, %cst_24 {dimension_numbers = #tpu.dot_dimension_numbers<[1], [0], [0], [1], [0, 0, 1, 1], [], []>} : vector<8x8xbf16>, vector<8x8xbf16>, vector<8x8xf32> -> vector<8x8xf32>
    %65 = arith.truncf %64 : vector<8x8xf32> to vector<8x8xbf16>
    %66 = vector.extract_strided_slice %23 {offsets = [8, 0], sizes = [8, 32], strides = [1, 1]} : vector<32x32xbf16> to vector<8x32xbf16>
    %cst_25 = arith.constant dense<0.000000e+00> : vector<8x32xf32>
    %67 = tpu.matmul %65, %66, %cst_25 {dimension_numbers = #tpu.dot_dimension_numbers<[1], [0], [0], [1], [0, 0, 1, 1], [], []>} : vector<8x8xbf16>, vector<8x32xbf16>, vector<8x32xf32> -> vector<8x32xf32>
    %68 = arith.addf %47, %67 : vector<8x32xf32>
    %69 = vector.extract_strided_slice %16 {offsets = [0, 16], sizes = [8, 8], strides = [1, 1]} : vector<16x32xbf16> to vector<8x8xbf16>
    %70 = vector.extract_strided_slice %18 {offsets = [0, 16], sizes = [8, 8], strides = [1, 1]} : vector<16x32xbf16> to vector<8x8xbf16>
    %71 = vector.extract_strided_slice %20 {offsets = [0, 16], sizes = [8, 8], strides = [1, 1]} : vector<16x32xbf16> to vector<8x8xbf16>
    %cst_26 = arith.constant dense<0.000000e+00> : vector<8x8xf32>
    %72 = tpu.matmul %69, %70, %cst_26 {dimension_numbers = #tpu.dot_dimension_numbers<[1], [1], [0], [0], [0, 0, 1, 0], [], []>} : vector<8x8xbf16>, vector<8x8xbf16>, vector<8x8xf32> -> vector<8x8xf32>
    %73 = arith.addf %72, %27 : vector<8x8xf32>
    %cst_27 = arith.constant dense<0xFF800000> : vector<8xf32>
    %74 = vector.multi_reduction <maximumf>, %73, %cst_27 [1] : vector<8x8xf32> to vector<8xf32>
    %75 = vector.shape_cast %74 : vector<8xf32> to vector<8x1xf32>
    %76 = vector.broadcast %75 : vector<8x1xf32> to vector<8x8xf32>
    %77 = arith.subf %73, %76 : vector<8x8xf32>
    %78 = math.exp %77 : vector<8x8xf32>
    %cst_28 = arith.constant dense<0.000000e+00> : vector<8xf32>
    %79 = vector.multi_reduction <add>, %78, %cst_28 [1] : vector<8x8xf32> to vector<8xf32>
    %80 = vector.shape_cast %79 : vector<8xf32> to vector<8x1xf32>
    %81 = tpu.reciprocal %80 {approx = true} : vector<8x1xf32> -> vector<8x1xf32>
    %82 = vector.broadcast %81 : vector<8x1xf32> to vector<8x8xf32>
    %83 = arith.mulf %78, %82 : vector<8x8xf32>
    %84 = arith.truncf %83 : vector<8x8xf32> to vector<8x8xbf16>
    %cst_29 = arith.constant dense<0.000000e+00> : vector<8x8xf32>
    %85 = tpu.matmul %84, %71, %cst_29 {dimension_numbers = #tpu.dot_dimension_numbers<[1], [0], [0], [1], [0, 0, 1, 1], [], []>} : vector<8x8xbf16>, vector<8x8xbf16>, vector<8x8xf32> -> vector<8x8xf32>
    %86 = arith.truncf %85 : vector<8x8xf32> to vector<8x8xbf16>
    %87 = vector.extract_strided_slice %23 {offsets = [16, 0], sizes = [8, 32], strides = [1, 1]} : vector<32x32xbf16> to vector<8x32xbf16>
    %cst_30 = arith.constant dense<0.000000e+00> : vector<8x32xf32>
    %88 = tpu.matmul %86, %87, %cst_30 {dimension_numbers = #tpu.dot_dimension_numbers<[1], [0], [0], [1], [0, 0, 1, 1], [], []>} : vector<8x8xbf16>, vector<8x32xbf16>, vector<8x32xf32> -> vector<8x32xf32>
    %89 = arith.addf %68, %88 : vector<8x32xf32>
    %90 = vector.extract_strided_slice %16 {offsets = [0, 24], sizes = [8, 8], strides = [1, 1]} : vector<16x32xbf16> to vector<8x8xbf16>
    %91 = vector.extract_strided_slice %18 {offsets = [0, 24], sizes = [8, 8], strides = [1, 1]} : vector<16x32xbf16> to vector<8x8xbf16>
    %92 = vector.extract_strided_slice %20 {offsets = [0, 24], sizes = [8, 8], strides = [1, 1]} : vector<16x32xbf16> to vector<8x8xbf16>
    %cst_31 = arith.constant dense<0.000000e+00> : vector<8x8xf32>
    %93 = tpu.matmul %90, %91, %cst_31 {dimension_numbers = #tpu.dot_dimension_numbers<[1], [1], [0], [0], [0, 0, 1, 0], [], []>} : vector<8x8xbf16>, vector<8x8xbf16>, vector<8x8xf32> -> vector<8x8xf32>
    %94 = arith.addf %93, %27 : vector<8x8xf32>
    %cst_32 = arith.constant dense<0xFF800000> : vector<8xf32>
    %95 = vector.multi_reduction <maximumf>, %94, %cst_32 [1] : vector<8x8xf32> to vector<8xf32>
    %96 = vector.shape_cast %95 : vector<8xf32> to vector<8x1xf32>
    %97 = vector.broadcast %96 : vector<8x1xf32> to vector<8x8xf32>
    %98 = arith.subf %94, %97 : vector<8x8xf32>
    %99 = math.exp %98 : vector<8x8xf32>
    %cst_33 = arith.constant dense<0.000000e+00> : vector<8xf32>
    %100 = vector.multi_reduction <add>, %99, %cst_33 [1] : vector<8x8xf32> to vector<8xf32>
    %101 = vector.shape_cast %100 : vector<8xf32> to vector<8x1xf32>
    %102 = tpu.reciprocal %101 {approx = true} : vector<8x1xf32> -> vector<8x1xf32>
    %103 = vector.broadcast %102 : vector<8x1xf32> to vector<8x8xf32>
    %104 = arith.mulf %99, %103 : vector<8x8xf32>
    %105 = arith.truncf %104 : vector<8x8xf32> to vector<8x8xbf16>
    %cst_34 = arith.constant dense<0.000000e+00> : vector<8x8xf32>
    %106 = tpu.matmul %105, %92, %cst_34 {dimension_numbers = #tpu.dot_dimension_numbers<[1], [0], [0], [1], [0, 0, 1, 1], [], []>} : vector<8x8xbf16>, vector<8x8xbf16>, vector<8x8xf32> -> vector<8x8xf32>
    %107 = arith.truncf %106 : vector<8x8xf32> to vector<8x8xbf16>
    %108 = vector.extract_strided_slice %23 {offsets = [24, 0], sizes = [8, 32], strides = [1, 1]} : vector<32x32xbf16> to vector<8x32xbf16>
    %cst_35 = arith.constant dense<0.000000e+00> : vector<8x32xf32>
    %109 = tpu.matmul %107, %108, %cst_35 {dimension_numbers = #tpu.dot_dimension_numbers<[1], [0], [0], [1], [0, 0, 1, 1], [], []>} : vector<8x8xbf16>, vector<8x32xbf16>, vector<8x32xf32> -> vector<8x32xf32>
    %110 = arith.addf %89, %109 : vector<8x32xf32>
    %111 = vector.extract_strided_slice %21 {offsets = [1, 0, 0], sizes = [1, 1, 8], strides = [1, 1, 1]} : vector<2x1x8xf32> to vector<1x1x8xf32>
    %112 = vector.shape_cast %111 : vector<1x1x8xf32> to vector<1x8xf32>
    %113 = vector.shape_cast %112 : vector<1x8xf32> to vector<1x8xf32>
    %114 = vector.broadcast %113 : vector<1x8xf32> to vector<8x8xf32>
    %115 = vector.extract_strided_slice %16 {offsets = [8, 0], sizes = [8, 8], strides = [1, 1]} : vector<16x32xbf16> to vector<8x8xbf16>
    %116 = vector.extract_strided_slice %18 {offsets = [8, 0], sizes = [8, 8], strides = [1, 1]} : vector<16x32xbf16> to vector<8x8xbf16>
    %117 = vector.extract_strided_slice %20 {offsets = [8, 0], sizes = [8, 8], strides = [1, 1]} : vector<16x32xbf16> to vector<8x8xbf16>
    %cst_36 = arith.constant dense<0.000000e+00> : vector<8x8xf32>
    %118 = tpu.matmul %115, %116, %cst_36 {dimension_numbers = #tpu.dot_dimension_numbers<[1], [1], [0], [0], [0, 0, 1, 0], [], []>} : vector<8x8xbf16>, vector<8x8xbf16>, vector<8x8xf32> -> vector<8x8xf32>
    %119 = arith.addf %118, %114 : vector<8x8xf32>
    %cst_37 = arith.constant dense<0xFF800000> : vector<8xf32>
    %120 = vector.multi_reduction <maximumf>, %119, %cst_37 [1] : vector<8x8xf32> to vector<8xf32>
    %121 = vector.shape_cast %120 : vector<8xf32> to vector<8x1xf32>
    %122 = vector.broadcast %121 : vector<8x1xf32> to vector<8x8xf32>
    %123 = arith.subf %119, %122 : vector<8x8xf32>
    %124 = math.exp %123 : vector<8x8xf32>
    %cst_38 = arith.constant dense<0.000000e+00> : vector<8xf32>
    %125 = vector.multi_reduction <add>, %124, %cst_38 [1] : vector<8x8xf32> to vector<8xf32>
    %126 = vector.shape_cast %125 : vector<8xf32> to vector<8x1xf32>
    %127 = tpu.reciprocal %126 {approx = true} : vector<8x1xf32> -> vector<8x1xf32>
    %128 = vector.broadcast %127 : vector<8x1xf32> to vector<8x8xf32>
    %129 = arith.mulf %124, %128 : vector<8x8xf32>
    %130 = arith.truncf %129 : vector<8x8xf32> to vector<8x8xbf16>
    %cst_39 = arith.constant dense<0.000000e+00> : vector<8x8xf32>
    %131 = tpu.matmul %130, %117, %cst_39 {dimension_numbers = #tpu.dot_dimension_numbers<[1], [0], [0], [1], [0, 0, 1, 1], [], []>} : vector<8x8xbf16>, vector<8x8xbf16>, vector<8x8xf32> -> vector<8x8xf32>
    %132 = arith.truncf %131 : vector<8x8xf32> to vector<8x8xbf16>
    %133 = vector.extract_strided_slice %23 {offsets = [0, 0], sizes = [8, 32], strides = [1, 1]} : vector<32x32xbf16> to vector<8x32xbf16>
    %cst_40 = arith.constant dense<0.000000e+00> : vector<8x32xf32>
    %134 = tpu.matmul %132, %133, %cst_40 {dimension_numbers = #tpu.dot_dimension_numbers<[1], [0], [0], [1], [0, 0, 1, 1], [], []>} : vector<8x8xbf16>, vector<8x32xbf16>, vector<8x32xf32> -> vector<8x32xf32>
    %135 = vector.extract_strided_slice %16 {offsets = [8, 8], sizes = [8, 8], strides = [1, 1]} : vector<16x32xbf16> to vector<8x8xbf16>
    %136 = vector.extract_strided_slice %18 {offsets = [8, 8], sizes = [8, 8], strides = [1, 1]} : vector<16x32xbf16> to vector<8x8xbf16>
    %137 = vector.extract_strided_slice %20 {offsets = [8, 8], sizes = [8, 8], strides = [1, 1]} : vector<16x32xbf16> to vector<8x8xbf16>
    %cst_41 = arith.constant dense<0.000000e+00> : vector<8x8xf32>
    %138 = tpu.matmul %135, %136, %cst_41 {dimension_numbers = #tpu.dot_dimension_numbers<[1], [1], [0], [0], [0, 0, 1, 0], [], []>} : vector<8x8xbf16>, vector<8x8xbf16>, vector<8x8xf32> -> vector<8x8xf32>
    %139 = arith.addf %138, %114 : vector<8x8xf32>
    %cst_42 = arith.constant dense<0xFF800000> : vector<8xf32>
    %140 = vector.multi_reduction <maximumf>, %139, %cst_42 [1] : vector<8x8xf32> to vector<8xf32>
    %141 = vector.shape_cast %140 : vector<8xf32> to vector<8x1xf32>
    %142 = vector.broadcast %141 : vector<8x1xf32> to vector<8x8xf32>
    %143 = arith.subf %139, %142 : vector<8x8xf32>
    %144 = math.exp %143 : vector<8x8xf32>
    %cst_43 = arith.constant dense<0.000000e+00> : vector<8xf32>
    %145 = vector.multi_reduction <add>, %144, %cst_43 [1] : vector<8x8xf32> to vector<8xf32>
    %146 = vector.shape_cast %145 : vector<8xf32> to vector<8x1xf32>
    %147 = tpu.reciprocal %146 {approx = true} : vector<8x1xf32> -> vector<8x1xf32>
    %148 = vector.broadcast %147 : vector<8x1xf32> to vector<8x8xf32>
    %149 = arith.mulf %144, %148 : vector<8x8xf32>
    %150 = arith.truncf %149 : vector<8x8xf32> to vector<8x8xbf16>
    %cst_44 = arith.constant dense<0.000000e+00> : vector<8x8xf32>
    %151 = tpu.matmul %150, %137, %cst_44 {dimension_numbers = #tpu.dot_dimension_numbers<[1], [0], [0], [1], [0, 0, 1, 1], [], []>} : vector<8x8xbf16>, vector<8x8xbf16>, vector<8x8xf32> -> vector<8x8xf32>
    %152 = arith.truncf %151 : vector<8x8xf32> to vector<8x8xbf16>
    %153 = vector.extract_strided_slice %23 {offsets = [8, 0], sizes = [8, 32], strides = [1, 1]} : vector<32x32xbf16> to vector<8x32xbf16>
    %cst_45 = arith.constant dense<0.000000e+00> : vector<8x32xf32>
    %154 = tpu.matmul %152, %153, %cst_45 {dimension_numbers = #tpu.dot_dimension_numbers<[1], [0], [0], [1], [0, 0, 1, 1], [], []>} : vector<8x8xbf16>, vector<8x32xbf16>, vector<8x32xf32> -> vector<8x32xf32>
    %155 = arith.addf %134, %154 : vector<8x32xf32>
    %156 = vector.extract_strided_slice %16 {offsets = [8, 16], sizes = [8, 8], strides = [1, 1]} : vector<16x32xbf16> to vector<8x8xbf16>
    %157 = vector.extract_strided_slice %18 {offsets = [8, 16], sizes = [8, 8], strides = [1, 1]} : vector<16x32xbf16> to vector<8x8xbf16>
    %158 = vector.extract_strided_slice %20 {offsets = [8, 16], sizes = [8, 8], strides = [1, 1]} : vector<16x32xbf16> to vector<8x8xbf16>
    %cst_46 = arith.constant dense<0.000000e+00> : vector<8x8xf32>
    %159 = tpu.matmul %156, %157, %cst_46 {dimension_numbers = #tpu.dot_dimension_numbers<[1], [1], [0], [0], [0, 0, 1, 0], [], []>} : vector<8x8xbf16>, vector<8x8xbf16>, vector<8x8xf32> -> vector<8x8xf32>
    %160 = arith.addf %159, %114 : vector<8x8xf32>
    %cst_47 = arith.constant dense<0xFF800000> : vector<8xf32>
    %161 = vector.multi_reduction <maximumf>, %160, %cst_47 [1] : vector<8x8xf32> to vector<8xf32>
    %162 = vector.shape_cast %161 : vector<8xf32> to vector<8x1xf32>
    %163 = vector.broadcast %162 : vector<8x1xf32> to vector<8x8xf32>
    %164 = arith.subf %160, %163 : vector<8x8xf32>
    %165 = math.exp %164 : vector<8x8xf32>
    %cst_48 = arith.constant dense<0.000000e+00> : vector<8xf32>
    %166 = vector.multi_reduction <add>, %165, %cst_48 [1] : vector<8x8xf32> to vector<8xf32>
    %167 = vector.shape_cast %166 : vector<8xf32> to vector<8x1xf32>
    %168 = tpu.reciprocal %167 {approx = true} : vector<8x1xf32> -> vector<8x1xf32>
    %169 = vector.broadcast %168 : vector<8x1xf32> to vector<8x8xf32>
    %170 = arith.mulf %165, %169 : vector<8x8xf32>
    %171 = arith.truncf %170 : vector<8x8xf32> to vector<8x8xbf16>
    %cst_49 = arith.constant dense<0.000000e+00> : vector<8x8xf32>
    %172 = tpu.matmul %171, %158, %cst_49 {dimension_numbers = #tpu.dot_dimension_numbers<[1], [0], [0], [1], [0, 0, 1, 1], [], []>} : vector<8x8xbf16>, vector<8x8xbf16>, vector<8x8xf32> -> vector<8x8xf32>
    %173 = arith.truncf %172 : vector<8x8xf32> to vector<8x8xbf16>
    %174 = vector.extract_strided_slice %23 {offsets = [16, 0], sizes = [8, 32], strides = [1, 1]} : vector<32x32xbf16> to vector<8x32xbf16>
    %cst_50 = arith.constant dense<0.000000e+00> : vector<8x32xf32>
    %175 = tpu.matmul %173, %174, %cst_50 {dimension_numbers = #tpu.dot_dimension_numbers<[1], [0], [0], [1], [0, 0, 1, 1], [], []>} : vector<8x8xbf16>, vector<8x32xbf16>, vector<8x32xf32> -> vector<8x32xf32>
    %176 = arith.addf %155, %175 : vector<8x32xf32>
    %177 = vector.extract_strided_slice %16 {offsets = [8, 24], sizes = [8, 8], strides = [1, 1]} : vector<16x32xbf16> to vector<8x8xbf16>
    %178 = vector.extract_strided_slice %18 {offsets = [8, 24], sizes = [8, 8], strides = [1, 1]} : vector<16x32xbf16> to vector<8x8xbf16>
    %179 = vector.extract_strided_slice %20 {offsets = [8, 24], sizes = [8, 8], strides = [1, 1]} : vector<16x32xbf16> to vector<8x8xbf16>
    %cst_51 = arith.constant dense<0.000000e+00> : vector<8x8xf32>
    %180 = tpu.matmul %177, %178, %cst_51 {dimension_numbers = #tpu.dot_dimension_numbers<[1], [1], [0], [0], [0, 0, 1, 0], [], []>} : vector<8x8xbf16>, vector<8x8xbf16>, vector<8x8xf32> -> vector<8x8xf32>
    %181 = arith.addf %180, %114 : vector<8x8xf32>
    %cst_52 = arith.constant dense<0xFF800000> : vector<8xf32>
    %182 = vector.multi_reduction <maximumf>, %181, %cst_52 [1] : vector<8x8xf32> to vector<8xf32>
    %183 = vector.shape_cast %182 : vector<8xf32> to vector<8x1xf32>
    %184 = vector.broadcast %183 : vector<8x1xf32> to vector<8x8xf32>
    %185 = arith.subf %181, %184 : vector<8x8xf32>
    %186 = math.exp %185 : vector<8x8xf32>
    %cst_53 = arith.constant dense<0.000000e+00> : vector<8xf32>
    %187 = vector.multi_reduction <add>, %186, %cst_53 [1] : vector<8x8xf32> to vector<8xf32>
    %188 = vector.shape_cast %187 : vector<8xf32> to vector<8x1xf32>
    %189 = tpu.reciprocal %188 {approx = true} : vector<8x1xf32> -> vector<8x1xf32>
    %190 = vector.broadcast %189 : vector<8x1xf32> to vector<8x8xf32>
    %191 = arith.mulf %186, %190 : vector<8x8xf32>
    %192 = arith.truncf %191 : vector<8x8xf32> to vector<8x8xbf16>
    %cst_54 = arith.constant dense<0.000000e+00> : vector<8x8xf32>
    %193 = tpu.matmul %192, %179, %cst_54 {dimension_numbers = #tpu.dot_dimension_numbers<[1], [0], [0], [1], [0, 0, 1, 1], [], []>} : vector<8x8xbf16>, vector<8x8xbf16>, vector<8x8xf32> -> vector<8x8xf32>
    %194 = arith.truncf %193 : vector<8x8xf32> to vector<8x8xbf16>
    %195 = vector.extract_strided_slice %23 {offsets = [24, 0], sizes = [8, 32], strides = [1, 1]} : vector<32x32xbf16> to vector<8x32xbf16>
    %cst_55 = arith.constant dense<0.000000e+00> : vector<8x32xf32>
    %196 = tpu.matmul %194, %195, %cst_55 {dimension_numbers = #tpu.dot_dimension_numbers<[1], [0], [0], [1], [0, 0, 1, 1], [], []>} : vector<8x8xbf16>, vector<8x32xbf16>, vector<8x32xf32> -> vector<8x32xf32>
    %197 = arith.addf %176, %196 : vector<8x32xf32>
    %198 = tpu.concatenate %110, %197 in 0 : vector<8x32xf32>, vector<8x32xf32> -> vector<16x32xf32>
    %c0_56 = arith.constant 0 : index
    %c0_57 = arith.constant 0 : index
    %c0_58 = arith.constant 0 : index
    %199 = vector.load %arg9[%c0_56, %c0_57, %c0_58] : memref<1x1x32xf32, #tpu.memory_space<vmem>>, vector<1x1x32xf32>
    %200 = vector.shape_cast %199 : vector<1x1x32xf32> to vector<1x32xf32>
    %201 = vector.broadcast %200 : vector<1x32xf32> to vector<16x32xf32>
    %202 = arith.addf %198, %201 : vector<16x32xf32>
    %203 = arith.addf %202, %4 : vector<16x32xf32>
    %c0_59 = arith.constant 0 : index
    %c0_60 = arith.constant 0 : index
    %c0_61 = arith.constant 0 : index
    %204 = vector.load %arg10[%c0_59, %c0_60, %c0_61] : memref<1x1x32xf32, #tpu.memory_space<vmem>>, vector<1x1x32xf32>
    %205 = vector.shape_cast %204 : vector<1x1x32xf32> to vector<1x32xf32>
    %c0_62 = arith.constant 0 : index
    %c0_63 = arith.constant 0 : index
    %c0_64 = arith.constant 0 : index
    %206 = vector.load %arg11[%c0_62, %c0_63, %c0_64] : memref<1x1x32xf32, #tpu.memory_space<vmem>>, vector<1x1x32xf32>
    %207 = vector.shape_cast %206 : vector<1x1x32xf32> to vector<1x32xf32>
    %cst_65 = arith.constant dense<0.000000e+00> : vector<16xf32>
    %208 = vector.multi_reduction <add>, %203, %cst_65 [1] : vector<16x32xf32> to vector<16xf32>
    %209 = vector.shape_cast %208 : vector<16xf32> to vector<16x1xf32>
    %cst_66 = arith.constant 3.200000e+01 : f32
    %210 = vector.broadcast %cst_66 : f32 to vector<16x1xf32>
    %211 = arith.divf %209, %210 : vector<16x1xf32>
    %212 = vector.broadcast %211 : vector<16x1xf32> to vector<16x32xf32>
    %213 = arith.subf %203, %212 : vector<16x32xf32>
    %214 = arith.mulf %213, %213 : vector<16x32xf32>
    %cst_67 = arith.constant dense<0.000000e+00> : vector<16xf32>
    %215 = vector.multi_reduction <add>, %214, %cst_67 [1] : vector<16x32xf32> to vector<16xf32>
    %216 = vector.shape_cast %215 : vector<16xf32> to vector<16x1xf32>
    %cst_68 = arith.constant 3.200000e+01 : f32
    %217 = vector.broadcast %cst_68 : f32 to vector<16x1xf32>
    %218 = arith.divf %216, %217 : vector<16x1xf32>
    %219 = vector.broadcast %211 : vector<16x1xf32> to vector<16x32xf32>
    %220 = arith.subf %203, %219 : vector<16x32xf32>
    %cst_69 = arith.constant 9.99999996E-13 : f32
    %221 = vector.broadcast %cst_69 : f32 to vector<16x1xf32>
    %222 = arith.addf %218, %221 : vector<16x1xf32>
    %223 = math.rsqrt %222 : vector<16x1xf32>
    %224 = vector.broadcast %223 : vector<16x1xf32> to vector<16x32xf32>
    %225 = arith.mulf %220, %224 : vector<16x32xf32>
    %226 = vector.broadcast %205 : vector<1x32xf32> to vector<16x32xf32>
    %227 = arith.mulf %225, %226 : vector<16x32xf32>
    %228 = vector.broadcast %207 : vector<1x32xf32> to vector<16x32xf32>
    %229 = arith.addf %227, %228 : vector<16x32xf32>
    %230 = arith.truncf %229 : vector<16x32xf32> to vector<16x32xbf16>
    %c0_70 = arith.constant 0 : index
    %c0_71 = arith.constant 0 : index
    %c0_72 = arith.constant 0 : index
    %231 = vector.load %arg12[%c0_70, %c0_71, %c0_72] : memref<1x32x64xbf16, #tpu.memory_space<vmem>>, vector<1x32x64xbf16>
    %232 = vector.shape_cast %231 : vector<1x32x64xbf16> to vector<32x64xbf16>
    %cst_73 = arith.constant dense<0.000000e+00> : vector<16x64xf32>
    %233 = tpu.matmul %230, %232, %cst_73 {dimension_numbers = #tpu.dot_dimension_numbers<[1], [0], [0], [1], [0, 0, 1, 1], [], []>} : vector<16x32xbf16>, vector<32x64xbf16>, vector<16x64xf32> -> vector<16x64xf32>
    %c0_74 = arith.constant 0 : index
    %c0_75 = arith.constant 0 : index
    %c0_76 = arith.constant 0 : index
    %234 = vector.load %arg13[%c0_74, %c0_75, %c0_76] : memref<1x1x64xf32, #tpu.memory_space<vmem>>, vector<1x1x64xf32>
    %235 = vector.shape_cast %234 : vector<1x1x64xf32> to vector<1x64xf32>
    %236 = vector.broadcast %235 : vector<1x64xf32> to vector<16x64xf32>
    %237 = arith.addf %233, %236 : vector<16x64xf32>
    %238 = arith.mulf %237, %237 : vector<16x64xf32>
    %239 = arith.mulf %237, %238 : vector<16x64xf32>
    %cst_77 = arith.constant 4.471500e-02 : f32
    %240 = vector.broadcast %cst_77 : f32 to vector<16x64xf32>
    %241 = arith.mulf %240, %239 : vector<16x64xf32>
    %242 = arith.addf %237, %241 : vector<16x64xf32>
    %cst_78 = arith.constant 0.797884583 : f32
    %243 = vector.broadcast %cst_78 : f32 to vector<16x64xf32>
    %244 = arith.mulf %243, %242 : vector<16x64xf32>
    %245 = math.tanh %244 : vector<16x64xf32>
    %cst_79 = arith.constant 1.000000e+00 : f32
    %246 = vector.broadcast %cst_79 : f32 to vector<16x64xf32>
    %247 = arith.addf %246, %245 : vector<16x64xf32>
    %cst_80 = arith.constant 5.000000e-01 : f32
    %248 = vector.broadcast %cst_80 : f32 to vector<16x64xf32>
    %249 = arith.mulf %248, %247 : vector<16x64xf32>
    %250 = arith.mulf %237, %249 : vector<16x64xf32>
    %251 = arith.truncf %250 : vector<16x64xf32> to vector<16x64xbf16>
    %c0_81 = arith.constant 0 : index
    %c0_82 = arith.constant 0 : index
    %c0_83 = arith.constant 0 : index
    %252 = vector.load %arg14[%c0_81, %c0_82, %c0_83] : memref<1x64x32xbf16, #tpu.memory_space<vmem>>, vector<1x64x32xbf16>
    %253 = vector.shape_cast %252 : vector<1x64x32xbf16> to vector<64x32xbf16>
    %cst_84 = arith.constant dense<0.000000e+00> : vector<16x32xf32>
    %254 = tpu.matmul %251, %253, %cst_84 {dimension_numbers = #tpu.dot_dimension_numbers<[1], [0], [0], [1], [0, 0, 1, 1], [], []>} : vector<16x64xbf16>, vector<64x32xbf16>, vector<16x32xf32> -> vector<16x32xf32>
    %c0_85 = arith.constant 0 : index
    %c0_86 = arith.constant 0 : index
    %c0_87 = arith.constant 0 : index
    %255 = vector.load %arg15[%c0_85, %c0_86, %c0_87] : memref<1x1x32xf32, #tpu.memory_space<vmem>>, vector<1x1x32xf32>
    %256 = vector.shape_cast %255 : vector<1x1x32xf32> to vector<1x32xf32>
    %257 = vector.broadcast %256 : vector<1x32xf32> to vector<16x32xf32>
    %258 = arith.addf %254, %257 : vector<16x32xf32>
    %259 = arith.addf %258, %229 : vector<16x32xf32>
    %c0_88 = arith.constant 0 : index
    %c0_89 = arith.constant 0 : index
    %c0_90 = arith.constant 0 : index
    %260 = vector.load %arg16[%c0_88, %c0_89, %c0_90] : memref<1x1x32xf32, #tpu.memory_space<vmem>>, vector<1x1x32xf32>
    %261 = vector.shape_cast %260 : vector<1x1x32xf32> to vector<1x32xf32>
    %c0_91 = arith.constant 0 : index
    %c0_92 = arith.constant 0 : index
    %c0_93 = arith.constant 0 : index
    %262 = vector.load %arg17[%c0_91, %c0_92, %c0_93] : memref<1x1x32xf32, #tpu.memory_space<vmem>>, vector<1x1x32xf32>
    %263 = vector.shape_cast %262 : vector<1x1x32xf32> to vector<1x32xf32>
    %cst_94 = arith.constant dense<0.000000e+00> : vector<16xf32>
    %264 = vector.multi_reduction <add>, %259, %cst_94 [1] : vector<16x32xf32> to vector<16xf32>
    %265 = vector.shape_cast %264 : vector<16xf32> to vector<16x1xf32>
    %cst_95 = arith.constant 3.200000e+01 : f32
    %266 = vector.broadcast %cst_95 : f32 to vector<16x1xf32>
    %267 = arith.divf %265, %266 : vector<16x1xf32>
    %268 = vector.broadcast %267 : vector<16x1xf32> to vector<16x32xf32>
    %269 = arith.subf %259, %268 : vector<16x32xf32>
    %270 = arith.mulf %269, %269 : vector<16x32xf32>
    %cst_96 = arith.constant dense<0.000000e+00> : vector<16xf32>
    %271 = vector.multi_reduction <add>, %270, %cst_96 [1] : vector<16x32xf32> to vector<16xf32>
    %272 = vector.shape_cast %271 : vector<16xf32> to vector<16x1xf32>
    %cst_97 = arith.constant 3.200000e+01 : f32
    %273 = vector.broadcast %cst_97 : f32 to vector<16x1xf32>
    %274 = arith.divf %272, %273 : vector<16x1xf32>
    %275 = vector.broadcast %267 : vector<16x1xf32> to vector<16x32xf32>
    %276 = arith.subf %259, %275 : vector<16x32xf32>
    %cst_98 = arith.constant 9.99999996E-13 : f32
    %277 = vector.broadcast %cst_98 : f32 to vector<16x1xf32>
    %278 = arith.addf %274, %277 : vector<16x1xf32>
    %279 = math.rsqrt %278 : vector<16x1xf32>
    %280 = vector.broadcast %279 : vector<16x1xf32> to vector<16x32xf32>
    %281 = arith.mulf %276, %280 : vector<16x32xf32>
    %282 = vector.broadcast %261 : vector<1x32xf32> to vector<16x32xf32>
    %283 = arith.mulf %281, %282 : vector<16x32xf32>
    %284 = vector.broadcast %263 : vector<1x32xf32> to vector<16x32xf32>
    %285 = arith.addf %283, %284 : vector<16x32xf32>
    %286 = vector.shape_cast %285 : vector<16x32xf32> to vector<2x8x32xf32>
    %c0_99 = arith.constant 0 : index
    %c0_100 = arith.constant 0 : index
    %c0_101 = arith.constant 0 : index
    %287 = vector.load %arg19[%c0_99, %c0_100, %c0_101] : memref<2x8x32xf32, #tpu.memory_space<vmem>>, vector<2x8x32xf32>
    tpu.vector_store %arg19[%c0_99, %c0_100, %c0_101], %286 {strides = array<i32>} : memref<2x8x32xf32, #tpu.memory_space<vmem>>, vector<2x8x32xf32>,
    %c1_i32 = arith.constant 1 : i32
    %288 = arith.cmpi eq, %arg1, %c1_i32 : i32
    %289 = arith.extui %288 : i1 to i32
    %c0_i32_102 = arith.constant 0 : i32
    %290 = arith.cmpi ne, %289, %c0_i32_102 : i32
    scf.if %290 {
      %291 = vector.shape_cast %285 : vector<16x32xf32> to vector<2x8x32xf32>
      %292 = vector.extract_strided_slice %291 {offsets = [0, 0, 0], sizes = [2, 1, 32], strides = [1, 1, 1]} : vector<2x8x32xf32> to vector<2x1x32xf32>
      %293 = vector.shape_cast %292 : vector<2x1x32xf32> to vector<2x32xf32>
      %294 = vector.shape_cast %293 : vector<2x32xf32> to vector<2x1x32xf32>
      %c0_103 = arith.constant 0 : index
      %c0_104 = arith.constant 0 : index
      %c0_105 = arith.constant 0 : index
      %295 = vector.load %arg18[%c0_103, %c0_104, %c0_105] : memref<2x1x32xf32, #tpu.memory_space<vmem>>, vector<2x1x32xf32>
      tpu.vector_store %arg18[%c0_103, %c0_104, %c0_105], %294 {strides = array<i32>} : memref<2x1x32xf32, #tpu.memory_space<vmem>>, vector<2x1x32xf32>,
    } else {
    }
    return
  }
  func.func @transform_0(%arg0: i32, %arg1: i32) -> (i32, i32, i32) {
    %c0_i32 = arith.constant 0 : i32
    %c0_i32_0 = arith.constant 0 : i32
    %c0_i32_1 = arith.constant 0 : i32
    return %arg0, %c0_i32, %c0_i32_0 : i32, i32, i32
  }
  func.func @transform_1(%arg0: i32, %arg1: i32) -> (i32, i32, i32) {
    %c0_i32 = arith.constant 0 : i32
    %c0_i32_0 = arith.constant 0 : i32
    %c0_i32_1 = arith.constant 0 : i32
    return %arg0, %c0_i32, %c0_i32_0 : i32, i32, i32
  }
  func.func @transform_2(%arg0: i32, %arg1: i32) -> (i32, i32) {
    %c0_i32 = arith.constant 0 : i32
    %c0_i32_0 = arith.constant 0 : i32
    %c0_i32_1 = arith.constant 0 : i32
    return %c0_i32, %c0_i32_0 : i32, i32
  }
  func.func @transform_3(%arg0: i32, %arg1: i32) -> (i32, i32) {
    %c0_i32 = arith.constant 0 : i32
    %c0_i32_0 = arith.constant 0 : i32
    %c0_i32_1 = arith.constant 0 : i32
    return %c0_i32, %c0_i32_0 : i32, i32
  }
  func.func @transform_4(%arg0: i32, %arg1: i32) -> (i32, i32, i32) {
    %c0_i32 = arith.constant 0 : i32
    %c0_i32_0 = arith.constant 0 : i32
    %c0_i32_1 = arith.constant 0 : i32
    return %arg1, %c0_i32, %c0_i32_0 : i32, i32, i32
  }
  func.func @transform_5(%arg0: i32, %arg1: i32) -> (i32, i32, i32) {
    %c0_i32 = arith.constant 0 : i32
    %c0_i32_0 = arith.constant 0 : i32
    %c0_i32_1 = arith.constant 0 : i32
    return %arg1, %c0_i32, %c0_i32_0 : i32, i32, i32
  }
  func.func @transform_6(%arg0: i32, %arg1: i32) -> (i32, i32, i32) {
    %c0_i32 = arith.constant 0 : i32
    %c0_i32_0 = arith.constant 0 : i32
    %c0_i32_1 = arith.constant 0 : i32
    return %arg1, %c0_i32, %c0_i32_0 : i32, i32, i32
  }
  func.func @transform_7(%arg0: i32, %arg1: i32) -> (i32, i32, i32) {
    %c0_i32 = arith.constant 0 : i32
    %c0_i32_0 = arith.constant 0 : i32
    %c0_i32_1 = arith.constant 0 : i32
    return %arg1, %c0_i32, %c0_i32_0 : i32, i32, i32
  }
  func.func @transform_8(%arg0: i32, %arg1: i32) -> (i32, i32, i32) {
    %c0_i32 = arith.constant 0 : i32
    %c0_i32_0 = arith.constant 0 : i32
    %c0_i32_1 = arith.constant 0 : i32
    return %arg1, %c0_i32, %c0_i32_0 : i32, i32, i32
  }
  func.func @transform_9(%arg0: i32, %arg1: i32) -> (i32, i32, i32) {
    %c0_i32 = arith.constant 0 : i32
    %c0_i32_0 = arith.constant 0 : i32
    %c0_i32_1 = arith.constant 0 : i32
    return %arg1, %c0_i32, %c0_i32_0 : i32, i32, i32
  }
  func.func @transform_10(%arg0: i32, %arg1: i32) -> (i32, i32, i32) {
    %c0_i32 = arith.constant 0 : i32
    %c0_i32_0 = arith.constant 0 : i32
    %c0_i32_1 = arith.constant 0 : i32
    return %arg1, %c0_i32, %c0_i32_0 : i32, i32, i32
  }
  func.func @transform_11(%arg0: i32, %arg1: i32) -> (i32, i32, i32) {
    %c0_i32 = arith.constant 0 : i32
    %c0_i32_0 = arith.constant 0 : i32
    %c0_i32_1 = arith.constant 0 : i32
    return %arg1, %c0_i32, %c0_i32_0 : i32, i32, i32
  }
  func.func @transform_12(%arg0: i32, %arg1: i32) -> (i32, i32, i32) {
    %c0_i32 = arith.constant 0 : i32
    %c0_i32_0 = arith.constant 0 : i32
    %c0_i32_1 = arith.constant 0 : i32
    return %arg1, %c0_i32, %c0_i32_0 : i32, i32, i32
  }
  func.func @transform_13(%arg0: i32, %arg1: i32) -> (i32, i32, i32) {
    %c0_i32 = arith.constant 0 : i32
    %c0_i32_0 = arith.constant 0 : i32
    %c0_i32_1 = arith.constant 0 : i32
    return %arg1, %c0_i32, %c0_i32_0 : i32, i32, i32
  }
  func.func @transform_14(%arg0: i32, %arg1: i32) -> (i32, i32, i32) {
    %c0_i32 = arith.constant 0 : i32
    %c0_i32_0 = arith.constant 0 : i32
    %c0_i32_1 = arith.constant 0 : i32
    return %arg1, %c0_i32, %c0_i32_0 : i32, i32, i32
  }
  func.func @transform_15(%arg0: i32, %arg1: i32) -> (i32, i32, i32) {
    %c0_i32 = arith.constant 0 : i32
    %c0_i32_0 = arith.constant 0 : i32
    %c0_i32_1 = arith.constant 0 : i32
    return %arg1, %c0_i32, %c0_i32_0 : i32, i32, i32
  }
  func.func @transform_16(%arg0: i32, %arg1: i32) -> (i32, i32, i32) {
    %c0_i32 = arith.constant 0 : i32
    %c0_i32_0 = arith.constant 0 : i32
    %c0_i32_1 = arith.constant 0 : i32
    return %arg0, %c0_i32, %c0_i32_0 : i32, i32, i32
  }
}

</mosaic_0001>

<llo_original>
// kernel: simcse_forward.1
$region0: #{simcse_forward.1}
  #allocation0 [shape = 'u32[]', space=smem, size = 0x4, offset = 0x4, fixed_abs, tag = 'smem constant byte address 0x4 - core index']
  #allocation1 [shape = 'u32[144,128]{1,0:T(1,128)}', space=vmem, size = 0x12000, scoped, tag = 'internal scratch']
  #allocation2 [shape = 'f32[2,8,32]{2,1,0:T(8,128)}', space=vmem, size = 0x2000, scoped, tag = 'scratch operand']
  #allocation3 [shape = 'f32[2,32]{1,0:T(2,128)}', space=vmem, size = 0x400, scoped, tag = 'scratch operand']
  %s0 = inlined_call_operand.vmem [shape: bf16[2,8,32], index: 0, kind: input, shape index: {}]
  %s1 = inlined_call_operand.vmem [shape: f32[2,1,8], index: 1, kind: input, shape index: {}]
  %s2 = inlined_call_operand.vmem [shape: f32[1,32], index: 2, kind: input, shape index: {}]
  %s3 = inlined_call_operand.vmem [shape: f32[1,32], index: 3, kind: input, shape index: {}]
  %s4 = inlined_call_operand.vmem [shape: bf16[2,32,96], index: 4, kind: input, shape index: {}]
  %s5 = inlined_call_operand.vmem [shape: f32[2,1,96], index: 5, kind: input, shape index: {}]
  %s6 = inlined_call_operand.vmem [shape: bf16[2,32,32], index: 6, kind: input, shape index: {}]
  %s7 = inlined_call_operand.vmem [shape: f32[2,1,32], index: 7, kind: input, shape index: {}]
  %s8 = inlined_call_operand.vmem [shape: f32[2,1,32], index: 8, kind: input, shape index: {}]
  %s9 = inlined_call_operand.vmem [shape: f32[2,1,32], index: 9, kind: input, shape index: {}]
  %s10 = inlined_call_operand.vmem [shape: bf16[2,32,64], index: 10, kind: input, shape index: {}]
  %s11 = inlined_call_operand.vmem [shape: f32[2,1,64], index: 11, kind: input, shape index: {}]
  %s12 = inlined_call_operand.vmem [shape: bf16[2,64,32], index: 12, kind: input, shape index: {}]
  %s13 = inlined_call_operand.vmem [shape: f32[2,1,32], index: 13, kind: input, shape index: {}]
  %s14 = inlined_call_operand.vmem [shape: f32[2,1,32], index: 14, kind: input, shape index: {}]
  %s15 = inlined_call_operand.vmem [shape: f32[2,1,32], index: 15, kind: input, shape index: {}]
  %s16 = inlined_call_operand.hbm [shape: f32[2,1,32], index: 16, kind: output, shape index: {}]
  %s17 = sld [smem:[#allocation0]]
  $region105: #{simcse_forward.1} parent=0
    _
  %s19 = ssub.s32 1, %s17
  %s20 = scalar_select 0, %s19, %s17
  $region1: #{simcse_forward.1} parent=0
    #allocation4 [shape = 'u8[1024]{0}', space=vmem, size = 0x400, scoped, tag = 'output window, operand 0, single buffered']
    #allocation5 [shape = 's32[2]{0}', space=sflag, size = 0x8, scoped, tag = 'scoped memory for simcse_forward.1']
    %21 = vsyncpa [#allocation5], 0
    loop: start=0, step=1, limit=4
    $region2: #{simcse_forward.1} parent=1 // loop_pre_header
      _
    $region3: #{simcse_forward.1} parent=1 // loop_header
      %s23 = sphi 0, %s27
      %p24 = scmp.ge.s32.totalorder %s23, 4
      %s30 = sphi 0, %s42
      %s31 = sphi 0, %s38
      %s32 = sphi 0, %s30
      %s33 = sphi 0, %s31
      %s34 = sphi 0, %s32
      %s35 = sphi 0, %s33
      %s45 = sphi 0, %s47
      %s48 = sphi 0, %s45
      %s49 = sphi 0, %s48
      %s65 = sphi 0, %s49
      %s71 = sphi 0, %s73
      %s74 = sphi 0, %s71
      %s75 = sphi 0, %s74
      %s91 = sphi 0, %s75
      %s95 = sphi 0, %s95
      %s97 = sphi 0, %s95
      %s98 = sphi 0, %s97
      %s112 = sphi 0, %s98
      %s116 = sphi 0, %s116
      %s118 = sphi 0, %s116
      %s119 = sphi 0, %s118
      %s133 = sphi 0, %s119
      %s139 = sphi 0, %s141
      %s142 = sphi 0, %s139
      %s143 = sphi 0, %s142
      %s159 = sphi 0, %s143
      %s165 = sphi 0, %s167
      %s168 = sphi 0, %s165
      %s169 = sphi 0, %s168
      %s185 = sphi 0, %s169
      %s191 = sphi 0, %s193
      %s194 = sphi 0, %s191
      %s195 = sphi 0, %s194
      %s211 = sphi 0, %s195
      %s217 = sphi 0, %s219
      %s220 = sphi 0, %s217
      %s221 = sphi 0, %s220
      %s237 = sphi 0, %s221
      %s243 = sphi 0, %s245
      %s246 = sphi 0, %s243
      %s247 = sphi 0, %s246
      %s263 = sphi 0, %s247
      %s269 = sphi 0, %s271
      %s272 = sphi 0, %s269
      %s273 = sphi 0, %s272
      %s289 = sphi 0, %s273
      %s295 = sphi 0, %s297
      %s298 = sphi 0, %s295
      %s299 = sphi 0, %s298
      %s315 = sphi 0, %s299
      %s321 = sphi 0, %s323
      %s324 = sphi 0, %s321
      %s325 = sphi 0, %s324
      %s341 = sphi 0, %s325
      %s347 = sphi 0, %s349
      %s350 = sphi 0, %s347
      %s351 = sphi 0, %s350
      %s367 = sphi 0, %s351
      %s373 = sphi 0, %s375
      %s376 = sphi 0, %s373
      %s377 = sphi 0, %s376
      %s393 = sphi 0, %s377
      %s399 = sphi 0, %s401
      %s402 = sphi 0, %s399
      %s403 = sphi 0, %s402
      %s419 = sphi 0, %s403
      %s425 = sphi 0, %s427
      %s428 = sphi 0, %s425
      %s429 = sphi 0, %s428
      %s445 = sphi 0, %s429
      %s451 = sphi 0, %s453
      %s454 = sphi 0, %s451
      %s455 = sphi 0, %s454
      %s471 = sphi 0, %s455
    $region4: #{simcse_forward.1} parent=1 // loop_header_branch
      %26 = sbr.rel (%p24) target = $region8
    $region5: #{simcse_forward.1} parent=1 // loop_body
      %s28 = ssub.s32 %s23, 1
      %s29 = ssub.s32 %s23, 2
      %s36 = sadd.s32 1, %s31
      %p37 = scmp.ge.s32.totalorder %s36, 2
      %s38 = scalar_select %p37, 0, %s36
      %s39 = sadd.s32 1, %s30
      %s40 = scalar_select %p37, %s39, %s30
      %p41 = scmp.ge.s32.totalorder %s40, 1
      %s42 = scalar_select %p41, 0, %s40
      %s43 = ssub.s32 %s30, %s42
      %p44 = scmp.eq.s32.totalorder %s43, 0
      %s46 = sadd.s32 %s45, 1
      %s47 = scalar_select %p44, %s45, %s46
      %p50 = pneg %p44
      %p51 = scmp.eq.s32.totalorder %s23, 1
      %p52 = por %p50, %p51
      %p53 = scmp.ne.s32.totalorder %s45, %s48
      %p54 = scmp.eq.s32.totalorder %s23, 0
      %p55 = por %p53, %p54
      %p56 = scmp.ne.s32.totalorder %s45, %s48
      %p57 = scmp.eq.s32.totalorder %s28, 1
      %p58 = por %p56, %p57
      %p59 = scmp.ne.s32.totalorder %s48, %s49
      %p60 = scmp.eq.s32.totalorder %s28, 0
      %p61 = por %p59, %p60
      %p62 = scmp.ne.s32.totalorder %s48, %s49
      %p63 = scmp.eq.s32.totalorder %s29, 1
      %p64 = por %p62, %p63
      %p66 = scmp.ne.s32.totalorder %s49, %s65
      %p67 = scmp.eq.s32.totalorder %s29, 0
      %p68 = por %p66, %p67
      %s69 = ssub.s32 %s30, %s42
      %p70 = scmp.eq.s32.totalorder %s69, 0
      %s72 = sadd.s32 %s71, 1
      %s73 = scalar_select %p70, %s71, %s72
      %p76 = pneg %p70
      %p77 = scmp.eq.s32.totalorder %s23, 1
      %p78 = por %p76, %p77
      %p79 = scmp.ne.s32.totalorder %s71, %s74
      %p80 = scmp.eq.s32.totalorder %s23, 0
      %p81 = por %p79, %p80
      %p82 = scmp.ne.s32.totalorder %s71, %s74
      %p83 = scmp.eq.s32.totalorder %s28, 1
      %p84 = por %p82, %p83
      %p85 = scmp.ne.s32.totalorder %s74, %s75
      %p86 = scmp.eq.s32.totalorder %s28, 0
      %p87 = por %p85, %p86
      %p88 = scmp.ne.s32.totalorder %s74, %s75
      %p89 = scmp.eq.s32.totalorder %s29, 1
      %p90 = por %p88, %p89
      %p92 = scmp.ne.s32.totalorder %s75, %s91
      %p93 = scmp.eq.s32.totalorder %s29, 0
      %p94 = por %p92, %p93
      %s96 = sadd.s32 %s95, 1
      %p99 = scmp.eq.s32.totalorder %s23, 1
      %p100 = scmp.ne.s32.totalorder %s95, %s97
      %p101 = scmp.eq.s32.totalorder %s23, 0
      %p102 = por %p100, %p101
      %p103 = scmp.ne.s32.totalorder %s95, %s97
      %p104 = scmp.eq.s32.totalorder %s28, 1
      %p105 = por %p103, %p104
      %p106 = scmp.ne.s32.totalorder %s97, %s98
      %p107 = scmp.eq.s32.totalorder %s28, 0
      %p108 = por %p106, %p107
      %p109 = scmp.ne.s32.totalorder %s97, %s98
      %p110 = scmp.eq.s32.totalorder %s29, 1
      %p111 = por %p109, %p110
      %p113 = scmp.ne.s32.totalorder %s98, %s112
      %p114 = scmp.eq.s32.totalorder %s29, 0
      %p115 = por %p113, %p114
      %s117 = sadd.s32 %s116, 1
      %p120 = scmp.eq.s32.totalorder %s23, 1
      %p121 = scmp.ne.s32.totalorder %s116, %s118
      %p122 = scmp.eq.s32.totalorder %s23, 0
      %p123 = por %p121, %p122
      %p124 = scmp.ne.s32.totalorder %s116, %s118
      %p125 = scmp.eq.s32.totalorder %s28, 1
      %p126 = por %p124, %p125
      %p127 = scmp.ne.s32.totalorder %s118, %s119
      %p128 = scmp.eq.s32.totalorder %s28, 0
      %p129 = por %p127, %p128
      %p130 = scmp.ne.s32.totalorder %s118, %s119
      %p131 = scmp.eq.s32.totalorder %s29, 1
      %p132 = por %p130, %p131
      %p134 = scmp.ne.s32.totalorder %s119, %s133
      %p135 = scmp.eq.s32.totalorder %s29, 0
      %p136 = por %p134, %p135
      %s137 = ssub.s32 %s31, %s38
      %p138 = scmp.eq.s32.totalorder %s137, 0
      %s140 = sadd.s32 %s139, 1
      %s141 = scalar_select %p138, %s139, %s140
      %p144 = pneg %p138
      %p145 = scmp.eq.s32.totalorder %s23, 1
      %p146 = por %p144, %p145
      %p147 = scmp.ne.s32.totalorder %s139, %s142
      %p148 = scmp.eq.s32.totalorder %s23, 0
      %p149 = por %p147, %p148
      %p150 = scmp.ne.s32.totalorder %s139, %s142
      %p151 = scmp.eq.s32.totalorder %s28, 1
      %p152 = por %p150, %p151
      %p153 = scmp.ne.s32.totalorder %s142, %s143
      %p154 = scmp.eq.s32.totalorder %s28, 0
      %p155 = por %p153, %p154
      %p156 = scmp.ne.s32.totalorder %s142, %s143
      %p157 = scmp.eq.s32.totalorder %s29, 1
      %p158 = por %p156, %p157
      %p160 = scmp.ne.s32.totalorder %s143, %s159
      %p161 = scmp.eq.s32.totalorder %s29, 0
      %p162 = por %p160, %p161
      %s163 = ssub.s32 %s31, %s38
      %p164 = scmp.eq.s32.totalorder %s163, 0
      %s166 = sadd.s32 %s165, 1
      %s167 = scalar_select %p164, %s165, %s166
      %p170 = pneg %p164
      %p171 = scmp.eq.s32.totalorder %s23, 1
      %p172 = por %p170, %p171
      %p173 = scmp.ne.s32.totalorder %s165, %s168
      %p174 = scmp.eq.s32.totalorder %s23, 0
      %p175 = por %p173, %p174
      %p176 = scmp.ne.s32.totalorder %s165, %s168
      %p177 = scmp.eq.s32.totalorder %s28, 1
      %p178 = por %p176, %p177
      %p179 = scmp.ne.s32.totalorder %s168, %s169
      %p180 = scmp.eq.s32.totalorder %s28, 0
      %p181 = por %p179, %p180
      %p182 = scmp.ne.s32.totalorder %s168, %s169
      %p183 = scmp.eq.s32.totalorder %s29, 1
      %p184 = por %p182, %p183
      %p186 = scmp.ne.s32.totalorder %s169, %s185
      %p187 = scmp.eq.s32.totalorder %s29, 0
      %p188 = por %p186, %p187
      %s189 = ssub.s32 %s31, %s38
      %p190 = scmp.eq.s32.totalorder %s189, 0
      %s192 = sadd.s32 %s191, 1
      %s193 = scalar_select %p190, %s191, %s192
      %p196 = pneg %p190
      %p197 = scmp.eq.s32.totalorder %s23, 1
      %p198 = por %p196, %p197
      %p199 = scmp.ne.s32.totalorder %s191, %s194
      %p200 = scmp.eq.s32.totalorder %s23, 0
      %p201 = por %p199, %p200
      %p202 = scmp.ne.s32.totalorder %s191, %s194
      %p203 = scmp.eq.s32.totalorder %s28, 1
      %p204 = por %p202, %p203
      %p205 = scmp.ne.s32.totalorder %s194, %s195
      %p206 = scmp.eq.s32.totalorder %s28, 0
      %p207 = por %p205, %p206
      %p208 = scmp.ne.s32.totalorder %s194, %s195
      %p209 = scmp.eq.s32.totalorder %s29, 1
      %p210 = por %p208, %p209
      %p212 = scmp.ne.s32.totalorder %s195, %s211
      %p213 = scmp.eq.s32.totalorder %s29, 0
      %p214 = por %p212, %p213
      %s215 = ssub.s32 %s31, %s38
      %p216 = scmp.eq.s32.totalorder %s215, 0
      %s218 = sadd.s32 %s217, 1
      %s219 = scalar_select %p216, %s217, %s218
      %p222 = pneg %p216
      %p223 = scmp.eq.s32.totalorder %s23, 1
      %p224 = por %p222, %p223
      %p225 = scmp.ne.s32.totalorder %s217, %s220
      %p226 = scmp.eq.s32.totalorder %s23, 0
      %p227 = por %p225, %p226
      %p228 = scmp.ne.s32.totalorder %s217, %s220
      %p229 = scmp.eq.s32.totalorder %s28, 1
      %p230 = por %p228, %p229
      %p231 = scmp.ne.s32.totalorder %s220, %s221
      %p232 = scmp.eq.s32.totalorder %s28, 0
      %p233 = por %p231, %p232
      %p234 = scmp.ne.s32.totalorder %s220, %s221
      %p235 = scmp.eq.s32.totalorder %s29, 1
      %p236 = por %p234, %p235
      %p238 = scmp.ne.s32.totalorder %s221, %s237
      %p239 = scmp.eq.s32.totalorder %s29, 0
      %p240 = por %p238, %p239
      %s241 = ssub.s32 %s31, %s38
      %p242 = scmp.eq.s32.totalorder %s241, 0
      %s244 = sadd.s32 %s243, 1
      %s245 = scalar_select %p242, %s243, %s244
      %p248 = pneg %p242
      %p249 = scmp.eq.s32.totalorder %s23, 1
      %p250 = por %p248, %p249
      %p251 = scmp.ne.s32.totalorder %s243, %s246
      %p252 = scmp.eq.s32.totalorder %s23, 0
      %p253 = por %p251, %p252
      %p254 = scmp.ne.s32.totalorder %s243, %s246
      %p255 = scmp.eq.s32.totalorder %s28, 1
      %p256 = por %p254, %p255
      %p257 = scmp.ne.s32.totalorder %s246, %s247
      %p258 = scmp.eq.s32.totalorder %s28, 0
      %p259 = por %p257, %p258
      %p260 = scmp.ne.s32.totalorder %s246, %s247
      %p261 = scmp.eq.s32.totalorder %s29, 1
      %p262 = por %p260, %p261
      %p264 = scmp.ne.s32.totalorder %s247, %s263
      %p265 = scmp.eq.s32.totalorder %s29, 0
      %p266 = por %p264, %p265
      %s267 = ssub.s32 %s31, %s38
      %p268 = scmp.eq.s32.totalorder %s267, 0
      %s270 = sadd.s32 %s269, 1
      %s271 = scalar_select %p268, %s269, %s270
      %p274 = pneg %p268
      %p275 = scmp.eq.s32.totalorder %s23, 1
      %p276 = por %p274, %p275
      %p277 = scmp.ne.s32.totalorder %s269, %s272
      %p278 = scmp.eq.s32.totalorder %s23, 0
      %p279 = por %p277, %p278
      %p280 = scmp.ne.s32.totalorder %s269, %s272
      %p281 = scmp.eq.s32.totalorder %s28, 1
      %p282 = por %p280, %p281
      %p283 = scmp.ne.s32.totalorder %s272, %s273
      %p284 = scmp.eq.s32.totalorder %s28, 0
      %p285 = por %p283, %p284
      %p286 = scmp.ne.s32.totalorder %s272, %s273
      %p287 = scmp.eq.s32.totalorder %s29, 1
      %p288 = por %p286, %p287
      %p290 = scmp.ne.s32.totalorder %s273, %s289
      %p291 = scmp.eq.s32.totalorder %s29, 0
      %p292 = por %p290, %p291
      %s293 = ssub.s32 %s31, %s38
      %p294 = scmp.eq.s32.totalorder %s293, 0
      %s296 = sadd.s32 %s295, 1
      %s297 = scalar_select %p294, %s295, %s296
      %p300 = pneg %p294
      %p301 = scmp.eq.s32.totalorder %s23, 1
      %p302 = por %p300, %p301
      %p303 = scmp.ne.s32.totalorder %s295, %s298
      %p304 = scmp.eq.s32.totalorder %s23, 0
      %p305 = por %p303, %p304
      %p306 = scmp.ne.s32.totalorder %s295, %s298
      %p307 = scmp.eq.s32.totalorder %s28, 1
      %p308 = por %p306, %p307
      %p309 = scmp.ne.s32.totalorder %s298, %s299
      %p310 = scmp.eq.s32.totalorder %s28, 0
      %p311 = por %p309, %p310
      %p312 = scmp.ne.s32.totalorder %s298, %s299
      %p313 = scmp.eq.s32.totalorder %s29, 1
      %p314 = por %p312, %p313
      %p316 = scmp.ne.s32.totalorder %s299, %s315
      %p317 = scmp.eq.s32.totalorder %s29, 0
      %p318 = por %p316, %p317
      %s319 = ssub.s32 %s31, %s38
      %p320 = scmp.eq.s32.totalorder %s319, 0
      %s322 = sadd.s32 %s321, 1
      %s323 = scalar_select %p320, %s321, %s322
      %p326 = pneg %p320
      %p327 = scmp.eq.s32.totalorder %s23, 1
      %p328 = por %p326, %p327
      %p329 = scmp.ne.s32.totalorder %s321, %s324
      %p330 = scmp.eq.s32.totalorder %s23, 0
      %p331 = por %p329, %p330
      %p332 = scmp.ne.s32.totalorder %s321, %s324
      %p333 = scmp.eq.s32.totalorder %s28, 1
      %p334 = por %p332, %p333
      %p335 = scmp.ne.s32.totalorder %s324, %s325
      %p336 = scmp.eq.s32.totalorder %s28, 0
      %p337 = por %p335, %p336
      %p338 = scmp.ne.s32.totalorder %s324, %s325
      %p339 = scmp.eq.s32.totalorder %s29, 1
      %p340 = por %p338, %p339
      %p342 = scmp.ne.s32.totalorder %s325, %s341
      %p343 = scmp.eq.s32.totalorder %s29, 0
      %p344 = por %p342, %p343
      %s345 = ssub.s32 %s31, %s38
      %p346 = scmp.eq.s32.totalorder %s345, 0
      %s348 = sadd.s32 %s347, 1
      %s349 = scalar_select %p346, %s347, %s348
      %p352 = pneg %p346
      %p353 = scmp.eq.s32.totalorder %s23, 1
      %p354 = por %p352, %p353
      %p355 = scmp.ne.s32.totalorder %s347, %s350
      %p356 = scmp.eq.s32.totalorder %s23, 0
      %p357 = por %p355, %p356
      %p358 = scmp.ne.s32.totalorder %s347, %s350
      %p359 = scmp.eq.s32.totalorder %s28, 1
      %p360 = por %p358, %p359
      %p361 = scmp.ne.s32.totalorder %s350, %s351
      %p362 = scmp.eq.s32.totalorder %s28, 0
      %p363 = por %p361, %p362
      %p364 = scmp.ne.s32.totalorder %s350, %s351
      %p365 = scmp.eq.s32.totalorder %s29, 1
      %p366 = por %p364, %p365
      %p368 = scmp.ne.s32.totalorder %s351, %s367
      %p369 = scmp.eq.s32.totalorder %s29, 0
      %p370 = por %p368, %p369
      %s371 = ssub.s32 %s31, %s38
      %p372 = scmp.eq.s32.totalorder %s371, 0
      %s374 = sadd.s32 %s373, 1
      %s375 = scalar_select %p372, %s373, %s374
      %p378 = pneg %p372
      %p379 = scmp.eq.s32.totalorder %s23, 1
      %p380 = por %p378, %p379
      %p381 = scmp.ne.s32.totalorder %s373, %s376
      %p382 = scmp.eq.s32.totalorder %s23, 0
      %p383 = por %p381, %p382
      %p384 = scmp.ne.s32.totalorder %s373, %s376
      %p385 = scmp.eq.s32.totalorder %s28, 1
      %p386 = por %p384, %p385
      %p387 = scmp.ne.s32.totalorder %s376, %s377
      %p388 = scmp.eq.s32.totalorder %s28, 0
      %p389 = por %p387, %p388
      %p390 = scmp.ne.s32.totalorder %s376, %s377
      %p391 = scmp.eq.s32.totalorder %s29, 1
      %p392 = por %p390, %p391
      %p394 = scmp.ne.s32.totalorder %s377, %s393
      %p395 = scmp.eq.s32.totalorder %s29, 0
      %p396 = por %p394, %p395
      %s397 = ssub.s32 %s31, %s38
      %p398 = scmp.eq.s32.totalorder %s397, 0
      %s400 = sadd.s32 %s399, 1
      %s401 = scalar_select %p398, %s399, %s400
      %p404 = pneg %p398
      %p405 = scmp.eq.s32.totalorder %s23, 1
      %p406 = por %p404, %p405
      %p407 = scmp.ne.s32.totalorder %s399, %s402
      %p408 = scmp.eq.s32.totalorder %s23, 0
      %p409 = por %p407, %p408
      %p410 = scmp.ne.s32.totalorder %s399, %s402
      %p411 = scmp.eq.s32.totalorder %s28, 1
      %p412 = por %p410, %p411
      %p413 = scmp.ne.s32.totalorder %s402, %s403
      %p414 = scmp.eq.s32.totalorder %s28, 0
      %p415 = por %p413, %p414
      %p416 = scmp.ne.s32.totalorder %s402, %s403
      %p417 = scmp.eq.s32.totalorder %s29, 1
      %p418 = por %p416, %p417
      %p420 = scmp.ne.s32.totalorder %s403, %s419
      %p421 = scmp.eq.s32.totalorder %s29, 0
      %p422 = por %p420, %p421
      %s423 = ssub.s32 %s31, %s38
      %p424 = scmp.eq.s32.totalorder %s423, 0
      %s426 = sadd.s32 %s425, 1
      %s427 = scalar_select %p424, %s425, %s426
      %p430 = pneg %p424
      %p431 = scmp.eq.s32.totalorder %s23, 1
      %p432 = por %p430, %p431
      %p433 = scmp.ne.s32.totalorder %s425, %s428
      %p434 = scmp.eq.s32.totalorder %s23, 0
      %p435 = por %p433, %p434
      %p436 = scmp.ne.s32.totalorder %s425, %s428
      %p437 = scmp.eq.s32.totalorder %s28, 1
      %p438 = por %p436, %p437
      %p439 = scmp.ne.s32.totalorder %s428, %s429
      %p440 = scmp.eq.s32.totalorder %s28, 0
      %p441 = por %p439, %p440
      %p442 = scmp.ne.s32.totalorder %s428, %s429
      %p443 = scmp.eq.s32.totalorder %s29, 1
      %p444 = por %p442, %p443
      %p446 = scmp.ne.s32.totalorder %s429, %s445
      %p447 = scmp.eq.s32.totalorder %s29, 0
      %p448 = por %p446, %p447
      %s449 = ssub.s32 %s30, %s42
      %p450 = scmp.eq.s32.totalorder %s449, 0
      %s452 = sadd.s32 %s451, 1
      %s453 = scalar_select %p450, %s451, %s452
      %p456 = pneg %p450
      %p457 = scmp.eq.s32.totalorder %s23, 1
      %p458 = por %p456, %p457
      %p459 = scmp.ne.s32.totalorder %s451, %s454
      %p460 = scmp.eq.s32.totalorder %s23, 0
      %p461 = por %p459, %p460
      %p462 = scmp.ne.s32.totalorder %s451, %s454
      %p463 = scmp.eq.s32.totalorder %s28, 1
      %p464 = por %p462, %p463
      %p465 = scmp.ne.s32.totalorder %s454, %s455
      %p466 = scmp.eq.s32.totalorder %s28, 0
      %p467 = por %p465, %p466
      %p468 = scmp.ne.s32.totalorder %s454, %s455
      %p469 = scmp.eq.s32.totalorder %s29, 1
      %p470 = por %p468, %p469
      %p472 = scmp.ne.s32.totalorder %s455, %s471
      %p473 = scmp.eq.s32.totalorder %s29, 0
      %p474 = por %p472, %p473
      %p475 = scmp.le.s32.totalorder 1, %s23
      %p476 = scmp.lt.s32.totalorder %s23, 3
      %p477 = pnand %p475, %p476
      %p478 = pneg %p477
      // Predicated region
      $region9: #{simcse_forward.1} parent=5 // pred_check
        _
      $region10: #{simcse_forward.1} parent=5 // pred_check_branch
        %480 = sbr.rel (%p477) target = $region12
      $region11: #{simcse_forward.1} parent=5 // pred_region
        %s481 = ssub.s32 %s23, 1
        // Predicated region
        $region13: #{simcse_forward.1} parent=11 // pred_check
          %p482 = pneg %p61
        $region14: #{simcse_forward.1} parent=11 // pred_check_branch
          %484 = sbr.rel (%p482) target = $region16
        $region15: #{simcse_forward.1} parent=11 // pred_region
          %s485 = smul.u32 2, %s32
          %p486 = scmp.lt.s32.totalorder %s485, 1
          %s487 = scalar_select %p486, %s485, 1
          %s488 = smul.addr %s487, 4
          %s489 = scalar_lea.vmem %s0, %s488
          %s490 = smul.u32 2, %s32
        $region16: #{simcse_forward.1} parent=11 // pred_fallthru
          _
        // Predicated region
        $region17: #{simcse_forward.1} parent=11 // pred_check
          %p491 = pneg %p87
        $region18: #{simcse_forward.1} parent=11 // pred_check_branch
          %493 = sbr.rel (%p491) target = $region20
        $region19: #{simcse_forward.1} parent=11 // pred_region
          %s494 = smul.u32 2, %s32
          %p495 = scmp.lt.s32.totalorder %s494, 1
          %s496 = scalar_select %p495, %s494, 1
          %s497 = scalar_lea.vmem %s1, %s496
          %s498 = smul.u32 2, %s32
        $region20: #{simcse_forward.1} parent=11 // pred_fallthru
          _
        // Predicated region
        $region21: #{simcse_forward.1} parent=11 // pred_check
          %p499 = pneg %p108
        $region22: #{simcse_forward.1} parent=11 // pred_check_branch
          %501 = sbr.rel (%p499) target = $region24
        $region23: #{simcse_forward.1} parent=11 // pred_region
          _
        $region24: #{simcse_forward.1} parent=11 // pred_fallthru
          _
        // Predicated region
        $region25: #{simcse_forward.1} parent=11 // pred_check
          %p502 = pneg %p129
        $region26: #{simcse_forward.1} parent=11 // pred_check_branch
          %504 = sbr.rel (%p502) target = $region28
        $region27: #{simcse_forward.1} parent=11 // pred_region
          _
        $region28: #{simcse_forward.1} parent=11 // pred_fallthru
          _
      $region12: #{simcse_forward.1} parent=5 // pred_fallthru
        _
      %p505 = scmp.lt.s32.totalorder %s23, 2
      // Predicated region
      $region29: #{simcse_forward.1} parent=5 // pred_check
        %p506 = pneg %p505
      $region30: #{simcse_forward.1} parent=5 // pred_check_branch
        %508 = sbr.rel (%p506) target = $region32
      $region31: #{simcse_forward.1} parent=5 // pred_region
        // Predicated region
        $region33: #{simcse_forward.1} parent=31 // pred_check
          %p509 = pneg %p149
        $region34: #{simcse_forward.1} parent=31 // pred_check_branch
          %511 = sbr.rel (%p509) target = $region36
        $region35: #{simcse_forward.1} parent=31 // pred_region
          %p512 = scmp.lt.s32.totalorder %s31, 1
          %s513 = scalar_select %p512, %s31, 1
          %s514 = smul.addr %s513, 4
          %s515 = smul.addr %s514, 4
          %s516 = scalar_lea.vmem %s4, %s515
        $region36: #{simcse_forward.1} parent=31 // pred_fallthru
          _
        // Predicated region
        $region37: #{simcse_forward.1} parent=31 // pred_check
          %p517 = pneg %p175
        $region38: #{simcse_forward.1} parent=31 // pred_check_branch
          %519 = sbr.rel (%p517) target = $region40
        $region39: #{simcse_forward.1} parent=31 // pred_region
          %p520 = scmp.lt.s32.totalorder %s31, 1
          %s521 = scalar_select %p520, %s31, 1
          %s522 = scalar_lea.vmem %s5, %s521
        $region40: #{simcse_forward.1} parent=31 // pred_fallthru
          _
        // Predicated region
        $region41: #{simcse_forward.1} parent=31 // pred_check
          %p523 = pneg %p201
        $region42: #{simcse_forward.1} parent=31 // pred_check_branch
          %525 = sbr.rel (%p523) target = $region44
        $region43: #{simcse_forward.1} parent=31 // pred_region
          %p526 = scmp.lt.s32.totalorder %s31, 1
          %s527 = scalar_select %p526, %s31, 1
          %s528 = smul.addr %s527, 4
          %s529 = smul.addr %s528, 4
          %s530 = scalar_lea.vmem %s6, %s529
        $region44: #{simcse_forward.1} parent=31 // pred_fallthru
          _
        // Predicated region
        $region45: #{simcse_forward.1} parent=31 // pred_check
          %p531 = pneg %p227
        $region46: #{simcse_forward.1} parent=31 // pred_check_branch
          %533 = sbr.rel (%p531) target = $region48
        $region47: #{simcse_forward.1} parent=31 // pred_region
          %p534 = scmp.lt.s32.totalorder %s31, 1
          %s535 = scalar_select %p534, %s31, 1
          %s536 = scalar_lea.vmem %s7, %s535
        $region48: #{simcse_forward.1} parent=31 // pred_fallthru
          _
        // Predicated region
        $region49: #{simcse_forward.1} parent=31 // pred_check
          %p537 = pneg %p253
        $region50: #{simcse_forward.1} parent=31 // pred_check_branch
          %539 = sbr.rel (%p537) target = $region52
        $region51: #{simcse_forward.1} parent=31 // pred_region
          %p540 = scmp.lt.s32.totalorder %s31, 1
          %s541 = scalar_select %p540, %s31, 1
          %s542 = scalar_lea.vmem %s8, %s541
        $region52: #{simcse_forward.1} parent=31 // pred_fallthru
          _
        // Predicated region
        $region53: #{simcse_forward.1} parent=31 // pred_check
          %p543 = pneg %p279
        $region54: #{simcse_forward.1} parent=31 // pred_check_branch
          %545 = sbr.rel (%p543) target = $region56
        $region55: #{simcse_forward.1} parent=31 // pred_region
          %p546 = scmp.lt.s32.totalorder %s31, 1
          %s547 = scalar_select %p546, %s31, 1
          %s548 = scalar_lea.vmem %s9, %s547
        $region56: #{simcse_forward.1} parent=31 // pred_fallthru
          _
        // Predicated region
        $region57: #{simcse_forward.1} parent=31 // pred_check
          %p549 = pneg %p305
        $region58: #{simcse_forward.1} parent=31 // pred_check_branch
          %551 = sbr.rel (%p549) target = $region60
        $region59: #{simcse_forward.1} parent=31 // pred_region
          %p552 = scmp.lt.s32.totalorder %s31, 1
          %s553 = scalar_select %p552, %s31, 1
          %s554 = smul.addr %s553, 4
          %s555 = smul.addr %s554, 4
          %s556 = scalar_lea.vmem %s10, %s555
        $region60: #{simcse_forward.1} parent=31 // pred_fallthru
          _
        // Predicated region
        $region61: #{simcse_forward.1} parent=31 // pred_check
          %p557 = pneg %p331
        $region62: #{simcse_forward.1} parent=31 // pred_check_branch
          %559 = sbr.rel (%p557) target = $region64
        $region63: #{simcse_forward.1} parent=31 // pred_region
          %p560 = scmp.lt.s32.totalorder %s31, 1
          %s561 = scalar_select %p560, %s31, 1
          %s562 = scalar_lea.vmem %s11, %s561
        $region64: #{simcse_forward.1} parent=31 // pred_fallthru
          _
        // Predicated region
        $region65: #{simcse_forward.1} parent=31 // pred_check
          %p563 = pneg %p357
        $region66: #{simcse_forward.1} parent=31 // pred_check_branch
          %565 = sbr.rel (%p563) target = $region68
        $region67: #{simcse_forward.1} parent=31 // pred_region
          %p566 = scmp.lt.s32.totalorder %s31, 1
          %s567 = scalar_select %p566, %s31, 1
          %s568 = smul.addr %s567, 8
          %s569 = smul.addr %s568, 4
          %s570 = scalar_lea.vmem %s12, %s569
        $region68: #{simcse_forward.1} parent=31 // pred_fallthru
          _
        // Predicated region
        $region69: #{simcse_forward.1} parent=31 // pred_check
          %p571 = pneg %p383
        $region70: #{simcse_forward.1} parent=31 // pred_check_branch
          %573 = sbr.rel (%p571) target = $region72
        $region71: #{simcse_forward.1} parent=31 // pred_region
          %p574 = scmp.lt.s32.totalorder %s31, 1
          %s575 = scalar_select %p574, %s31, 1
          %s576 = scalar_lea.vmem %s13, %s575
        $region72: #{simcse_forward.1} parent=31 // pred_fallthru
          _
        // Predicated region
        $region73: #{simcse_forward.1} parent=31 // pred_check
          %p577 = pneg %p409
        $region74: #{simcse_forward.1} parent=31 // pred_check_branch
          %579 = sbr.rel (%p577) target = $region76
        $region75: #{simcse_forward.1} parent=31 // pred_region
          %p580 = scmp.lt.s32.totalorder %s31, 1
          %s581 = scalar_select %p580, %s31, 1
          %s582 = scalar_lea.vmem %s14, %s581
        $region76: #{simcse_forward.1} parent=31 // pred_fallthru
          _
        // Predicated region
        $region77: #{simcse_forward.1} parent=31 // pred_check
          %p583 = pneg %p435
        $region78: #{simcse_forward.1} parent=31 // pred_check_branch
          %585 = sbr.rel (%p583) target = $region80
        $region79: #{simcse_forward.1} parent=31 // pred_region
          %p586 = scmp.lt.s32.totalorder %s31, 1
          %s587 = scalar_select %p586, %s31, 1
          %s588 = scalar_lea.vmem %s15, %s587
        $region80: #{simcse_forward.1} parent=31 // pred_fallthru
          _
      $region32: #{simcse_forward.1} parent=5 // pred_fallthru
        _
      %p589 = scmp.le.s32.totalorder 1, %s23
      %p590 = scmp.lt.s32.totalorder %s23, 3
      %p591 = pnand %p589, %p590
      %p592 = pneg %p591
      // Predicated region
      $region81: #{simcse_forward.1} parent=5 // pred_check
        _
      $region82: #{simcse_forward.1} parent=5 // pred_check_branch
        %594 = sbr.rel (%p591) target = $region84
      $region83: #{simcse_forward.1} parent=5 // pred_region
        %s595 = ssub.s32 %s23, 1
        %s596 = smul.u32 2, %s32
        %p597 = scmp.lt.s32.totalorder %s596, 1
        %s598 = scalar_select %p597, %s596, 1
        %s599 = smul.addr %s598, 4
        %s600 = scalar_lea.vmem %s0, %s599
        %p601 = pneg %p61
        %p602 = pneg %p58
        %s603 = smul.u32 2, %s32
        %p604 = scmp.lt.s32.totalorder %s603, 1
        %s605 = scalar_select %p604, %s603, 1
        %s606 = scalar_lea.vmem %s1, %s605
        %p607 = pneg %p87
        %p608 = pneg %p84
        %p609 = pneg %p108
        %p610 = pneg %p105
        %p611 = pneg %p129
        %p612 = pneg %p126
        %p613 = scmp.lt.s32.totalorder %s33, 1
        %s614 = scalar_select %p613, %s33, 1
        %s615 = smul.addr %s614, 4
        %s616 = smul.addr %s615, 4
        %s617 = scalar_lea.vmem %s4, %s616
        %p618 = pneg %p155
        %p619 = pneg %p152
        %p620 = scmp.lt.s32.totalorder %s33, 1
        %s621 = scalar_select %p620, %s33, 1
        %s622 = scalar_lea.vmem %s5, %s621
        %p623 = pneg %p181
        %p624 = pneg %p178
        %p625 = scmp.lt.s32.totalorder %s33, 1
        %s626 = scalar_select %p625, %s33, 1
        %s627 = smul.addr %s626, 4
        %s628 = smul.addr %s627, 4
        %s629 = scalar_lea.vmem %s6, %s628
        %p630 = pneg %p207
        %p631 = pneg %p204
        %p632 = scmp.lt.s32.totalorder %s33, 1
        %s633 = scalar_select %p632, %s33, 1
        %s634 = scalar_lea.vmem %s7, %s633
        %p635 = pneg %p233
        %p636 = pneg %p230
        %p637 = scmp.lt.s32.totalorder %s33, 1
        %s638 = scalar_select %p637, %s33, 1
        %s639 = scalar_lea.vmem %s8, %s638
        %p640 = pneg %p259
        %p641 = pneg %p256
        %p642 = scmp.lt.s32.totalorder %s33, 1
        %s643 = scalar_select %p642, %s33, 1
        %s644 = scalar_lea.vmem %s9, %s643
        %p645 = pneg %p285
        %p646 = pneg %p282
        %p647 = scmp.lt.s32.totalorder %s33, 1
        %s648 = scalar_select %p647, %s33, 1
        %s649 = smul.addr %s648, 4
        %s650 = smul.addr %s649, 4
        %s651 = scalar_lea.vmem %s10, %s650
        %p652 = pneg %p311
        %p653 = pneg %p308
        %p654 = scmp.lt.s32.totalorder %s33, 1
        %s655 = scalar_select %p654, %s33, 1
        %s656 = scalar_lea.vmem %s11, %s655
        %p657 = pneg %p337
        %p658 = pneg %p334
        %p659 = scmp.lt.s32.totalorder %s33, 1
        %s660 = scalar_select %p659, %s33, 1
        %s661 = smul.addr %s660, 8
        %s662 = smul.addr %s661, 4
        %s663 = scalar_lea.vmem %s12, %s662
        %p664 = pneg %p363
        %p665 = pneg %p360
        %p666 = scmp.lt.s32.totalorder %s33, 1
        %s667 = scalar_select %p666, %s33, 1
        %s668 = scalar_lea.vmem %s13, %s667
        %p669 = pneg %p389
        %p670 = pneg %p386
        %p671 = scmp.lt.s32.totalorder %s33, 1
        %s672 = scalar_select %p671, %s33, 1
        %s673 = scalar_lea.vmem %s14, %s672
        %p674 = pneg %p415
        %p675 = pneg %p412
        %p676 = scmp.lt.s32.totalorder %s33, 1
        %s677 = scalar_select %p676, %s33, 1
        %s678 = scalar_lea.vmem %s15, %s677
        %p679 = pneg %p441
        %p680 = pneg %p438
        %p681 = pneg %p467
        %p682 = pneg %p464
        %s683 = smul.u32 2, %s32
        %p684 = scmp.lt.s32.totalorder %s683, 1
        %s685 = scalar_select %p684, %s683, 1
        %s686 = smul.addr %s685, 4
        %s687 = scalar_lea.vmem %s0, %s686
        %s688 = smul.u32 2, %s32
        %s689 = smul.u32 2, %s32
        %p690 = scmp.lt.s32.totalorder %s689, 1
        %s691 = scalar_select %p690, %s689, 1
        %s692 = scalar_lea.vmem %s1, %s691
        %s693 = smul.u32 2, %s32
        %p694 = scmp.lt.s32.totalorder %s33, 1
        %s695 = scalar_select %p694, %s33, 1
        %s696 = smul.addr %s695, 4
        %s697 = smul.addr %s696, 4
        %s698 = scalar_lea.vmem %s4, %s697
        %p699 = scmp.lt.s32.totalorder %s33, 1
        %s700 = scalar_select %p699, %s33, 1
        %s701 = scalar_lea.vmem %s5, %s700
        %p702 = scmp.lt.s32.totalorder %s33, 1
        %s703 = scalar_select %p702, %s33, 1
        %s704 = smul.addr %s703, 4
        %s705 = smul.addr %s704, 4
        %s706 = scalar_lea.vmem %s6, %s705
        %p707 = scmp.lt.s32.totalorder %s33, 1
        %s708 = scalar_select %p707, %s33, 1
        %s709 = scalar_lea.vmem %s7, %s708
        %p710 = scmp.lt.s32.totalorder %s33, 1
        %s711 = scalar_select %p710, %s33, 1
        %s712 = scalar_lea.vmem %s8, %s711
        %p713 = scmp.lt.s32.totalorder %s33, 1
        %s714 = scalar_select %p713, %s33, 1
        %s715 = scalar_lea.vmem %s9, %s714
        %p716 = scmp.lt.s32.totalorder %s33, 1
        %s717 = scalar_select %p716, %s33, 1
        %s718 = smul.addr %s717, 4
        %s719 = smul.addr %s718, 4
        %s720 = scalar_lea.vmem %s10, %s719
        %p721 = scmp.lt.s32.totalorder %s33, 1
        %s722 = scalar_select %p721, %s33, 1
        %s723 = scalar_lea.vmem %s11, %s722
        %p724 = scmp.lt.s32.totalorder %s33, 1
        %s725 = scalar_select %p724, %s33, 1
        %s726 = smul.addr %s725, 8
        %s727 = smul.addr %s726, 4
        %s728 = scalar_lea.vmem %s12, %s727
        %p729 = scmp.lt.s32.totalorder %s33, 1
        %s730 = scalar_select %p729, %s33, 1
        %s731 = scalar_lea.vmem %s13, %s730
        %p732 = scmp.lt.s32.totalorder %s33, 1
        %s733 = scalar_select %p732, %s33, 1
        %s734 = scalar_lea.vmem %s14, %s733
        %p735 = scmp.lt.s32.totalorder %s33, 1
        %s736 = scalar_select %p735, %s33, 1
        %s737 = scalar_lea.vmem %s15, %s736
        %s738 = smul.u32 2, %s32
        %p740 = scmp.eq.s32.totalorder %s33, 0
        // Predicated region
        $region85: #{simcse_forward.1} parent=83 // pred_check
          %p741 = pneg %p740
        $region86: #{simcse_forward.1} parent=83 // pred_check_branch
          %743 = sbr.rel (%p741) target = $region88
        $region87: #{simcse_forward.1} parent=83 // pred_region
          %v744 = vld [vmem:[%s687] sm:$0xf]
          %v745 = vld [vmem:[%s687 + $0x4] sm:$0xf]
          %v746 = vunpack.c.l.bf16 %v744
          %v747 = vunpack.c.l.bf16 %v745
          %v748 = vld [vmem:[%s2] sm:$0x1]
          %v749 = vld [vmem:[%s3] sm:$0x1]
          %vm750 = vcmask 261120
          %v751 = vsel %vm750, %v746, 0.0
          %752 = vadd.xlane.f32.xlu0 %v751
          %v753 = vpop.xlane.xlu0 %752
          %v754 = vsel %vm750, %v747, 0.0
          %755 = vadd.xlane.f32.xlu0 %v754
          %v756 = vpop.xlane.xlu0 %755
          %v757 = vrcp.pop 32.0
          %v758 = vmul.f32 %v753, %v757
          %v759 = vmul.f32 %v756, %v757
          %v760 = vsub.f32 %v746, %v758
          %v761 = vsub.f32 %v747, %v759
          %v762 = vmul.f32 %v760, %v760
          %v763 = vmul.f32 %v761, %v761
          %v764 = vsel %vm750, %v762, 0.0
          %765 = vadd.xlane.f32.xlu0 %v764
          %v766 = vpop.xlane.xlu0 %765
          %v767 = vsel %vm750, %v763, 0.0
          %768 = vadd.xlane.f32.xlu0 %v767
          %v769 = vpop.xlane.xlu0 %768
          %v770 = vmul.f32 %v766, %v757
          %v771 = vmul.f32 %v769, %v757
          %v772 = vadd.f32 %v770, 1e-12
          %v773 = vadd.f32 %v771, 1e-12
          %v774 = vrsqrt.pop %v772
          %v775 = vrsqrt.pop %v773
          %v776 = vmul.f32 %v760, %v774
          %v777 = vmul.f32 %v761, %v775
          %v779 = vlaneseq
          %v780 = vshrl.u32 %v779, 7
          %v781 = vsub.s32 0, %v780
          %v782 = vrot.slane %v748, %v781
          %v784 = vmul.f32 %v776, %v782
          %v785 = vmul.f32 %v777, %v782
          %v787 = vlaneseq
          %v788 = vshrl.u32 %v787, 7
          %v789 = vsub.s32 0, %v788
          %v790 = vrot.slane %v749, %v789
          %v792 = vadd.f32 %v784, %v790
          %v793 = vadd.f32 %v785, %v790
          %794 = vst.msk [vmem:[#allocation2] sm:$0xff] %vm750, %v792
          %795 = vst.msk [vmem:[#allocation2 + $0x8] sm:$0xff] %vm750, %v793
        $region88: #{simcse_forward.1} parent=83 // pred_fallthru
          _
        %v796 = vld [vmem:[#allocation2] sm:$0xff]
        %v797 = vld [vmem:[#allocation2 + $0x8] sm:$0xff]
        %v798 = vpack.c.bf16 %v797, %v796
        %v799 = vld [vmem:[%s698] sm:$0xf]
        %v800 = vld [vmem:[%s698 + $0x4] sm:$0xf]
        %v801 = vld [vmem:[%s698 + $0x8] sm:$0xf]
        %v802 = vld [vmem:[%s698 + $0xc] sm:$0xf]
        %v803 = vld [vmem:[%s701] sm:$0x1]
        %v805 = vlaneseq
        %v806 = vshrl.u32 %v805, 7
        %v807 = vsub.s32 0, %v806
        %v808 = vrot.slane %v803, %v807
        %v814 = vunpack.c.l.b16 %v799
        %v815 = vunpack.c.l.b16 %v800
        %v816 = vunpack.c.l.b16 %v801
        %v817 = vunpack.c.l.b16 %v802
        %v818 = vpack.c.b16 %v815, %v814
        %v819 = vpack.c.b16 %v817, %v816
        %vm822 = vcmask 261120
        %v824 = vsel %vm822, %v798, 0
        %826 = vmatprep.subr.bf16.mxu0 0
        %827 = vmatpush1.bf16.msra.mxu0 %v818
        %828 = vmatprep.subr.bf16.mxu0 0
        %829 = vmatpush1.bf16.msra.mxu0 %v819
        %830 = vmatprep.subr.bf16.mxu0 0
        %831 = vmatpush1.bf16.msra.mxu0 0
        %832 = vmatprep.subr.bf16.mxu0 0
        %833 = vmatpush1.bf16.msra.mxu0 0
        %834 = vmatprep.subr.bf16.mxu0 0
        %835 = vmatpush1.bf16.msra.mxu0 0
        %836 = vmatprep.subr.bf16.mxu0 0
        %837 = vmatpush1.bf16.msra.mxu0 0
        %838 = vmatprep.subr.bf16.mxu0 0
        %839 = vmatpush1.bf16.msra.mxu0 0
        %840 = vmatprep.subr.bf16.mxu0 0
        %841 = vmatpush1.bf16.msra.mxu0 0
        %842 = vmatprep.subr.bf16.mxu0 0
        %843 = vmatpush1.bf16.msra.mxu0 0
        %844 = vmatprep.subr.bf16.mxu0 0
        %845 = vmatpush1.bf16.msra.mxu0 0
        %846 = vmatprep.subr.bf16.mxu0 0
        %847 = vmatpush1.bf16.msra.mxu0 0
        %848 = vmatprep.subr.bf16.mxu0 0
        %849 = vmatpush1.bf16.msra.mxu0 0
        %850 = vmatprep.subr.bf16.mxu0 0
        %851 = vmatpush1.bf16.msra.mxu0 0
        %852 = vmatprep.subr.bf16.mxu0 0
        %853 = vmatpush1.bf16.msra.mxu0 0
        %854 = vmatprep.subr.bf16.mxu0 0
        %855 = vmatpush1.bf16.msra.mxu0 0
        %856 = vmatprep.subr.bf16.mxu0 0
        %857 = vmatpush1.bf16.msra.mxu0 0
        %858 = vmatprep.mubr.bf16.mxu0 0
        %859 = vmatmul.mubr.bf16.gmra.mrb[0].mxu0 %v824
        %v860 = vpop.f32.mrb[0].mxu0
        %v861 = vadd.f32 %v808, %v860
        %v862 = vpop.f32.mrb[0].mxu0
        %v863 = vpop.f32.mrb[0].mxu0
        %v864 = vadd.f32 %v808, %v863
        %v865 = vpop.f32.mrb[0].mxu0
        %866 = vdwg.mxu0
        %v867 = vmul.f32 %v861, 0.35355338
        %v868 = vmul.f32 %v864, 0.35355338
        %v869 = vpack.c.bf16 %v868, %v867
        %v870 = vpack.c.bf16 %v864, %v861
        %v871 = vld [vmem:[%s692] sm:$0x1]
        %v872 = vld [vmem:[%s692 + $0x1] sm:$0x1]
        %v873 = vld [vmem:[%s706] sm:$0xf]
        %v874 = vld [vmem:[%s706 + $0x4] sm:$0xf]
        %v875 = vld [vmem:[%s706 + $0x8] sm:$0xf]
        %v876 = vld [vmem:[%s706 + $0xc] sm:$0xf]
        %v878 = vlaneseq
        %v879 = vshrl.u32 %v878, 7
        %v880 = vsub.s32 0, %v879
        %v881 = vrot.slane %v871, %v880
        %884 = vrot.lane.b32.xlu0 %v870, 96
        %v885 = vpop.permute.xlu0 %884
        %vm886 = vcmask 64512
        %v888 = vsel %vm886, %v869, 0
        %v891 = vsel %vm886, %v885, 0
        %893 = vmatprep.subr.bf16.mxu0 0
        %894 = vmatpush1.bf16.xpose.msra.mxu0 %v891
        %895 = vmatprep.subr.bf16.mxu0 0
        %896 = vmatpush1.bf16.xpose.msra.mxu0 0
        %897 = vmatprep.subr.bf16.mxu0 0
        %898 = vmatpush1.bf16.xpose.msra.mxu0 0
        %899 = vmatprep.subr.bf16.mxu0 0
        %900 = vmatpush1.bf16.xpose.msra.mxu0 0
        %901 = vmatprep.subr.bf16.mxu0 0
        %902 = vmatpush1.bf16.xpose.msra.mxu0 0
        %903 = vmatprep.subr.bf16.mxu0 0
        %904 = vmatpush1.bf16.xpose.msra.mxu0 0
        %905 = vmatprep.subr.bf16.mxu0 0
        %906 = vmatpush1.bf16.xpose.msra.mxu0 0
        %907 = vmatprep.subr.bf16.mxu0 0
        %908 = vmatpush1.bf16.xpose.msra.mxu0 0
        %909 = vmatprep.subr.bf16.mxu0 0
        %910 = vmatpush1.bf16.xpose.msra.mxu0 0
        %911 = vmatprep.subr.bf16.mxu0 0
        %912 = vmatpush1.bf16.xpose.msra.mxu0 0
        %913 = vmatprep.subr.bf16.mxu0 0
        %914 = vmatpush1.bf16.xpose.msra.mxu0 0
        %915 = vmatprep.subr.bf16.mxu0 0
        %916 = vmatpush1.bf16.xpose.msra.mxu0 0
        %917 = vmatprep.subr.bf16.mxu0 0
        %918 = vmatpush1.bf16.xpose.msra.mxu0 0
        %919 = vmatprep.subr.bf16.mxu0 0
        %920 = vmatpush1.bf16.xpose.msra.mxu0 0
        %921 = vmatprep.subr.bf16.mxu0 0
        %922 = vmatpush1.bf16.xpose.msra.mxu0 0
        %923 = vmatprep.subr.bf16.mxu0 0
        %924 = vmatpush1.bf16.xpose.msra.mxu0 0
        %925 = vmatprep.mubr.bf16.mxu0 0
        %926 = vmatmul.mubr.bf16.gmra.mrb[0].mxu0 %v888
        %v927 = vpop.f32.mrb[0].mxu0
        %v928 = vadd.f32 %v881, %v927
        %v929 = vpop.f32.mrb[0].mxu0
        %v930 = vpop.f32.mrb[0].mxu0
        %v931 = vpop.f32.mrb[0].mxu0
        %932 = vdwg.mxu0
        %v933 = vsel %vm886, %v928, -inf
        %934 = vmax.xlane.f32.xlu0 %v933
        %v935 = vpop.xlane.xlu0 %934
        %v936 = vsub.f32 %v928, %v935
        %v937 = vmul.f32 %v936, 1.442695
        %v938 = vpow.pop %v937
        %v939 = vsel %vm886, %v938, 0.0
        %940 = vadd.xlane.f32.xlu0 %v939
        %v941 = vpop.xlane.xlu0 %940
        %v942 = vrcp.pop %v941
        %v943 = vmul.f32 %v938, %v942
        %v944 = vpack.c.bf16 %v943, %v943
        %945 = vrot.lane.b32.xlu0 %v870, 64
        %v946 = vpop.permute.xlu0 %945
        %v948 = vsel %vm886, %v944, 0
        %vm950 = vcmask 1043456
        %v952 = vsel %vm950, %v946, 0
        %954 = vmatprep.subr.bf16.mxu0 0
        %955 = vmatpush1.bf16.msra.mxu0 %v952
        %956 = vmatprep.subr.bf16.mxu0 0
        %957 = vmatpush1.bf16.msra.mxu0 0
        %958 = vmatprep.subr.bf16.mxu0 0
        %959 = vmatpush1.bf16.msra.mxu0 0
        %960 = vmatprep.subr.bf16.mxu0 0
        %961 = vmatpush1.bf16.msra.mxu0 0
        %962 = vmatprep.subr.bf16.mxu0 0
        %963 = vmatpush1.bf16.msra.mxu0 0
        %964 = vmatprep.subr.bf16.mxu0 0
        %965 = vmatpush1.bf16.msra.mxu0 0
        %966 = vmatprep.subr.bf16.mxu0 0
        %967 = vmatpush1.bf16.msra.mxu0 0
        %968 = vmatprep.subr.bf16.mxu0 0
        %969 = vmatpush1.bf16.msra.mxu0 0
        %970 = vmatprep.subr.bf16.mxu0 0
        %971 = vmatpush1.bf16.msra.mxu0 0
        %972 = vmatprep.subr.bf16.mxu0 0
        %973 = vmatpush1.bf16.msra.mxu0 0
        %974 = vmatprep.subr.bf16.mxu0 0
        %975 = vmatpush1.bf16.msra.mxu0 0
        %976 = vmatprep.subr.bf16.mxu0 0
        %977 = vmatpush1.bf16.msra.mxu0 0
        %978 = vmatprep.subr.bf16.mxu0 0
        %979 = vmatpush1.bf16.msra.mxu0 0
        %980 = vmatprep.subr.bf16.mxu0 0
        %981 = vmatpush1.bf16.msra.mxu0 0
        %982 = vmatprep.subr.bf16.mxu0 0
        %983 = vmatpush1.bf16.msra.mxu0 0
        %984 = vmatprep.subr.bf16.mxu0 0
        %985 = vmatpush1.bf16.msra.mxu0 0
        %986 = vmatprep.mubr.bf16.mxu0 0
        %987 = vmatmul.mubr.bf16.gmra.mrb[0].mxu0 %v948
        %v988 = vpop.f32.mrb[0].mxu0
        %v989 = vadd.f32 0.0, %v988
        %v990 = vpop.f32.mrb[0].mxu0
        %v991 = vpop.f32.mrb[0].mxu0
        %v992 = vpop.f32.mrb[0].mxu0
        %993 = vdwg.mxu0
        %v994 = vpack.c.bf16 %v989, %v989
        %996 = vrot.lane.b32.xlu0 %v869, 120
        %v997 = vpop.permute.xlu0 %996
        %998 = vrot.lane.b32.xlu0 %v870, 88
        %v999 = vpop.permute.xlu0 %998
        %v1001 = vsel %vm886, %v997, 0
        %v1004 = vsel %vm886, %v999, 0
        %1006 = vmatprep.subr.bf16.mxu0 0
        %1007 = vmatpush1.bf16.xpose.msra.mxu0 %v1004
        %1008 = vmatprep.subr.bf16.mxu0 0
        %1009 = vmatpush1.bf16.xpose.msra.mxu0 0
        %1010 = vmatprep.subr.bf16.mxu0 0
        %1011 = vmatpush1.bf16.xpose.msra.mxu0 0
        %1012 = vmatprep.subr.bf16.mxu0 0
        %1013 = vmatpush1.bf16.xpose.msra.mxu0 0
        %1014 = vmatprep.subr.bf16.mxu0 0
        %1015 = vmatpush1.bf16.xpose.msra.mxu0 0
        %1016 = vmatprep.subr.bf16.mxu0 0
        %1017 = vmatpush1.bf16.xpose.msra.mxu0 0
        %1018 = vmatprep.subr.bf16.mxu0 0
        %1019 = vmatpush1.bf16.xpose.msra.mxu0 0
        %1020 = vmatprep.subr.bf16.mxu0 0
        %1021 = vmatpush1.bf16.xpose.msra.mxu0 0
        %1022 = vmatprep.subr.bf16.mxu0 0
        %1023 = vmatpush1.bf16.xpose.msra.mxu0 0
        %1024 = vmatprep.subr.bf16.mxu0 0
        %1025 = vmatpush1.bf16.xpose.msra.mxu0 0
        %1026 = vmatprep.subr.bf16.mxu0 0
        %1027 = vmatpush1.bf16.xpose.msra.mxu0 0
        %1028 = vmatprep.subr.bf16.mxu0 0
        %1029 = vmatpush1.bf16.xpose.msra.mxu0 0
        %1030 = vmatprep.subr.bf16.mxu0 0
        %1031 = vmatpush1.bf16.xpose.msra.mxu0 0
        %1032 = vmatprep.subr.bf16.mxu0 0
        %1033 = vmatpush1.bf16.xpose.msra.mxu0 0
        %1034 = vmatprep.subr.bf16.mxu0 0
        %1035 = vmatpush1.bf16.xpose.msra.mxu0 0
        %1036 = vmatprep.subr.bf16.mxu0 0
        %1037 = vmatpush1.bf16.xpose.msra.mxu0 0
        %1038 = vmatprep.mubr.bf16.mxu0 0
        %1039 = vmatmul.mubr.bf16.gmra.mrb[0].mxu0 %v1001
        %v1040 = vpop.f32.mrb[0].mxu0
        %v1041 = vadd.f32 %v881, %v1040
        %v1042 = vpop.f32.mrb[0].mxu0
        %v1043 = vpop.f32.mrb[0].mxu0
        %v1044 = vpop.f32.mrb[0].mxu0
        %1045 = vdwg.mxu0
        %v1046 = vsel %vm886, %v1041, -inf
        %1047 = vmax.xlane.f32.xlu0 %v1046
        %v1048 = vpop.xlane.xlu0 %1047
        %v1049 = vsub.f32 %v1041, %v1048
        %v1050 = vmul.f32 %v1049, 1.442695
        %v1051 = vpow.pop %v1050
        %v1052 = vsel %vm886, %v1051, 0.0
        %1053 = vadd.xlane.f32.xlu0 %v1052
        %v1054 = vpop.xlane.xlu0 %1053
        %v1055 = vrcp.pop %v1054
        %v1056 = vmul.f32 %v1051, %v1055
        %v1057 = vpack.c.bf16 %v1056, %v1056
        %1058 = vrot.lane.b32.xlu0 %v870, 56
        %v1059 = vpop.permute.xlu0 %1058
        %v1061 = vsel %vm886, %v1057, 0
        %v1064 = vsel %vm950, %v1059, 0
        %1066 = vmatprep.subr.bf16.mxu0 0
        %1067 = vmatpush1.bf16.msra.mxu0 %v1064
        %1068 = vmatprep.subr.bf16.mxu0 0
        %1069 = vmatpush1.bf16.msra.mxu0 0
        %1070 = vmatprep.subr.bf16.mxu0 0
        %1071 = vmatpush1.bf16.msra.mxu0 0
        %1072 = vmatprep.subr.bf16.mxu0 0
        %1073 = vmatpush1.bf16.msra.mxu0 0
        %1074 = vmatprep.subr.bf16.mxu0 0
        %1075 = vmatpush1.bf16.msra.mxu0 0
        %1076 = vmatprep.subr.bf16.mxu0 0
        %1077 = vmatpush1.bf16.msra.mxu0 0
        %1078 = vmatprep.subr.bf16.mxu0 0
        %1079 = vmatpush1.bf16.msra.mxu0 0
        %1080 = vmatprep.subr.bf16.mxu0 0
        %1081 = vmatpush1.bf16.msra.mxu0 0
        %1082 = vmatprep.subr.bf16.mxu0 0
        %1083 = vmatpush1.bf16.msra.mxu0 0
        %1084 = vmatprep.subr.bf16.mxu0 0
        %1085 = vmatpush1.bf16.msra.mxu0 0
        %1086 = vmatprep.subr.bf16.mxu0 0
        %1087 = vmatpush1.bf16.msra.mxu0 0
        %1088 = vmatprep.subr.bf16.mxu0 0
        %1089 = vmatpush1.bf16.msra.mxu0 0
        %1090 = vmatprep.subr.bf16.mxu0 0
        %1091 = vmatpush1.bf16.msra.mxu0 0
        %1092 = vmatprep.subr.bf16.mxu0 0
        %1093 = vmatpush1.bf16.msra.mxu0 0
        %1094 = vmatprep.subr.bf16.mxu0 0
        %1095 = vmatpush1.bf16.msra.mxu0 0
        %1096 = vmatprep.subr.bf16.mxu0 0
        %1097 = vmatpush1.bf16.msra.mxu0 0
        %1098 = vmatprep.mubr.bf16.mxu0 0
        %1099 = vmatmul.mubr.bf16.gmra.mrb[0].mxu0 %v1061
        %v1100 = vpop.f32.mrb[0].mxu0
        %v1101 = vadd.f32 0.0, %v1100
        %v1102 = vpop.f32.mrb[0].mxu0
        %v1103 = vpop.f32.mrb[0].mxu0
        %v1104 = vpop.f32.mrb[0].mxu0
        %1105 = vdwg.mxu0
        %v1106 = vpack.c.bf16 %v1101, %v1101
        %v1108 = vsel %vm886, %v1106, 0
        %v1111 = vsel %vm950, %v874, 0
        %1113 = vmatprep.subr.bf16.mxu0 0
        %1114 = vmatpush1.bf16.msra.mxu0 %v1111
        %1115 = vmatprep.subr.bf16.mxu0 0
        %1116 = vmatpush1.bf16.msra.mxu0 0
        %1117 = vmatprep.subr.bf16.mxu0 0
        %1118 = vmatpush1.bf16.msra.mxu0 0
        %1119 = vmatprep.subr.bf16.mxu0 0
        %1120 = vmatpush1.bf16.msra.mxu0 0
        %1121 = vmatprep.subr.bf16.mxu0 0
        %1122 = vmatpush1.bf16.msra.mxu0 0
        %1123 = vmatprep.subr.bf16.mxu0 0
        %1124 = vmatpush1.bf16.msra.mxu0 0
        %1125 = vmatprep.subr.bf16.mxu0 0
        %1126 = vmatpush1.bf16.msra.mxu0 0
        %1127 = vmatprep.subr.bf16.mxu0 0
        %1128 = vmatpush1.bf16.msra.mxu0 0
        %1129 = vmatprep.subr.bf16.mxu0 0
        %1130 = vmatpush1.bf16.msra.mxu0 0
        %1131 = vmatprep.subr.bf16.mxu0 0
        %1132 = vmatpush1.bf16.msra.mxu0 0
        %1133 = vmatprep.subr.bf16.mxu0 0
        %1134 = vmatpush1.bf16.msra.mxu0 0
        %1135 = vmatprep.subr.bf16.mxu0 0
        %1136 = vmatpush1.bf16.msra.mxu0 0
        %1137 = vmatprep.subr.bf16.mxu0 0
        %1138 = vmatpush1.bf16.msra.mxu0 0
        %1139 = vmatprep.subr.bf16.mxu0 0
        %1140 = vmatpush1.bf16.msra.mxu0 0
        %1141 = vmatprep.subr.bf16.mxu0 0
        %1142 = vmatpush1.bf16.msra.mxu0 0
        %1143 = vmatprep.subr.bf16.mxu0 0
        %1144 = vmatpush1.bf16.msra.mxu0 0
        %1145 = vmatprep.mubr.bf16.mxu0 0
        %1146 = vmatmul.mubr.bf16.gmra.mrb[0].mxu0 %v1108
        %v1147 = vpop.f32.mrb[0].mxu0
        %v1148 = vadd.f32 0.0, %v1147
        %v1149 = vpop.f32.mrb[0].mxu0
        %v1150 = vpop.f32.mrb[0].mxu0
        %v1151 = vpop.f32.mrb[0].mxu0
        %1152 = vdwg.mxu0
        %v1154 = vsel %vm886, %v994, 0
        %v1157 = vsel %vm950, %v873, 0
        %1159 = vmatprep.subr.bf16.mxu0 0
        %1160 = vmatpush1.bf16.msra.mxu0 %v1157
        %1161 = vmatprep.subr.bf16.mxu0 0
        %1162 = vmatpush1.bf16.msra.mxu0 0
        %1163 = vmatprep.subr.bf16.mxu0 0
        %1164 = vmatpush1.bf16.msra.mxu0 0
        %1165 = vmatprep.subr.bf16.mxu0 0
        %1166 = vmatpush1.bf16.msra.mxu0 0
        %1167 = vmatprep.subr.bf16.mxu0 0
        %1168 = vmatpush1.bf16.msra.mxu0 0
        %1169 = vmatprep.subr.bf16.mxu0 0
        %1170 = vmatpush1.bf16.msra.mxu0 0
        %1171 = vmatprep.subr.bf16.mxu0 0
        %1172 = vmatpush1.bf16.msra.mxu0 0
        %1173 = vmatprep.subr.bf16.mxu0 0
        %1174 = vmatpush1.bf16.msra.mxu0 0
        %1175 = vmatprep.subr.bf16.mxu0 0
        %1176 = vmatpush1.bf16.msra.mxu0 0
        %1177 = vmatprep.subr.bf16.mxu0 0
        %1178 = vmatpush1.bf16.msra.mxu0 0
        %1179 = vmatprep.subr.bf16.mxu0 0
        %1180 = vmatpush1.bf16.msra.mxu0 0
        %1181 = vmatprep.subr.bf16.mxu0 0
        %1182 = vmatpush1.bf16.msra.mxu0 0
        %1183 = vmatprep.subr.bf16.mxu0 0
        %1184 = vmatpush1.bf16.msra.mxu0 0
        %1185 = vmatprep.subr.bf16.mxu0 0
        %1186 = vmatpush1.bf16.msra.mxu0 0
        %1187 = vmatprep.subr.bf16.mxu0 0
        %1188 = vmatpush1.bf16.msra.mxu0 0
        %1189 = vmatprep.subr.bf16.mxu0 0
        %1190 = vmatpush1.bf16.msra.mxu0 0
        %1191 = vmatprep.mubr.bf16.mxu0 0
        %1192 = vmatmul.mubr.bf16.gmra.mrb[0].mxu0 %v1154
        %v1193 = vpop.f32.mrb[0].mxu0
        %v1194 = vadd.f32 %v1148, %v1193
        %v1195 = vpop.f32.mrb[0].mxu0
        %v1196 = vpop.f32.mrb[0].mxu0
        %v1197 = vpop.f32.mrb[0].mxu0
        %1198 = vdwg.mxu0
        %1199 = vrot.lane.b32.xlu0 %v869, 112
        %v1200 = vpop.permute.xlu0 %1199
        %1201 = vrot.lane.b32.xlu0 %v870, 80
        %v1202 = vpop.permute.xlu0 %1201
        %v1204 = vsel %vm886, %v1200, 0
        %v1207 = vsel %vm886, %v1202, 0
        %1209 = vmatprep.subr.bf16.mxu0 0
        %1210 = vmatpush1.bf16.xpose.msra.mxu0 %v1207
        %1211 = vmatprep.subr.bf16.mxu0 0
        %1212 = vmatpush1.bf16.xpose.msra.mxu0 0
        %1213 = vmatprep.subr.bf16.mxu0 0
        %1214 = vmatpush1.bf16.xpose.msra.mxu0 0
        %1215 = vmatprep.subr.bf16.mxu0 0
        %1216 = vmatpush1.bf16.xpose.msra.mxu0 0
        %1217 = vmatprep.subr.bf16.mxu0 0
        %1218 = vmatpush1.bf16.xpose.msra.mxu0 0
        %1219 = vmatprep.subr.bf16.mxu0 0
        %1220 = vmatpush1.bf16.xpose.msra.mxu0 0
        %1221 = vmatprep.subr.bf16.mxu0 0
        %1222 = vmatpush1.bf16.xpose.msra.mxu0 0
        %1223 = vmatprep.subr.bf16.mxu0 0
        %1224 = vmatpush1.bf16.xpose.msra.mxu0 0
        %1225 = vmatprep.subr.bf16.mxu0 0
        %1226 = vmatpush1.bf16.xpose.msra.mxu0 0
        %1227 = vmatprep.subr.bf16.mxu0 0
        %1228 = vmatpush1.bf16.xpose.msra.mxu0 0
        %1229 = vmatprep.subr.bf16.mxu0 0
        %1230 = vmatpush1.bf16.xpose.msra.mxu0 0
        %1231 = vmatprep.subr.bf16.mxu0 0
        %1232 = vmatpush1.bf16.xpose.msra.mxu0 0
        %1233 = vmatprep.subr.bf16.mxu0 0
        %1234 = vmatpush1.bf16.xpose.msra.mxu0 0
        %1235 = vmatprep.subr.bf16.mxu0 0
        %1236 = vmatpush1.bf16.xpose.msra.mxu0 0
        %1237 = vmatprep.subr.bf16.mxu0 0
        %1238 = vmatpush1.bf16.xpose.msra.mxu0 0
        %1239 = vmatprep.subr.bf16.mxu0 0
        %1240 = vmatpush1.bf16.xpose.msra.mxu0 0
        %1241 = vmatprep.mubr.bf16.mxu0 0
        %1242 = vmatmul.mubr.bf16.gmra.mrb[0].mxu0 %v1204
        %v1243 = vpop.f32.mrb[0].mxu0
        %v1244 = vadd.f32 %v881, %v1243
        %v1245 = vpop.f32.mrb[0].mxu0
        %v1246 = vpop.f32.mrb[0].mxu0
        %v1247 = vpop.f32.mrb[0].mxu0
        %1248 = vdwg.mxu0
        %v1249 = vsel %vm886, %v1244, -inf
        %1250 = vmax.xlane.f32.xlu0 %v1249
        %v1251 = vpop.xlane.xlu0 %1250
        %v1252 = vsub.f32 %v1244, %v1251
        %v1253 = vmul.f32 %v1252, 1.442695
        %v1254 = vpow.pop %v1253
        %v1255 = vsel %vm886, %v1254, 0.0
        %1256 = vadd.xlane.f32.xlu0 %v1255
        %v1257 = vpop.xlane.xlu0 %1256
        %v1258 = vrcp.pop %v1257
        %v1259 = vmul.f32 %v1254, %v1258
        %v1260 = vpack.c.bf16 %v1259, %v1259
        %1261 = vrot.lane.b32.xlu0 %v870, 48
        %v1262 = vpop.permute.xlu0 %1261
        %v1264 = vsel %vm886, %v1260, 0
        %v1267 = vsel %vm950, %v1262, 0
        %1269 = vmatprep.subr.bf16.mxu0 0
        %1270 = vmatpush1.bf16.msra.mxu0 %v1267
        %1271 = vmatprep.subr.bf16.mxu0 0
        %1272 = vmatpush1.bf16.msra.mxu0 0
        %1273 = vmatprep.subr.bf16.mxu0 0
        %1274 = vmatpush1.bf16.msra.mxu0 0
        %1275 = vmatprep.subr.bf16.mxu0 0
        %1276 = vmatpush1.bf16.msra.mxu0 0
        %1277 = vmatprep.subr.bf16.mxu0 0
        %1278 = vmatpush1.bf16.msra.mxu0 0
        %1279 = vmatprep.subr.bf16.mxu0 0
        %1280 = vmatpush1.bf16.msra.mxu0 0
        %1281 = vmatprep.subr.bf16.mxu0 0
        %1282 = vmatpush1.bf16.msra.mxu0 0
        %1283 = vmatprep.subr.bf16.mxu0 0
        %1284 = vmatpush1.bf16.msra.mxu0 0
        %1285 = vmatprep.subr.bf16.mxu0 0
        %1286 = vmatpush1.bf16.msra.mxu0 0
        %1287 = vmatprep.subr.bf16.mxu0 0
        %1288 = vmatpush1.bf16.msra.mxu0 0
        %1289 = vmatprep.subr.bf16.mxu0 0
        %1290 = vmatpush1.bf16.msra.mxu0 0
        %1291 = vmatprep.subr.bf16.mxu0 0
        %1292 = vmatpush1.bf16.msra.mxu0 0
        %1293 = vmatprep.subr.bf16.mxu0 0
        %1294 = vmatpush1.bf16.msra.mxu0 0
        %1295 = vmatprep.subr.bf16.mxu0 0
        %1296 = vmatpush1.bf16.msra.mxu0 0
        %1297 = vmatprep.subr.bf16.mxu0 0
        %1298 = vmatpush1.bf16.msra.mxu0 0
        %1299 = vmatprep.subr.bf16.mxu0 0
        %1300 = vmatpush1.bf16.msra.mxu0 0
        %1301 = vmatprep.mubr.bf16.mxu0 0
        %1302 = vmatmul.mubr.bf16.gmra.mrb[0].mxu0 %v1264
        %v1303 = vpop.f32.mrb[0].mxu0
        %v1304 = vadd.f32 0.0, %v1303
        %v1305 = vpop.f32.mrb[0].mxu0
        %v1306 = vpop.f32.mrb[0].mxu0
        %v1307 = vpop.f32.mrb[0].mxu0
        %1308 = vdwg.mxu0
        %v1309 = vpack.c.bf16 %v1304, %v1304
        %v1311 = vsel %vm886, %v1309, 0
        %v1314 = vsel %vm950, %v875, 0
        %1316 = vmatprep.subr.bf16.mxu0 0
        %1317 = vmatpush1.bf16.msra.mxu0 %v1314
        %1318 = vmatprep.subr.bf16.mxu0 0
        %1319 = vmatpush1.bf16.msra.mxu0 0
        %1320 = vmatprep.subr.bf16.mxu0 0
        %1321 = vmatpush1.bf16.msra.mxu0 0
        %1322 = vmatprep.subr.bf16.mxu0 0
        %1323 = vmatpush1.bf16.msra.mxu0 0
        %1324 = vmatprep.subr.bf16.mxu0 0
        %1325 = vmatpush1.bf16.msra.mxu0 0
        %1326 = vmatprep.subr.bf16.mxu0 0
        %1327 = vmatpush1.bf16.msra.mxu0 0
        %1328 = vmatprep.subr.bf16.mxu0 0
        %1329 = vmatpush1.bf16.msra.mxu0 0
        %1330 = vmatprep.subr.bf16.mxu0 0
        %1331 = vmatpush1.bf16.msra.mxu0 0
        %1332 = vmatprep.subr.bf16.mxu0 0
        %1333 = vmatpush1.bf16.msra.mxu0 0
        %1334 = vmatprep.subr.bf16.mxu0 0
        %1335 = vmatpush1.bf16.msra.mxu0 0
        %1336 = vmatprep.subr.bf16.mxu0 0
        %1337 = vmatpush1.bf16.msra.mxu0 0
        %1338 = vmatprep.subr.bf16.mxu0 0
        %1339 = vmatpush1.bf16.msra.mxu0 0
        %1340 = vmatprep.subr.bf16.mxu0 0
        %1341 = vmatpush1.bf16.msra.mxu0 0
        %1342 = vmatprep.subr.bf16.mxu0 0
        %1343 = vmatpush1.bf16.msra.mxu0 0
        %1344 = vmatprep.subr.bf16.mxu0 0
        %1345 = vmatpush1.bf16.msra.mxu0 0
        %1346 = vmatprep.subr.bf16.mxu0 0
        %1347 = vmatpush1.bf16.msra.mxu0 0
        %1348 = vmatprep.mubr.bf16.mxu0 0
        %1349 = vmatmul.mubr.bf16.gmra.mrb[0].mxu0 %v1311
        %v1350 = vpop.f32.mrb[0].mxu0
        %v1351 = vadd.f32 0.0, %v1350
        %v1352 = vpop.f32.mrb[0].mxu0
        %v1353 = vpop.f32.mrb[0].mxu0
        %v1354 = vpop.f32.mrb[0].mxu0
        %1355 = vdwg.mxu0
        %v1356 = vadd.f32 %v1194, %v1351
        %1357 = vrot.lane.b32.xlu0 %v869, 104
        %v1358 = vpop.permute.xlu0 %1357
        %1359 = vrot.lane.b32.xlu0 %v870, 72
        %v1360 = vpop.permute.xlu0 %1359
        %v1362 = vsel %vm886, %v1358, 0
        %v1365 = vsel %vm886, %v1360, 0
        %1367 = vmatprep.subr.bf16.mxu0 0
        %1368 = vmatpush1.bf16.xpose.msra.mxu0 %v1365
        %1369 = vmatprep.subr.bf16.mxu0 0
        %1370 = vmatpush1.bf16.xpose.msra.mxu0 0
        %1371 = vmatprep.subr.bf16.mxu0 0
        %1372 = vmatpush1.bf16.xpose.msra.mxu0 0
        %1373 = vmatprep.subr.bf16.mxu0 0
        %1374 = vmatpush1.bf16.xpose.msra.mxu0 0
        %1375 = vmatprep.subr.bf16.mxu0 0
        %1376 = vmatpush1.bf16.xpose.msra.mxu0 0
        %1377 = vmatprep.subr.bf16.mxu0 0
        %1378 = vmatpush1.bf16.xpose.msra.mxu0 0
        %1379 = vmatprep.subr.bf16.mxu0 0
        %1380 = vmatpush1.bf16.xpose.msra.mxu0 0
        %1381 = vmatprep.subr.bf16.mxu0 0
        %1382 = vmatpush1.bf16.xpose.msra.mxu0 0
        %1383 = vmatprep.subr.bf16.mxu0 0
        %1384 = vmatpush1.bf16.xpose.msra.mxu0 0
        %1385 = vmatprep.subr.bf16.mxu0 0
        %1386 = vmatpush1.bf16.xpose.msra.mxu0 0
        %1387 = vmatprep.subr.bf16.mxu0 0
        %1388 = vmatpush1.bf16.xpose.msra.mxu0 0
        %1389 = vmatprep.subr.bf16.mxu0 0
        %1390 = vmatpush1.bf16.xpose.msra.mxu0 0
        %1391 = vmatprep.subr.bf16.mxu0 0
        %1392 = vmatpush1.bf16.xpose.msra.mxu0 0
        %1393 = vmatprep.subr.bf16.mxu0 0
        %1394 = vmatpush1.bf16.xpose.msra.mxu0 0
        %1395 = vmatprep.subr.bf16.mxu0 0
        %1396 = vmatpush1.bf16.xpose.msra.mxu0 0
        %1397 = vmatprep.subr.bf16.mxu0 0
        %1398 = vmatpush1.bf16.xpose.msra.mxu0 0
        %1399 = vmatprep.mubr.bf16.mxu0 0
        %1400 = vmatmul.mubr.bf16.gmra.mrb[0].mxu0 %v1362
        %v1401 = vpop.f32.mrb[0].mxu0
        %v1402 = vadd.f32 %v881, %v1401
        %v1403 = vpop.f32.mrb[0].mxu0
        %v1404 = vpop.f32.mrb[0].mxu0
        %v1405 = vpop.f32.mrb[0].mxu0
        %1406 = vdwg.mxu0
        %v1407 = vsel %vm886, %v1402, -inf
        %1408 = vmax.xlane.f32.xlu0 %v1407
        %v1409 = vpop.xlane.xlu0 %1408
        %v1410 = vsub.f32 %v1402, %v1409
        %v1411 = vmul.f32 %v1410, 1.442695
        %v1412 = vpow.pop %v1411
        %v1413 = vsel %vm886, %v1412, 0.0
        %1414 = vadd.xlane.f32.xlu0 %v1413
        %v1415 = vpop.xlane.xlu0 %1414
        %v1416 = vrcp.pop %v1415
        %v1417 = vmul.f32 %v1412, %v1416
        %v1418 = vpack.c.bf16 %v1417, %v1417
        %1419 = vrot.lane.b32.xlu0 %v870, 40
        %v1420 = vpop.permute.xlu0 %1419
        %v1422 = vsel %vm886, %v1418, 0
        %v1425 = vsel %vm950, %v1420, 0
        %1427 = vmatprep.subr.bf16.mxu0 0
        %1428 = vmatpush1.bf16.msra.mxu0 %v1425
        %1429 = vmatprep.subr.bf16.mxu0 0
        %1430 = vmatpush1.bf16.msra.mxu0 0
        %1431 = vmatprep.subr.bf16.mxu0 0
        %1432 = vmatpush1.bf16.msra.mxu0 0
        %1433 = vmatprep.subr.bf16.mxu0 0
        %1434 = vmatpush1.bf16.msra.mxu0 0
        %1435 = vmatprep.subr.bf16.mxu0 0
        %1436 = vmatpush1.bf16.msra.mxu0 0
        %1437 = vmatprep.subr.bf16.mxu0 0
        %1438 = vmatpush1.bf16.msra.mxu0 0
        %1439 = vmatprep.subr.bf16.mxu0 0
        %1440 = vmatpush1.bf16.msra.mxu0 0
        %1441 = vmatprep.subr.bf16.mxu0 0
        %1442 = vmatpush1.bf16.msra.mxu0 0
        %1443 = vmatprep.subr.bf16.mxu0 0
        %1444 = vmatpush1.bf16.msra.mxu0 0
        %1445 = vmatprep.subr.bf16.mxu0 0
        %1446 = vmatpush1.bf16.msra.mxu0 0
        %1447 = vmatprep.subr.bf16.mxu0 0
        %1448 = vmatpush1.bf16.msra.mxu0 0
        %1449 = vmatprep.subr.bf16.mxu0 0
        %1450 = vmatpush1.bf16.msra.mxu0 0
        %1451 = vmatprep.subr.bf16.mxu0 0
        %1452 = vmatpush1.bf16.msra.mxu0 0
        %1453 = vmatprep.subr.bf16.mxu0 0
        %1454 = vmatpush1.bf16.msra.mxu0 0
        %1455 = vmatprep.subr.bf16.mxu0 0
        %1456 = vmatpush1.bf16.msra.mxu0 0
        %1457 = vmatprep.subr.bf16.mxu0 0
        %1458 = vmatpush1.bf16.msra.mxu0 0
        %1459 = vmatprep.mubr.bf16.mxu0 0
        %1460 = vmatmul.mubr.bf16.gmra.mrb[0].mxu0 %v1422
        %v1461 = vpop.f32.mrb[0].mxu0
        %v1462 = vadd.f32 0.0, %v1461
        %v1463 = vpop.f32.mrb[0].mxu0
        %v1464 = vpop.f32.mrb[0].mxu0
        %v1465 = vpop.f32.mrb[0].mxu0
        %1466 = vdwg.mxu0
        %v1467 = vpack.c.bf16 %v1462, %v1462
        %v1469 = vsel %vm886, %v1467, 0
        %v1472 = vsel %vm950, %v876, 0
        %1474 = vmatprep.subr.bf16.mxu0 0
        %1475 = vmatpush1.bf16.msra.mxu0 %v1472
        %1476 = vmatprep.subr.bf16.mxu0 0
        %1477 = vmatpush1.bf16.msra.mxu0 0
        %1478 = vmatprep.subr.bf16.mxu0 0
        %1479 = vmatpush1.bf16.msra.mxu0 0
        %1480 = vmatprep.subr.bf16.mxu0 0
        %1481 = vmatpush1.bf16.msra.mxu0 0
        %1482 = vmatprep.subr.bf16.mxu0 0
        %1483 = vmatpush1.bf16.msra.mxu0 0
        %1484 = vmatprep.subr.bf16.mxu0 0
        %1485 = vmatpush1.bf16.msra.mxu0 0
        %1486 = vmatprep.subr.bf16.mxu0 0
        %1487 = vmatpush1.bf16.msra.mxu0 0
        %1488 = vmatprep.subr.bf16.mxu0 0
        %1489 = vmatpush1.bf16.msra.mxu0 0
        %1490 = vmatprep.subr.bf16.mxu0 0
        %1491 = vmatpush1.bf16.msra.mxu0 0
        %1492 = vmatprep.subr.bf16.mxu0 0
        %1493 = vmatpush1.bf16.msra.mxu0 0
        %1494 = vmatprep.subr.bf16.mxu0 0
        %1495 = vmatpush1.bf16.msra.mxu0 0
        %1496 = vmatprep.subr.bf16.mxu0 0
        %1497 = vmatpush1.bf16.msra.mxu0 0
        %1498 = vmatprep.subr.bf16.mxu0 0
        %1499 = vmatpush1.bf16.msra.mxu0 0
        %1500 = vmatprep.subr.bf16.mxu0 0
        %1501 = vmatpush1.bf16.msra.mxu0 0
        %1502 = vmatprep.subr.bf16.mxu0 0
        %1503 = vmatpush1.bf16.msra.mxu0 0
        %1504 = vmatprep.subr.bf16.mxu0 0
        %1505 = vmatpush1.bf16.msra.mxu0 0
        %1506 = vmatprep.mubr.bf16.mxu0 0
        %1507 = vmatmul.mubr.bf16.gmra.mrb[0].mxu0 %v1469
        %v1508 = vpop.f32.mrb[0].mxu0
        %v1509 = vadd.f32 0.0, %v1508
        %v1510 = vpop.f32.mrb[0].mxu0
        %v1511 = vpop.f32.mrb[0].mxu0
        %v1512 = vpop.f32.mrb[0].mxu0
        %1513 = vdwg.mxu0
        %v1514 = vadd.f32 %v1356, %v1509
        %v1516 = vlaneseq
        %v1517 = vshrl.u32 %v1516, 7
        %v1518 = vsub.s32 0, %v1517
        %v1519 = vrot.slane %v872, %v1518
        %v1521 = vrot.slane %v869, 4
        %v1522 = vrot.slane %v870, 4
        %1523 = vrot.lane.b32.xlu0 %v1522, 96
        %v1524 = vpop.permute.xlu0 %1523
        %v1526 = vsel %vm886, %v1521, 0
        %v1529 = vsel %vm886, %v1524, 0
        %1531 = vmatprep.subr.bf16.mxu0 0
        %1532 = vmatpush1.bf16.xpose.msra.mxu0 %v1529
        %1533 = vmatprep.subr.bf16.mxu0 0
        %1534 = vmatpush1.bf16.xpose.msra.mxu0 0
        %1535 = vmatprep.subr.bf16.mxu0 0
        %1536 = vmatpush1.bf16.xpose.msra.mxu0 0
        %1537 = vmatprep.subr.bf16.mxu0 0
        %1538 = vmatpush1.bf16.xpose.msra.mxu0 0
        %1539 = vmatprep.subr.bf16.mxu0 0
        %1540 = vmatpush1.bf16.xpose.msra.mxu0 0
        %1541 = vmatprep.subr.bf16.mxu0 0
        %1542 = vmatpush1.bf16.xpose.msra.mxu0 0
        %1543 = vmatprep.subr.bf16.mxu0 0
        %1544 = vmatpush1.bf16.xpose.msra.mxu0 0
        %1545 = vmatprep.subr.bf16.mxu0 0
        %1546 = vmatpush1.bf16.xpose.msra.mxu0 0
        %1547 = vmatprep.subr.bf16.mxu0 0
        %1548 = vmatpush1.bf16.xpose.msra.mxu0 0
        %1549 = vmatprep.subr.bf16.mxu0 0
        %1550 = vmatpush1.bf16.xpose.msra.mxu0 0
        %1551 = vmatprep.subr.bf16.mxu0 0
        %1552 = vmatpush1.bf16.xpose.msra.mxu0 0
        %1553 = vmatprep.subr.bf16.mxu0 0
        %1554 = vmatpush1.bf16.xpose.msra.mxu0 0
        %1555 = vmatprep.subr.bf16.mxu0 0
        %1556 = vmatpush1.bf16.xpose.msra.mxu0 0
        %1557 = vmatprep.subr.bf16.mxu0 0
        %1558 = vmatpush1.bf16.xpose.msra.mxu0 0
        %1559 = vmatprep.subr.bf16.mxu0 0
        %1560 = vmatpush1.bf16.xpose.msra.mxu0 0
        %1561 = vmatprep.subr.bf16.mxu0 0
        %1562 = vmatpush1.bf16.xpose.msra.mxu0 0
        %1563 = vmatprep.mubr.bf16.mxu0 0
        %1564 = vmatmul.mubr.bf16.gmra.mrb[0].mxu0 %v1526
        %v1565 = vpop.f32.mrb[0].mxu0
        %v1566 = vadd.f32 %v1519, %v1565
        %v1567 = vpop.f32.mrb[0].mxu0
        %v1568 = vpop.f32.mrb[0].mxu0
        %v1569 = vpop.f32.mrb[0].mxu0
        %1570 = vdwg.mxu0
        %v1571 = vsel %vm886, %v1566, -inf
        %1572 = vmax.xlane.f32.xlu0 %v1571
        %v1573 = vpop.xlane.xlu0 %1572
        %v1574 = vsub.f32 %v1566, %v1573
        %v1575 = vmul.f32 %v1574, 1.442695
        %v1576 = vpow.pop %v1575
        %v1577 = vsel %vm886, %v1576, 0.0
        %1578 = vadd.xlane.f32.xlu0 %v1577
        %v1579 = vpop.xlane.xlu0 %1578
        %v1580 = vrcp.pop %v1579
        %v1581 = vmul.f32 %v1576, %v1580
        %v1582 = vpack.c.bf16 %v1581, %v1581
        %1583 = vrot.lane.b32.xlu0 %v1522, 64
        %v1584 = vpop.permute.xlu0 %1583
        %v1586 = vsel %vm886, %v1582, 0
        %v1589 = vsel %vm950, %v1584, 0
        %1591 = vmatprep.subr.bf16.mxu0 0
        %1592 = vmatpush1.bf16.msra.mxu0 %v1589
        %1593 = vmatprep.subr.bf16.mxu0 0
        %1594 = vmatpush1.bf16.msra.mxu0 0
        %1595 = vmatprep.subr.bf16.mxu0 0
        %1596 = vmatpush1.bf16.msra.mxu0 0
        %1597 = vmatprep.subr.bf16.mxu0 0
        %1598 = vmatpush1.bf16.msra.mxu0 0
        %1599 = vmatprep.subr.bf16.mxu0 0
        %1600 = vmatpush1.bf16.msra.mxu0 0
        %1601 = vmatprep.subr.bf16.mxu0 0
        %1602 = vmatpush1.bf16.msra.mxu0 0
        %1603 = vmatprep.subr.bf16.mxu0 0
        %1604 = vmatpush1.bf16.msra.mxu0 0
        %1605 = vmatprep.subr.bf16.mxu0 0
        %1606 = vmatpush1.bf16.msra.mxu0 0
        %1607 = vmatprep.subr.bf16.mxu0 0
        %1608 = vmatpush1.bf16.msra.mxu0 0
        %1609 = vmatprep.subr.bf16.mxu0 0
        %1610 = vmatpush1.bf16.msra.mxu0 0
        %1611 = vmatprep.subr.bf16.mxu0 0
        %1612 = vmatpush1.bf16.msra.mxu0 0
        %1613 = vmatprep.subr.bf16.mxu0 0
        %1614 = vmatpush1.bf16.msra.mxu0 0
        %1615 = vmatprep.subr.bf16.mxu0 0
        %1616 = vmatpush1.bf16.msra.mxu0 0
        %1617 = vmatprep.subr.bf16.mxu0 0
        %1618 = vmatpush1.bf16.msra.mxu0 0
        %1619 = vmatprep.subr.bf16.mxu0 0
        %1620 = vmatpush1.bf16.msra.mxu0 0
        %1621 = vmatprep.subr.bf16.mxu0 0
        %1622 = vmatpush1.bf16.msra.mxu0 0
        %1623 = vmatprep.mubr.bf16.mxu0 0
        %1624 = vmatmul.mubr.bf16.gmra.mrb[0].mxu0 %v1586
        %v1625 = vpop.f32.mrb[0].mxu0
        %v1626 = vadd.f32 0.0, %v1625
        %v1627 = vpop.f32.mrb[0].mxu0
        %v1628 = vpop.f32.mrb[0].mxu0
        %v1629 = vpop.f32.mrb[0].mxu0
        %1630 = vdwg.mxu0
        %v1631 = vpack.c.bf16 %v1626, %v1626
        %1632 = vrot.lane.b32.xlu0 %v1521, 120
        %v1633 = vpop.permute.xlu0 %1632
        %1634 = vrot.lane.b32.xlu0 %v1522, 88
        %v1635 = vpop.permute.xlu0 %1634
        %v1637 = vsel %vm886, %v1633, 0
        %v1640 = vsel %vm886, %v1635, 0
        %1642 = vmatprep.subr.bf16.mxu0 0
        %1643 = vmatpush1.bf16.xpose.msra.mxu0 %v1640
        %1644 = vmatprep.subr.bf16.mxu0 0
        %1645 = vmatpush1.bf16.xpose.msra.mxu0 0
        %1646 = vmatprep.subr.bf16.mxu0 0
        %1647 = vmatpush1.bf16.xpose.msra.mxu0 0
        %1648 = vmatprep.subr.bf16.mxu0 0
        %1649 = vmatpush1.bf16.xpose.msra.mxu0 0
        %1650 = vmatprep.subr.bf16.mxu0 0
        %1651 = vmatpush1.bf16.xpose.msra.mxu0 0
        %1652 = vmatprep.subr.bf16.mxu0 0
        %1653 = vmatpush1.bf16.xpose.msra.mxu0 0
        %1654 = vmatprep.subr.bf16.mxu0 0
        %1655 = vmatpush1.bf16.xpose.msra.mxu0 0
        %1656 = vmatprep.subr.bf16.mxu0 0
        %1657 = vmatpush1.bf16.xpose.msra.mxu0 0
        %1658 = vmatprep.subr.bf16.mxu0 0
        %1659 = vmatpush1.bf16.xpose.msra.mxu0 0
        %1660 = vmatprep.subr.bf16.mxu0 0
        %1661 = vmatpush1.bf16.xpose.msra.mxu0 0
        %1662 = vmatprep.subr.bf16.mxu0 0
        %1663 = vmatpush1.bf16.xpose.msra.mxu0 0
        %1664 = vmatprep.subr.bf16.mxu0 0
        %1665 = vmatpush1.bf16.xpose.msra.mxu0 0
        %1666 = vmatprep.subr.bf16.mxu0 0
        %1667 = vmatpush1.bf16.xpose.msra.mxu0 0
        %1668 = vmatprep.subr.bf16.mxu0 0
        %1669 = vmatpush1.bf16.xpose.msra.mxu0 0
        %1670 = vmatprep.subr.bf16.mxu0 0
        %1671 = vmatpush1.bf16.xpose.msra.mxu0 0
        %1672 = vmatprep.subr.bf16.mxu0 0
        %1673 = vmatpush1.bf16.xpose.msra.mxu0 0
        %1674 = vmatprep.mubr.bf16.mxu0 0
        %1675 = vmatmul.mubr.bf16.gmra.mrb[0].mxu0 %v1637
        %v1676 = vpop.f32.mrb[0].mxu0
        %v1677 = vadd.f32 %v1519, %v1676
        %v1678 = vpop.f32.mrb[0].mxu0
        %v1679 = vpop.f32.mrb[0].mxu0
        %v1680 = vpop.f32.mrb[0].mxu0
        %1681 = vdwg.mxu0
        %v1682 = vsel %vm886, %v1677, -inf
        %1683 = vmax.xlane.f32.xlu0 %v1682
        %v1684 = vpop.xlane.xlu0 %1683
        %v1685 = vsub.f32 %v1677, %v1684
        %v1686 = vmul.f32 %v1685, 1.442695
        %v1687 = vpow.pop %v1686
        %v1688 = vsel %vm886, %v1687, 0.0
        %1689 = vadd.xlane.f32.xlu0 %v1688
        %v1690 = vpop.xlane.xlu0 %1689
        %v1691 = vrcp.pop %v1690
        %v1692 = vmul.f32 %v1687, %v1691
        %v1693 = vpack.c.bf16 %v1692, %v1692
        %1694 = vrot.lane.b32.xlu0 %v1522, 56
        %v1695 = vpop.permute.xlu0 %1694
        %v1697 = vsel %vm886, %v1693, 0
        %v1700 = vsel %vm950, %v1695, 0
        %1702 = vmatprep.subr.bf16.mxu0 0
        %1703 = vmatpush1.bf16.msra.mxu0 %v1700
        %1704 = vmatprep.subr.bf16.mxu0 0
        %1705 = vmatpush1.bf16.msra.mxu0 0
        %1706 = vmatprep.subr.bf16.mxu0 0
        %1707 = vmatpush1.bf16.msra.mxu0 0
        %1708 = vmatprep.subr.bf16.mxu0 0
        %1709 = vmatpush1.bf16.msra.mxu0 0
        %1710 = vmatprep.subr.bf16.mxu0 0
        %1711 = vmatpush1.bf16.msra.mxu0 0
        %1712 = vmatprep.subr.bf16.mxu0 0
        %1713 = vmatpush1.bf16.msra.mxu0 0
        %1714 = vmatprep.subr.bf16.mxu0 0
        %1715 = vmatpush1.bf16.msra.mxu0 0
        %1716 = vmatprep.subr.bf16.mxu0 0
        %1717 = vmatpush1.bf16.msra.mxu0 0
        %1718 = vmatprep.subr.bf16.mxu0 0
        %1719 = vmatpush1.bf16.msra.mxu0 0
        %1720 = vmatprep.subr.bf16.mxu0 0
        %1721 = vmatpush1.bf16.msra.mxu0 0
        %1722 = vmatprep.subr.bf16.mxu0 0
        %1723 = vmatpush1.bf16.msra.mxu0 0
        %1724 = vmatprep.subr.bf16.mxu0 0
        %1725 = vmatpush1.bf16.msra.mxu0 0
        %1726 = vmatprep.subr.bf16.mxu0 0
        %1727 = vmatpush1.bf16.msra.mxu0 0
        %1728 = vmatprep.subr.bf16.mxu0 0
        %1729 = vmatpush1.bf16.msra.mxu0 0
        %1730 = vmatprep.subr.bf16.mxu0 0
        %1731 = vmatpush1.bf16.msra.mxu0 0
        %1732 = vmatprep.subr.bf16.mxu0 0
        %1733 = vmatpush1.bf16.msra.mxu0 0
        %1734 = vmatprep.mubr.bf16.mxu0 0
        %1735 = vmatmul.mubr.bf16.gmra.mrb[0].mxu0 %v1697
        %v1736 = vpop.f32.mrb[0].mxu0
        %v1737 = vadd.f32 0.0, %v1736
        %v1738 = vpop.f32.mrb[0].mxu0
        %v1739 = vpop.f32.mrb[0].mxu0
        %v1740 = vpop.f32.mrb[0].mxu0
        %1741 = vdwg.mxu0
        %v1742 = vpack.c.bf16 %v1737, %v1737
        %v1744 = vsel %vm886, %v1742, 0
        %1746 = vmatprep.subr.bf16.mxu0 0
        %1747 = vmatpush1.bf16.msra.mxu0 %v1111
        %1748 = vmatprep.subr.bf16.mxu0 0
        %1749 = vmatpush1.bf16.msra.mxu0 0
        %1750 = vmatprep.subr.bf16.mxu0 0
        %1751 = vmatpush1.bf16.msra.mxu0 0
        %1752 = vmatprep.subr.bf16.mxu0 0
        %1753 = vmatpush1.bf16.msra.mxu0 0
        %1754 = vmatprep.subr.bf16.mxu0 0
        %1755 = vmatpush1.bf16.msra.mxu0 0
        %1756 = vmatprep.subr.bf16.mxu0 0
        %1757 = vmatpush1.bf16.msra.mxu0 0
        %1758 = vmatprep.subr.bf16.mxu0 0
        %1759 = vmatpush1.bf16.msra.mxu0 0
        %1760 = vmatprep.subr.bf16.mxu0 0
        %1761 = vmatpush1.bf16.msra.mxu0 0
        %1762 = vmatprep.subr.bf16.mxu0 0
        %1763 = vmatpush1.bf16.msra.mxu0 0
        %1764 = vmatprep.subr.bf16.mxu0 0
        %1765 = vmatpush1.bf16.msra.mxu0 0
        %1766 = vmatprep.subr.bf16.mxu0 0
        %1767 = vmatpush1.bf16.msra.mxu0 0
        %1768 = vmatprep.subr.bf16.mxu0 0
        %1769 = vmatpush1.bf16.msra.mxu0 0
        %1770 = vmatprep.subr.bf16.mxu0 0
        %1771 = vmatpush1.bf16.msra.mxu0 0
        %1772 = vmatprep.subr.bf16.mxu0 0
        %1773 = vmatpush1.bf16.msra.mxu0 0
        %1774 = vmatprep.subr.bf16.mxu0 0
        %1775 = vmatpush1.bf16.msra.mxu0 0
        %1776 = vmatprep.subr.bf16.mxu0 0
        %1777 = vmatpush1.bf16.msra.mxu0 0
        %1778 = vmatprep.mubr.bf16.mxu0 0
        %1779 = vmatmul.mubr.bf16.gmra.mrb[0].mxu0 %v1744
        %v1780 = vpop.f32.mrb[0].mxu0
        %v1781 = vadd.f32 0.0, %v1780
        %v1782 = vpop.f32.mrb[0].mxu0
        %v1783 = vpop.f32.mrb[0].mxu0
        %v1784 = vpop.f32.mrb[0].mxu0
        %1785 = vdwg.mxu0
        %v1787 = vsel %vm886, %v1631, 0
        %1789 = vmatprep.subr.bf16.mxu0 0
        %1790 = vmatpush1.bf16.msra.mxu0 %v1157
        %1791 = vmatprep.subr.bf16.mxu0 0
        %1792 = vmatpush1.bf16.msra.mxu0 0
        %1793 = vmatprep.subr.bf16.mxu0 0
        %1794 = vmatpush1.bf16.msra.mxu0 0
        %1795 = vmatprep.subr.bf16.mxu0 0
        %1796 = vmatpush1.bf16.msra.mxu0 0
        %1797 = vmatprep.subr.bf16.mxu0 0
        %1798 = vmatpush1.bf16.msra.mxu0 0
        %1799 = vmatprep.subr.bf16.mxu0 0
        %1800 = vmatpush1.bf16.msra.mxu0 0
        %1801 = vmatprep.subr.bf16.mxu0 0
        %1802 = vmatpush1.bf16.msra.mxu0 0
        %1803 = vmatprep.subr.bf16.mxu0 0
        %1804 = vmatpush1.bf16.msra.mxu0 0
        %1805 = vmatprep.subr.bf16.mxu0 0
        %1806 = vmatpush1.bf16.msra.mxu0 0
        %1807 = vmatprep.subr.bf16.mxu0 0
        %1808 = vmatpush1.bf16.msra.mxu0 0
        %1809 = vmatprep.subr.bf16.mxu0 0
        %1810 = vmatpush1.bf16.msra.mxu0 0
        %1811 = vmatprep.subr.bf16.mxu0 0
        %1812 = vmatpush1.bf16.msra.mxu0 0
        %1813 = vmatprep.subr.bf16.mxu0 0
        %1814 = vmatpush1.bf16.msra.mxu0 0
        %1815 = vmatprep.subr.bf16.mxu0 0
        %1816 = vmatpush1.bf16.msra.mxu0 0
        %1817 = vmatprep.subr.bf16.mxu0 0
        %1818 = vmatpush1.bf16.msra.mxu0 0
        %1819 = vmatprep.subr.bf16.mxu0 0
        %1820 = vmatpush1.bf16.msra.mxu0 0
        %1821 = vmatprep.mubr.bf16.mxu0 0
        %1822 = vmatmul.mubr.bf16.gmra.mrb[0].mxu0 %v1787
        %v1823 = vpop.f32.mrb[0].mxu0
        %v1824 = vadd.f32 %v1781, %v1823
        %v1825 = vpop.f32.mrb[0].mxu0
        %v1826 = vpop.f32.mrb[0].mxu0
        %v1827 = vpop.f32.mrb[0].mxu0
        %1828 = vdwg.mxu0
        %1829 = vrot.lane.b32.xlu0 %v1521, 112
        %v1830 = vpop.permute.xlu0 %1829
        %1831 = vrot.lane.b32.xlu0 %v1522, 80
        %v1832 = vpop.permute.xlu0 %1831
        %v1834 = vsel %vm886, %v1830, 0
        %v1837 = vsel %vm886, %v1832, 0
        %1839 = vmatprep.subr.bf16.mxu0 0
        %1840 = vmatpush1.bf16.xpose.msra.mxu0 %v1837
        %1841 = vmatprep.subr.bf16.mxu0 0
        %1842 = vmatpush1.bf16.xpose.msra.mxu0 0
        %1843 = vmatprep.subr.bf16.mxu0 0
        %1844 = vmatpush1.bf16.xpose.msra.mxu0 0
        %1845 = vmatprep.subr.bf16.mxu0 0
        %1846 = vmatpush1.bf16.xpose.msra.mxu0 0
        %1847 = vmatprep.subr.bf16.mxu0 0
        %1848 = vmatpush1.bf16.xpose.msra.mxu0 0
        %1849 = vmatprep.subr.bf16.mxu0 0
        %1850 = vmatpush1.bf16.xpose.msra.mxu0 0
        %1851 = vmatprep.subr.bf16.mxu0 0
        %1852 = vmatpush1.bf16.xpose.msra.mxu0 0
        %1853 = vmatprep.subr.bf16.mxu0 0
        %1854 = vmatpush1.bf16.xpose.msra.mxu0 0
        %1855 = vmatprep.subr.bf16.mxu0 0
        %1856 = vmatpush1.bf16.xpose.msra.mxu0 0
        %1857 = vmatprep.subr.bf16.mxu0 0
        %1858 = vmatpush1.bf16.xpose.msra.mxu0 0
        %1859 = vmatprep.subr.bf16.mxu0 0
        %1860 = vmatpush1.bf16.xpose.msra.mxu0 0
        %1861 = vmatprep.subr.bf16.mxu0 0
        %1862 = vmatpush1.bf16.xpose.msra.mxu0 0
        %1863 = vmatprep.subr.bf16.mxu0 0
        %1864 = vmatpush1.bf16.xpose.msra.mxu0 0
        %1865 = vmatprep.subr.bf16.mxu0 0
        %1866 = vmatpush1.bf16.xpose.msra.mxu0 0
        %1867 = vmatprep.subr.bf16.mxu0 0
        %1868 = vmatpush1.bf16.xpose.msra.mxu0 0
        %1869 = vmatprep.subr.bf16.mxu0 0
        %1870 = vmatpush1.bf16.xpose.msra.mxu0 0
        %1871 = vmatprep.mubr.bf16.mxu0 0
        %1872 = vmatmul.mubr.bf16.gmra.mrb[0].mxu0 %v1834
        %v1873 = vpop.f32.mrb[0].mxu0
        %v1874 = vadd.f32 %v1519, %v1873
        %v1875 = vpop.f32.mrb[0].mxu0
        %v1876 = vpop.f32.mrb[0].mxu0
        %v1877 = vpop.f32.mrb[0].mxu0
        %1878 = vdwg.mxu0
        %v1879 = vsel %vm886, %v1874, -inf
        %1880 = vmax.xlane.f32.xlu0 %v1879
        %v1881 = vpop.xlane.xlu0 %1880
        %v1882 = vsub.f32 %v1874, %v1881
        %v1883 = vmul.f32 %v1882, 1.442695
        %v1884 = vpow.pop %v1883
        %v1885 = vsel %vm886, %v1884, 0.0
        %1886 = vadd.xlane.f32.xlu0 %v1885
        %v1887 = vpop.xlane.xlu0 %1886
        %v1888 = vrcp.pop %v1887
        %v1889 = vmul.f32 %v1884, %v1888
        %v1890 = vpack.c.bf16 %v1889, %v1889
        %1891 = vrot.lane.b32.xlu0 %v1522, 48
        %v1892 = vpop.permute.xlu0 %1891
        %v1894 = vsel %vm886, %v1890, 0
        %v1897 = vsel %vm950, %v1892, 0
        %1899 = vmatprep.subr.bf16.mxu0 0
        %1900 = vmatpush1.bf16.msra.mxu0 %v1897
        %1901 = vmatprep.subr.bf16.mxu0 0
        %1902 = vmatpush1.bf16.msra.mxu0 0
        %1903 = vmatprep.subr.bf16.mxu0 0
        %1904 = vmatpush1.bf16.msra.mxu0 0
        %1905 = vmatprep.subr.bf16.mxu0 0
        %1906 = vmatpush1.bf16.msra.mxu0 0
        %1907 = vmatprep.subr.bf16.mxu0 0
        %1908 = vmatpush1.bf16.msra.mxu0 0
        %1909 = vmatprep.subr.bf16.mxu0 0
        %1910 = vmatpush1.bf16.msra.mxu0 0
        %1911 = vmatprep.subr.bf16.mxu0 0
        %1912 = vmatpush1.bf16.msra.mxu0 0
        %1913 = vmatprep.subr.bf16.mxu0 0
        %1914 = vmatpush1.bf16.msra.mxu0 0
        %1915 = vmatprep.subr.bf16.mxu0 0
        %1916 = vmatpush1.bf16.msra.mxu0 0
        %1917 = vmatprep.subr.bf16.mxu0 0
        %1918 = vmatpush1.bf16.msra.mxu0 0
        %1919 = vmatprep.subr.bf16.mxu0 0
        %1920 = vmatpush1.bf16.msra.mxu0 0
        %1921 = vmatprep.subr.bf16.mxu0 0
        %1922 = vmatpush1.bf16.msra.mxu0 0
        %1923 = vmatprep.subr.bf16.mxu0 0
        %1924 = vmatpush1.bf16.msra.mxu0 0
        %1925 = vmatprep.subr.bf16.mxu0 0
        %1926 = vmatpush1.bf16.msra.mxu0 0
        %1927 = vmatprep.subr.bf16.mxu0 0
        %1928 = vmatpush1.bf16.msra.mxu0 0
        %1929 = vmatprep.subr.bf16.mxu0 0
        %1930 = vmatpush1.bf16.msra.mxu0 0
        %1931 = vmatprep.mubr.bf16.mxu0 0
        %1932 = vmatmul.mubr.bf16.gmra.mrb[0].mxu0 %v1894
        %v1933 = vpop.f32.mrb[0].mxu0
        %v1934 = vadd.f32 0.0, %v1933
        %v1935 = vpop.f32.mrb[0].mxu0
        %v1936 = vpop.f32.mrb[0].mxu0
        %v1937 = vpop.f32.mrb[0].mxu0
        %1938 = vdwg.mxu0
        %v1939 = vpack.c.bf16 %v1934, %v1934
        %v1941 = vsel %vm886, %v1939, 0
        %1943 = vmatprep.subr.bf16.mxu0 0
        %1944 = vmatpush1.bf16.msra.mxu0 %v1314
        %1945 = vmatprep.subr.bf16.mxu0 0
        %1946 = vmatpush1.bf16.msra.mxu0 0
        %1947 = vmatprep.subr.bf16.mxu0 0
        %1948 = vmatpush1.bf16.msra.mxu0 0
        %1949 = vmatprep.subr.bf16.mxu0 0
        %1950 = vmatpush1.bf16.msra.mxu0 0
        %1951 = vmatprep.subr.bf16.mxu0 0
        %1952 = vmatpush1.bf16.msra.mxu0 0
        %1953 = vmatprep.subr.bf16.mxu0 0
        %1954 = vmatpush1.bf16.msra.mxu0 0
        %1955 = vmatprep.subr.bf16.mxu0 0
        %1956 = vmatpush1.bf16.msra.mxu0 0
        %1957 = vmatprep.subr.bf16.mxu0 0
        %1958 = vmatpush1.bf16.msra.mxu0 0
        %1959 = vmatprep.subr.bf16.mxu0 0
        %1960 = vmatpush1.bf16.msra.mxu0 0
        %1961 = vmatprep.subr.bf16.mxu0 0
        %1962 = vmatpush1.bf16.msra.mxu0 0
        %1963 = vmatprep.subr.bf16.mxu0 0
        %1964 = vmatpush1.bf16.msra.mxu0 0
        %1965 = vmatprep.subr.bf16.mxu0 0
        %1966 = vmatpush1.bf16.msra.mxu0 0
        %1967 = vmatprep.subr.bf16.mxu0 0
        %1968 = vmatpush1.bf16.msra.mxu0 0
        %1969 = vmatprep.subr.bf16.mxu0 0
        %1970 = vmatpush1.bf16.msra.mxu0 0
        %1971 = vmatprep.subr.bf16.mxu0 0
        %1972 = vmatpush1.bf16.msra.mxu0 0
        %1973 = vmatprep.subr.bf16.mxu0 0
        %1974 = vmatpush1.bf16.msra.mxu0 0
        %1975 = vmatprep.mubr.bf16.mxu0 0
        %1976 = vmatmul.mubr.bf16.gmra.mrb[0].mxu0 %v1941
        %v1977 = vpop.f32.mrb[0].mxu0
        %v1978 = vadd.f32 0.0, %v1977
        %v1979 = vpop.f32.mrb[0].mxu0
        %v1980 = vpop.f32.mrb[0].mxu0
        %v1981 = vpop.f32.mrb[0].mxu0
        %1982 = vdwg.mxu0
        %v1983 = vadd.f32 %v1824, %v1978
        %1984 = vrot.lane.b32.xlu0 %v1521, 104
        %v1985 = vpop.permute.xlu0 %1984
        %1986 = vrot.lane.b32.xlu0 %v1522, 72
        %v1987 = vpop.permute.xlu0 %1986
        %v1989 = vsel %vm886, %v1985, 0
        %v1992 = vsel %vm886, %v1987, 0
        %1994 = vmatprep.subr.bf16.mxu0 0
        %1995 = vmatpush1.bf16.xpose.msra.mxu0 %v1992
        %1996 = vmatprep.subr.bf16.mxu0 0
        %1997 = vmatpush1.bf16.xpose.msra.mxu0 0
        %1998 = vmatprep.subr.bf16.mxu0 0
        %1999 = vmatpush1.bf16.xpose.msra.mxu0 0
        %2000 = vmatprep.subr.bf16.mxu0 0
        %2001 = vmatpush1.bf16.xpose.msra.mxu0 0
        %2002 = vmatprep.subr.bf16.mxu0 0
        %2003 = vmatpush1.bf16.xpose.msra.mxu0 0
        %2004 = vmatprep.subr.bf16.mxu0 0
        %2005 = vmatpush1.bf16.xpose.msra.mxu0 0
        %2006 = vmatprep.subr.bf16.mxu0 0
        %2007 = vmatpush1.bf16.xpose.msra.mxu0 0
        %2008 = vmatprep.subr.bf16.mxu0 0
        %2009 = vmatpush1.bf16.xpose.msra.mxu0 0
        %2010 = vmatprep.subr.bf16.mxu0 0
        %2011 = vmatpush1.bf16.xpose.msra.mxu0 0
        %2012 = vmatprep.subr.bf16.mxu0 0
        %2013 = vmatpush1.bf16.xpose.msra.mxu0 0
        %2014 = vmatprep.subr.bf16.mxu0 0
        %2015 = vmatpush1.bf16.xpose.msra.mxu0 0
        %2016 = vmatprep.subr.bf16.mxu0 0
        %2017 = vmatpush1.bf16.xpose.msra.mxu0 0
        %2018 = vmatprep.subr.bf16.mxu0 0
        %2019 = vmatpush1.bf16.xpose.msra.mxu0 0
        %2020 = vmatprep.subr.bf16.mxu0 0
        %2021 = vmatpush1.bf16.xpose.msra.mxu0 0
        %2022 = vmatprep.subr.bf16.mxu0 0
        %2023 = vmatpush1.bf16.xpose.msra.mxu0 0
        %2024 = vmatprep.subr.bf16.mxu0 0
        %2025 = vmatpush1.bf16.xpose.msra.mxu0 0
        %2026 = vmatprep.mubr.bf16.mxu0 0
        %2027 = vmatmul.mubr.bf16.gmra.mrb[0].mxu0 %v1989
        %v2028 = vpop.f32.mrb[0].mxu0
        %v2029 = vadd.f32 %v1519, %v2028
        %v2030 = vpop.f32.mrb[0].mxu0
        %v2031 = vpop.f32.mrb[0].mxu0
        %v2032 = vpop.f32.mrb[0].mxu0
        %2033 = vdwg.mxu0
        %v2034 = vsel %vm886, %v2029, -inf
        %2035 = vmax.xlane.f32.xlu0 %v2034
        %v2036 = vpop.xlane.xlu0 %2035
        %v2037 = vsub.f32 %v2029, %v2036
        %v2038 = vmul.f32 %v2037, 1.442695
        %v2039 = vpow.pop %v2038
        %v2040 = vsel %vm886, %v2039, 0.0
        %2041 = vadd.xlane.f32.xlu0 %v2040
        %v2042 = vpop.xlane.xlu0 %2041
        %v2043 = vrcp.pop %v2042
        %v2044 = vmul.f32 %v2039, %v2043
        %v2045 = vpack.c.bf16 %v2044, %v2044
        %2046 = vrot.lane.b32.xlu0 %v1522, 40
        %v2047 = vpop.permute.xlu0 %2046
        %v2049 = vsel %vm886, %v2045, 0
        %v2052 = vsel %vm950, %v2047, 0
        %2054 = vmatprep.subr.bf16.mxu0 0
        %2055 = vmatpush1.bf16.msra.mxu0 %v2052
        %2056 = vmatprep.subr.bf16.mxu0 0
        %2057 = vmatpush1.bf16.msra.mxu0 0
        %2058 = vmatprep.subr.bf16.mxu0 0
        %2059 = vmatpush1.bf16.msra.mxu0 0
        %2060 = vmatprep.subr.bf16.mxu0 0
        %2061 = vmatpush1.bf16.msra.mxu0 0
        %2062 = vmatprep.subr.bf16.mxu0 0
        %2063 = vmatpush1.bf16.msra.mxu0 0
        %2064 = vmatprep.subr.bf16.mxu0 0
        %2065 = vmatpush1.bf16.msra.mxu0 0
        %2066 = vmatprep.subr.bf16.mxu0 0
        %2067 = vmatpush1.bf16.msra.mxu0 0
        %2068 = vmatprep.subr.bf16.mxu0 0
        %2069 = vmatpush1.bf16.msra.mxu0 0
        %2070 = vmatprep.subr.bf16.mxu0 0
        %2071 = vmatpush1.bf16.msra.mxu0 0
        %2072 = vmatprep.subr.bf16.mxu0 0
        %2073 = vmatpush1.bf16.msra.mxu0 0
        %2074 = vmatprep.subr.bf16.mxu0 0
        %2075 = vmatpush1.bf16.msra.mxu0 0
        %2076 = vmatprep.subr.bf16.mxu0 0
        %2077 = vmatpush1.bf16.msra.mxu0 0
        %2078 = vmatprep.subr.bf16.mxu0 0
        %2079 = vmatpush1.bf16.msra.mxu0 0
        %2080 = vmatprep.subr.bf16.mxu0 0
        %2081 = vmatpush1.bf16.msra.mxu0 0
        %2082 = vmatprep.subr.bf16.mxu0 0
        %2083 = vmatpush1.bf16.msra.mxu0 0
        %2084 = vmatprep.subr.bf16.mxu0 0
        %2085 = vmatpush1.bf16.msra.mxu0 0
        %2086 = vmatprep.mubr.bf16.mxu0 0
        %2087 = vmatmul.mubr.bf16.gmra.mrb[0].mxu0 %v2049
        %v2088 = vpop.f32.mrb[0].mxu0
        %v2089 = vadd.f32 0.0, %v2088
        %v2090 = vpop.f32.mrb[0].mxu0
        %v2091 = vpop.f32.mrb[0].mxu0
        %v2092 = vpop.f32.mrb[0].mxu0
        %2093 = vdwg.mxu0
        %v2094 = vpack.c.bf16 %v2089, %v2089
        %v2096 = vsel %vm886, %v2094, 0
        %2098 = vmatprep.subr.bf16.mxu0 0
        %2099 = vmatpush1.bf16.msra.mxu0 %v1472
        %2100 = vmatprep.subr.bf16.mxu0 0
        %2101 = vmatpush1.bf16.msra.mxu0 0
        %2102 = vmatprep.subr.bf16.mxu0 0
        %2103 = vmatpush1.bf16.msra.mxu0 0
        %2104 = vmatprep.subr.bf16.mxu0 0
        %2105 = vmatpush1.bf16.msra.mxu0 0
        %2106 = vmatprep.subr.bf16.mxu0 0
        %2107 = vmatpush1.bf16.msra.mxu0 0
        %2108 = vmatprep.subr.bf16.mxu0 0
        %2109 = vmatpush1.bf16.msra.mxu0 0
        %2110 = vmatprep.subr.bf16.mxu0 0
        %2111 = vmatpush1.bf16.msra.mxu0 0
        %2112 = vmatprep.subr.bf16.mxu0 0
        %2113 = vmatpush1.bf16.msra.mxu0 0
        %2114 = vmatprep.subr.bf16.mxu0 0
        %2115 = vmatpush1.bf16.msra.mxu0 0
        %2116 = vmatprep.subr.bf16.mxu0 0
        %2117 = vmatpush1.bf16.msra.mxu0 0
        %2118 = vmatprep.subr.bf16.mxu0 0
        %2119 = vmatpush1.bf16.msra.mxu0 0
        %2120 = vmatprep.subr.bf16.mxu0 0
        %2121 = vmatpush1.bf16.msra.mxu0 0
        %2122 = vmatprep.subr.bf16.mxu0 0
        %2123 = vmatpush1.bf16.msra.mxu0 0
        %2124 = vmatprep.subr.bf16.mxu0 0
        %2125 = vmatpush1.bf16.msra.mxu0 0
        %2126 = vmatprep.subr.bf16.mxu0 0
        %2127 = vmatpush1.bf16.msra.mxu0 0
        %2128 = vmatprep.subr.bf16.mxu0 0
        %2129 = vmatpush1.bf16.msra.mxu0 0
        %2130 = vmatprep.mubr.bf16.mxu0 0
        %2131 = vmatmul.mubr.bf16.gmra.mrb[0].mxu0 %v2096
        %v2132 = vpop.f32.mrb[0].mxu0
        %v2133 = vadd.f32 0.0, %v2132
        %v2134 = vpop.f32.mrb[0].mxu0
        %v2135 = vpop.f32.mrb[0].mxu0
        %v2136 = vpop.f32.mrb[0].mxu0
        %2137 = vdwg.mxu0
        %v2138 = vadd.f32 %v1983, %v2133
        %v2139 = vld [vmem:[%s709] sm:$0x1]
        %v2141 = vlaneseq
        %v2142 = vshrl.u32 %v2141, 7
        %v2143 = vsub.s32 0, %v2142
        %v2144 = vrot.slane %v2139, %v2143
        %v2146 = vadd.f32 %v1514, %v2144
        %v2147 = vadd.f32 %v2138, %v2144
        %v2148 = vadd.f32 %v2146, %v796
        %v2149 = vadd.f32 %v2147, %v797
        %v2150 = vld [vmem:[%s712] sm:$0x1]
        %v2151 = vld [vmem:[%s715] sm:$0x1]
        %v2152 = vsel %vm822, %v2148, 0.0
        %2153 = vadd.xlane.f32.xlu0 %v2152
        %v2154 = vpop.xlane.xlu0 %2153
        %v2155 = vsel %vm822, %v2149, 0.0
        %2156 = vadd.xlane.f32.xlu0 %v2155
        %v2157 = vpop.xlane.xlu0 %2156
        %v2158 = vrcp.pop 32.0
        %v2159 = vmul.f32 %v2154, %v2158
        %v2160 = vmul.f32 %v2157, %v2158
        %v2161 = vsub.f32 %v2148, %v2159
        %v2162 = vsub.f32 %v2149, %v2160
        %v2163 = vmul.f32 %v2161, %v2161
        %v2164 = vmul.f32 %v2162, %v2162
        %v2165 = vsel %vm822, %v2163, 0.0
        %2166 = vadd.xlane.f32.xlu0 %v2165
        %v2167 = vpop.xlane.xlu0 %2166
        %v2168 = vsel %vm822, %v2164, 0.0
        %2169 = vadd.xlane.f32.xlu0 %v2168
        %v2170 = vpop.xlane.xlu0 %2169
        %v2171 = vmul.f32 %v2167, %v2158
        %v2172 = vmul.f32 %v2170, %v2158
        %v2173 = vadd.f32 %v2171, 1e-12
        %v2174 = vadd.f32 %v2172, 1e-12
        %v2175 = vrsqrt.pop %v2173
        %v2176 = vrsqrt.pop %v2174
        %v2177 = vmul.f32 %v2161, %v2175
        %v2178 = vmul.f32 %v2162, %v2176
        %v2180 = vlaneseq
        %v2181 = vshrl.u32 %v2180, 7
        %v2182 = vsub.s32 0, %v2181
        %v2183 = vrot.slane %v2150, %v2182
        %v2185 = vmul.f32 %v2177, %v2183
        %v2186 = vmul.f32 %v2178, %v2183
        %v2188 = vlaneseq
        %v2189 = vshrl.u32 %v2188, 7
        %v2190 = vsub.s32 0, %v2189
        %v2191 = vrot.slane %v2151, %v2190
        %v2193 = vadd.f32 %v2185, %v2191
        %v2194 = vadd.f32 %v2186, %v2191
        %v2195 = vpack.c.bf16 %v2194, %v2193
        %v2196 = vld [vmem:[%s720] sm:$0xf]
        %v2197 = vld [vmem:[%s720 + $0x4] sm:$0xf]
        %v2198 = vld [vmem:[%s720 + $0x8] sm:$0xf]
        %v2199 = vld [vmem:[%s720 + $0xc] sm:$0xf]
        %v2200 = vld [vmem:[%s723] sm:$0x1]
        %v2202 = vlaneseq
        %v2203 = vshrl.u32 %v2202, 7
        %v2204 = vsub.s32 0, %v2203
        %v2205 = vrot.slane %v2200, %v2204
        %v2211 = vunpack.c.l.b16 %v2196
        %v2212 = vunpack.c.l.b16 %v2197
        %v2213 = vunpack.c.l.b16 %v2198
        %v2214 = vunpack.c.l.b16 %v2199
        %v2215 = vpack.c.b16 %v2212, %v2211
        %v2216 = vpack.c.b16 %v2214, %v2213
        %v2220 = vsel %vm822, %v2195, 0
        %2222 = vmatprep.subr.bf16.mxu0 0
        %2223 = vmatpush1.bf16.msra.mxu0 %v2215
        %2224 = vmatprep.subr.bf16.mxu0 0
        %2225 = vmatpush1.bf16.msra.mxu0 %v2216
        %2226 = vmatprep.subr.bf16.mxu0 0
        %2227 = vmatpush1.bf16.msra.mxu0 0
        %2228 = vmatprep.subr.bf16.mxu0 0
        %2229 = vmatpush1.bf16.msra.mxu0 0
        %2230 = vmatprep.subr.bf16.mxu0 0
        %2231 = vmatpush1.bf16.msra.mxu0 0
        %2232 = vmatprep.subr.bf16.mxu0 0
        %2233 = vmatpush1.bf16.msra.mxu0 0
        %2234 = vmatprep.subr.bf16.mxu0 0
        %2235 = vmatpush1.bf16.msra.mxu0 0
        %2236 = vmatprep.subr.bf16.mxu0 0
        %2237 = vmatpush1.bf16.msra.mxu0 0
        %2238 = vmatprep.subr.bf16.mxu0 0
        %2239 = vmatpush1.bf16.msra.mxu0 0
        %2240 = vmatprep.subr.bf16.mxu0 0
        %2241 = vmatpush1.bf16.msra.mxu0 0
        %2242 = vmatprep.subr.bf16.mxu0 0
        %2243 = vmatpush1.bf16.msra.mxu0 0
        %2244 = vmatprep.subr.bf16.mxu0 0
        %2245 = vmatpush1.bf16.msra.mxu0 0
        %2246 = vmatprep.subr.bf16.mxu0 0
        %2247 = vmatpush1.bf16.msra.mxu0 0
        %2248 = vmatprep.subr.bf16.mxu0 0
        %2249 = vmatpush1.bf16.msra.mxu0 0
        %2250 = vmatprep.subr.bf16.mxu0 0
        %2251 = vmatpush1.bf16.msra.mxu0 0
        %2252 = vmatprep.subr.bf16.mxu0 0
        %2253 = vmatpush1.bf16.msra.mxu0 0
        %2254 = vmatprep.mubr.bf16.mxu0 0
        %2255 = vmatmul.mubr.bf16.gmra.mrb[0].mxu0 %v2220
        %v2256 = vpop.f32.mrb[0].mxu0
        %v2257 = vadd.f32 %v2205, %v2256
        %v2258 = vpop.f32.mrb[0].mxu0
        %v2259 = vpop.f32.mrb[0].mxu0
        %v2260 = vadd.f32 %v2205, %v2259
        %v2261 = vpop.f32.mrb[0].mxu0
        %2262 = vdwg.mxu0
        %v2263 = vmul.f32 %v2257, %v2257
        %v2264 = vmul.f32 %v2260, %v2260
        %v2265 = vmul.f32 %v2257, %v2263
        %v2266 = vmul.f32 %v2260, %v2264
        %v2267 = vmul.f32 %v2265, 0.044715
        %v2268 = vmul.f32 %v2266, 0.044715
        %v2269 = vadd.f32 %v2257, %v2267
        %v2270 = vadd.f32 %v2260, %v2268
        %v2271 = vmul.f32 %v2269, 0.7978846
        %v2272 = vmul.f32 %v2270, 0.7978846
        %v2273 = vtanh.pop %v2271
        %v2274 = vtanh.pop %v2272
        %v2275 = vadd.f32 %v2273, 1.0
        %v2276 = vadd.f32 %v2274, 1.0
        %v2277 = vmul.f32 %v2275, 0.5
        %v2278 = vmul.f32 %v2276, 0.5
        %v2279 = vmul.f32 %v2257, %v2277
        %v2280 = vmul.f32 %v2260, %v2278
        %v2281 = vpack.c.bf16 %v2280, %v2279
        %v2282 = vld [vmem:[%s728] sm:$0xf]
        %v2283 = vld [vmem:[%s728 + $0x4] sm:$0xf]
        %v2284 = vld [vmem:[%s728 + $0x8] sm:$0xf]
        %v2285 = vld [vmem:[%s728 + $0xc] sm:$0xf]
        %v2286 = vld [vmem:[%s728 + $0x10] sm:$0xf]
        %v2287 = vld [vmem:[%s728 + $0x14] sm:$0xf]
        %v2288 = vld [vmem:[%s728 + $0x18] sm:$0xf]
        %v2289 = vld [vmem:[%s728 + $0x1c] sm:$0xf]
        %v2290 = vld [vmem:[%s731] sm:$0x1]
        %v2292 = vlaneseq
        %v2293 = vshrl.u32 %v2292, 7
        %v2294 = vsub.s32 0, %v2293
        %v2295 = vrot.slane %v2290, %v2294
        %v2305 = vunpack.c.l.b16 %v2282
        %v2306 = vunpack.c.l.b16 %v2283
        %v2307 = vunpack.c.l.b16 %v2284
        %v2308 = vunpack.c.l.b16 %v2285
        %v2309 = vunpack.c.l.b16 %v2286
        %v2310 = vunpack.c.l.b16 %v2287
        %v2311 = vunpack.c.l.b16 %v2288
        %v2312 = vunpack.c.l.b16 %v2289
        %v2313 = vpack.c.b16 %v2306, %v2305
        %v2314 = vpack.c.b16 %v2308, %v2307
        %v2315 = vpack.c.b16 %v2310, %v2309
        %v2316 = vpack.c.b16 %v2312, %v2311
        %vm2321 = vcmask 523264
        %v2323 = vsel %vm2321, %v2281, 0
        %2325 = vmatprep.subr.bf16.mxu0 0
        %2326 = vmatpush1.bf16.msra.mxu0 %v2313
        %2327 = vmatprep.subr.bf16.mxu0 0
        %2328 = vmatpush1.bf16.msra.mxu0 %v2314
        %2329 = vmatprep.subr.bf16.mxu0 0
        %2330 = vmatpush1.bf16.msra.mxu0 %v2315
        %2331 = vmatprep.subr.bf16.mxu0 0
        %2332 = vmatpush1.bf16.msra.mxu0 %v2316
        %2333 = vmatprep.subr.bf16.mxu0 0
        %2334 = vmatpush1.bf16.msra.mxu0 0
        %2335 = vmatprep.subr.bf16.mxu0 0
        %2336 = vmatpush1.bf16.msra.mxu0 0
        %2337 = vmatprep.subr.bf16.mxu0 0
        %2338 = vmatpush1.bf16.msra.mxu0 0
        %2339 = vmatprep.subr.bf16.mxu0 0
        %2340 = vmatpush1.bf16.msra.mxu0 0
        %2341 = vmatprep.subr.bf16.mxu0 0
        %2342 = vmatpush1.bf16.msra.mxu0 0
        %2343 = vmatprep.subr.bf16.mxu0 0
        %2344 = vmatpush1.bf16.msra.mxu0 0
        %2345 = vmatprep.subr.bf16.mxu0 0
        %2346 = vmatpush1.bf16.msra.mxu0 0
        %2347 = vmatprep.subr.bf16.mxu0 0
        %2348 = vmatpush1.bf16.msra.mxu0 0
        %2349 = vmatprep.subr.bf16.mxu0 0
        %2350 = vmatpush1.bf16.msra.mxu0 0
        %2351 = vmatprep.subr.bf16.mxu0 0
        %2352 = vmatpush1.bf16.msra.mxu0 0
        %2353 = vmatprep.subr.bf16.mxu0 0
        %2354 = vmatpush1.bf16.msra.mxu0 0
        %2355 = vmatprep.subr.bf16.mxu0 0
        %2356 = vmatpush1.bf16.msra.mxu0 0
        %2357 = vmatprep.mubr.bf16.mxu0 0
        %2358 = vmatmul.mubr.bf16.gmra.mrb[0].mxu0 %v2323
        %v2359 = vpop.f32.mrb[0].mxu0
        %v2360 = vadd.f32 %v2295, %v2359
        %v2361 = vpop.f32.mrb[0].mxu0
        %v2362 = vpop.f32.mrb[0].mxu0
        %v2363 = vadd.f32 %v2295, %v2362
        %v2364 = vpop.f32.mrb[0].mxu0
        %2365 = vdwg.mxu0
        %v2366 = vadd.f32 %v2360, %v2193
        %v2367 = vadd.f32 %v2363, %v2194
        %v2368 = vld [vmem:[%s734] sm:$0x1]
        %v2369 = vld [vmem:[%s737] sm:$0x1]
        %v2370 = vsel %vm822, %v2366, 0.0
        %2371 = vadd.xlane.f32.xlu0 %v2370
        %v2372 = vpop.xlane.xlu0 %2371
        %v2373 = vsel %vm822, %v2367, 0.0
        %2374 = vadd.xlane.f32.xlu0 %v2373
        %v2375 = vpop.xlane.xlu0 %2374
        %v2376 = vmul.f32 %v2372, %v2158
        %v2377 = vmul.f32 %v2375, %v2158
        %v2378 = vsub.f32 %v2366, %v2376
        %v2379 = vsub.f32 %v2367, %v2377
        %v2380 = vmul.f32 %v2378, %v2378
        %v2381 = vmul.f32 %v2379, %v2379
        %v2382 = vsel %vm822, %v2380, 0.0
        %2383 = vadd.xlane.f32.xlu0 %v2382
        %v2384 = vpop.xlane.xlu0 %2383
        %v2385 = vsel %vm822, %v2381, 0.0
        %2386 = vadd.xlane.f32.xlu0 %v2385
        %v2387 = vpop.xlane.xlu0 %2386
        %v2388 = vmul.f32 %v2384, %v2158
        %v2389 = vmul.f32 %v2387, %v2158
        %v2390 = vadd.f32 %v2388, 1e-12
        %v2391 = vadd.f32 %v2389, 1e-12
        %v2392 = vrsqrt.pop %v2390
        %v2393 = vrsqrt.pop %v2391
        %v2394 = vmul.f32 %v2378, %v2392
        %v2395 = vmul.f32 %v2379, %v2393
        %v2397 = vlaneseq
        %v2398 = vshrl.u32 %v2397, 7
        %v2399 = vsub.s32 0, %v2398
        %v2400 = vrot.slane %v2368, %v2399
        %v2402 = vmul.f32 %v2394, %v2400
        %v2403 = vmul.f32 %v2395, %v2400
        %v2405 = vlaneseq
        %v2406 = vshrl.u32 %v2405, 7
        %v2407 = vsub.s32 0, %v2406
        %v2408 = vrot.slane %v2369, %v2407
        %v2410 = vadd.f32 %v2402, %v2408
        %v2411 = vadd.f32 %v2403, %v2408
        %2412 = vst.msk [vmem:[#allocation2] sm:$0xff] %vm822, %v2410
        %2413 = vst.msk [vmem:[#allocation2 + $0x8] sm:$0xff] %vm822, %v2411
        %p2414 = scmp.eq.s32.totalorder %s33, 1
        // Predicated region
        $region89: #{simcse_forward.1} parent=83 // pred_check
          %p2415 = pneg %p2414
        $region90: #{simcse_forward.1} parent=83 // pred_check_branch
          %2417 = sbr.rel (%p2415) target = $region92
        $region91: #{simcse_forward.1} parent=83 // pred_region
          %vm2418 = vcmask 253952
          %2419 = vst.msk [vmem:[#allocation4] sm:$0x1] %vm2418, %v2410
          %2420 = vst.msk [vmem:[#allocation4 + $0x1] sm:$0x1] %vm2418, %v2411
        $region92: #{simcse_forward.1} parent=83 // pred_fallthru
          _
        // Predicated region
        $region93: #{simcse_forward.1} parent=83 // pred_check
          %p2421 = pneg %p464
        $region94: #{simcse_forward.1} parent=83 // pred_check_branch
          %2423 = sbr.rel (%p2421) target = $region96
        $region95: #{simcse_forward.1} parent=83 // pred_region
          %s2424 = smul.u32 2, %s32
          %s2426 = ssub.s32 32, 32
          %2427 = vsyncadd [#allocation5], %s2426
          %s2428 = smul.addr %s2424, 16
          %s2429 = scalar_lea.hbm %s16, %s2428
          %s2430 = sshll.u32 [#allocation4], 4
          %s2431 = int_to_ptr.vmem [resolvable:$true] %s2430
          %2436 = dma.vmem_to_hbm [thread:$0]  %s2431, 32, %s2429, [#allocation5], 16, 16, 1
        $region96: #{simcse_forward.1} parent=83 // pred_fallthru
          _
        // Predicated region
        $region97: #{simcse_forward.1} parent=83 // pred_check
          %p2437 = pneg %p464
        $region98: #{simcse_forward.1} parent=83 // pred_check_branch
          %2439 = sbr.rel (%p2437) target = $region100
        $region99: #{simcse_forward.1} parent=83 // pred_region
          %2440 = dma.done [#allocation5], 32
        $region100: #{simcse_forward.1} parent=83 // pred_fallthru
          _
      $region84: #{simcse_forward.1} parent=5 // pred_fallthru
        _
      %p2441 = scmp.le.s32.totalorder 2, %s23
      // Predicated region
      $region101: #{simcse_forward.1} parent=5 // pred_check
        %p2442 = pneg %p2441
      $region102: #{simcse_forward.1} parent=5 // pred_check_branch
        %2444 = sbr.rel (%p2442) target = $region104
      $region103: #{simcse_forward.1} parent=5 // pred_region
        %s2445 = ssub.s32 %s23, 2
      $region104: #{simcse_forward.1} parent=5 // pred_fallthru
        _
    $region6: #{simcse_forward.1} parent=1 // loop_footer
      %s27 = sadd.s32 1, %s23
    $region7: #{simcse_forward.1} parent=1 // loop_footer_branch
      %22 = sbr.rel target = $region3
    $region8: #{simcse_forward.1} parent=1 // loop_exit
      _
    %2446 = vsyncpa [#allocation5], 1
    %s2447 = scalar_lea.sflag [#allocation5], 1
    %2448 = vsyncpa %s2447, 1

</llo_original>
